<compile_context>
chip_gen: v6e
topology: v6e:2x2x1
jax: 0.10.0
libtpu: 0.0.40
codegen_flags: <defaults>
</compile_context>

<pallas_src>
import jax
import jax.numpy as jnp
import numpy as np
from jax.experimental import pallas as pl
from jax.experimental.pallas import tpu as pltpu

KERNEL_SIZES = (3, 4, 5)   # matches the PyTorch default kernel_sizes=[3, 4, 5]


def _round_up(x, m):
    return ((x + m - 1) // m) * m


def cnn_kernel(tok_ref, emb_hbm, w_ref, bconv_ref, mask_ref, wdiff_ref, bdiff_ref,
               out_ref, ebuf, sems):
    """One grid step = one batch row: embedding gather (manual DMA) + fused conv blocks
    + ReLU + masked maxpool + fc + 2-class softmax, all VMEM-resident."""
    b = pl.program_id(0)
    S = tok_ref.shape[1]
    S_pad, E = ebuf.shape
    kmax = w_ref.shape[0]
    T_pad, Fpad = mask_ref.shape

    # Zero the padded tail rows (rows >= S are never written by the gather DMAs).
    ebuf[pl.ds(S, S_pad - S), :] = jnp.zeros((S_pad - S, E), jnp.float32)

    # Fused embedding lookup: one small row DMA per token, all issued before any wait.
    copies = []
    for s in range(S):
        tok = tok_ref[b, s]
        cp = pltpu.make_async_copy(emb_hbm.at[pl.ds(tok, 1), :],
                                   ebuf.at[pl.ds(s, 1), :],
                                   sems.at[s])
        cp.start()
        copies.append(cp)
    for cp in copies:
        cp.wait()

    x = ebuf[...]                                     # (S_pad, E) f32

    # All three Conv1d blocks fused: kmax accumulated matmuls, bf16 operands, f32 acc.
    acc = jnp.zeros((T_pad, Fpad), jnp.float32)
    for j in range(kmax):
        xw = x[j:j + T_pad, :].astype(jnp.bfloat16)
        acc = acc + jnp.dot(xw, w_ref[j], preferred_element_type=jnp.float32)

    acc = acc + bconv_ref[...]                        # conv bias (f32, broadcast)
    acc = jnp.maximum(acc, 0.0)                       # ReLU
    acc = jnp.where(mask_ref[...] > 0.5, acc, 0.0)    # mask invalid conv positions (NaN-safe)
    pooled = jnp.max(acc, axis=0, keepdims=True)      # full-length MaxPool -> (1, Fpad)

    # Linear(3F -> 2) + softmax(dim=1) over 2 classes == sigmoid of the logit difference.
    d = jnp.sum(pooled * wdiff_ref[...], axis=1, keepdims=True) + bdiff_ref[...]
    p1 = 1.0 / (1.0 + jnp.exp(-d))
    p0 = 1.0 - p1

    # Single lane-dense store: features in cols [0, 3F) (zero-padded cols are 0 by
    # construction), probabilities appended in the last two columns.
    lane = jax.lax.broadcasted_iota(jnp.int32, (1, Fpad), 1)
    slab = (pooled
            + jnp.where(lane == Fpad - 2, p0, 0.0)
            + jnp.where(lane == Fpad - 1, p1, 0.0))
    out_ref[...] = slab


def cnn_forward(tokens, params):
    """tokens: (B, S) int32.  Returns (softmax probs (B, 2), feature_extracted (B, 3F))."""
    emb_table = params['embedding'].astype(jnp.float32)   # stays in HBM; gathered in-kernel
    B, S = tokens.shape
    E = emb_table.shape[1]
    nk = len(KERNEL_SIZES)
    kmax = max(KERNEL_SIZES)
    F = params['w_conv'][0].shape[-1]
    NPF = nk * F

    FPAD = max(128, _round_up(NPF + 2, 128))   # lane-dense output slab width
    T_PAD = _round_up(S, 8)                    # >= S - min(k) + 1, sublane aligned
    S_PAD = _round_up(T_PAD + kmax - 1, 8)     # padded sequence length for the windows
    assert NPF + 2 <= FPAD

    # Fused conv weight in torch flatten order (column = f*nk + ki): zero-pad each block
    # to kmax taps, interleave filter banks along lanes, pad to FPAD, stage as bf16.
    w_pad = [jnp.pad(w, ((0, kmax - w.shape[0]), (0, 0), (0, 0)))
             for w in params['w_conv']]                                   # (kmax, E, F) each
    w_full = jnp.stack(w_pad, axis=-1).reshape(kmax, E, NPF)
    w_full = jnp.pad(w_full, ((0, 0), (0, 0), (0, FPAD - NPF))).astype(jnp.bfloat16)

    b_full = jnp.stack(params['b_conv'], axis=-1).reshape(NPF)
    b_full = jnp.pad(b_full, (0, FPAD - NPF)).reshape(1, FPAD).astype(jnp.float32)

    # Per-column valid conv-output length (depends only on the block's kernel size).
    t_valid = jnp.tile(jnp.asarray([S - k + 1 for k in KERNEL_SIZES], jnp.int32), F)
    t_valid = jnp.pad(t_valid, (0, FPAD - NPF))
    mask = (jnp.arange(T_PAD, dtype=jnp.int32)[:, None] < t_valid[None, :]
            ).astype(jnp.float32)                                         # (T_PAD, FPAD)

    # 2-class softmax == sigmoid(l1 - l0): only the fc row/bias differences are needed.
    wdiff = jnp.pad(params['w_fc'][1] - params['w_fc'][0], (0, FPAD - NPF))
    wdiff = wdiff.reshape(1, FPAD).astype(jnp.float32)
    bdiff = (params['b_fc'][1] - params['b_fc'][0]).reshape(1, 1).astype(jnp.float32)

    grid_spec = pltpu.PrefetchScalarGridSpec(
        num_scalar_prefetch=1,                 # tokens -> SMEM, drive the gather DMAs
        grid=(B,),
        in_specs=[
            pl.BlockSpec(memory_space=pl.ANY),                           # embedding (HBM)
            pl.BlockSpec((kmax, E, FPAD), lambda b, tok: (0, 0, 0)),     # fused conv W (resident)
            pl.BlockSpec((1, FPAD), lambda b, tok: (0, 0)),              # fused conv bias
            pl.BlockSpec((T_PAD, FPAD), lambda b, tok: (0, 0)),          # valid-position mask
            pl.BlockSpec((1, FPAD), lambda b, tok: (0, 0)),              # fc weight diff
            pl.BlockSpec((1, 1), lambda b, tok: (0, 0)),                 # fc bias diff
        ],
        out_specs=pl.BlockSpec((None, 1, FPAD), lambda b, tok: (b, 0, 0)),
        scratch_shapes=[pltpu.VMEM((S_PAD, E), jnp.float32),
                        pltpu.SemaphoreType.DMA((S,))],
    )
    out = pl.pallas_call(
        cnn_kernel,
        out_shape=jax.ShapeDtypeStruct((B, 1, FPAD), jnp.float32),
        grid_spec=grid_spec,
        compiler_params=pltpu.CompilerParams(dimension_semantics=("parallel",)),
    )(tokens.astype(jnp.int32), emb_table, w_full, b_full, mask, wdiff, bdiff)

    out = out.reshape(B, FPAD)
    feature_extracted = out[:, :NPF]           # torch order: index = f*len(kernel_sizes)+ki
    probs = out[:, FPAD - 2:FPAD]
    # TODO(synk): F.dropout(p=0.3) between features and fc is stochastic; eval-mode identity here.
    return probs, feature_extracted


def cnn_reference(tokens, params):
    """Pure-JAX f32 reference matching the PyTorch module's forward pass."""
    emb = params['embedding'][tokens].astype(jnp.float32)   # (B, S, E)
    B, S, _ = emb.shape
    pooled_list = []
    for ki, k in enumerate(KERNEL_SIZES):
        T = S - k + 1
        w = params['w_conv'][ki]                            # (k, E, F)
        acc = jnp.zeros((B, T, w.shape[-1]), jnp.float32) + params['b_conv'][ki]
        for j in range(k):
            acc = acc + jnp.einsum('bte,ef->btf', emb[:, j:j + T, :], w[j])
        pooled_list.append(jnp.max(jnp.maximum(acc, 0.0), axis=1))   # (B, F)
    feats = jnp.stack(pooled_list, axis=2).reshape(B, -1)   # torch.cat(dim=2).view(B, -1)
    logits = feats @ params['w_fc'].T + params['b_fc']
    return jax.nn.softmax(logits, axis=1), feats


def init_params(key, vocab_size, embedding_dim, num_filters):
    ks = jax.random.split(key, 3 + 2 * len(KERNEL_SIZES))
    params = {}
    # nn.Embedding weight (frozen pretrained embeddings in the original module)
    params['embedding'] = 0.1 * jax.random.normal(
        ks[0], (vocab_size, embedding_dim), jnp.float32)
    w_conv, b_conv = [], []
    for i, k in enumerate(KERNEL_SIZES):
        # torch Conv1d weight is (F, 1, k*E); stored here pre-reshaped as (k, E, F)
        w = 0.05 * jax.random.normal(ks[1 + 2 * i],
                                     (k, embedding_dim, num_filters), jnp.float32)
        b = 0.05 * jax.random.normal(ks[2 + 2 * i], (num_filters,), jnp.float32)
        w_conv.append(w)
        b_conv.append(b)
    params['w_conv'] = w_conv
    params['b_conv'] = b_conv
    nf = num_filters * len(KERNEL_SIZES)
    params['w_fc'] = 0.05 * jax.random.normal(ks[-2], (2, nf), jnp.float32)
    params['b_fc'] = 0.05 * jax.random.normal(ks[-1], (2,), jnp.float32)
    return params


if __name__ == "__main__":
    # Small shapes consistent with the module: sentence_len=16, embedding_dim=64,
    # num_filters=32, kernel_sizes=[3,4,5], vocab=50, batch=2.
    vocab_size, sentence_len, embedding_dim, num_filters, batch = 50, 16, 64, 32, 2

    key = jax.random.PRNGKey(0)
    pkey, xkey = jax.random.split(key)
    params = init_params(pkey, vocab_size, embedding_dim, num_filters)
    tokens = jax.random.randint(xkey, (batch, sentence_len), 0, vocab_size,
                                dtype=jnp.int32)

    probs, feats = jax.jit(cnn_forward)(tokens, params)
    jax.block_until_ready((probs, feats))

    # Correctness check against a pure-JAX f32 reference (bf16 staging => loose tolerance).
    probs_ref, feats_ref = cnn_reference(tokens, params)
    np.testing.assert_allclose(np.asarray(feats), np.asarray(feats_ref),
                               atol=2e-2, rtol=2e-2)
    np.testing.assert_allclose(np.asarray(probs), np.asarray(probs_ref),
                               atol=2e-2, rtol=2e-2)

    assert probs.shape == (batch, 2)
    assert feats.shape == (batch, num_filters * len(KERNEL_SIZES))
    print("KERNEL_OK")
</pallas_src>

<mosaic_0001>
module attributes {stable_mosaic.version = 11 : i64} {
  func.func @cnn_kernel(%arg0: i32, %arg1: memref<2x16xi32, #tpu.memory_space<smem>>, %arg2: memref<50x64xf32, #tpu.memory_space<any>>, %arg3: memref<5x64x128xbf16, #tpu.memory_space<vmem>>, %arg4: memref<1x128xf32, #tpu.memory_space<vmem>>, %arg5: memref<16x128xf32, #tpu.memory_space<vmem>>, %arg6: memref<1x128xf32, #tpu.memory_space<vmem>>, %arg7: memref<1x1xf32, #tpu.memory_space<vmem>>, %arg8: memref<1x1x128xf32, #tpu.memory_space<vmem>>, %arg9: memref<24x64xf32, #tpu.memory_space<vmem>>, %arg10: memref<16x!tpu.dma_semaphore, #tpu.memory_space<semaphore_mem>>) attributes {dimension_semantics = [#tpu.dimension_semantics<parallel>], iteration_bounds = array<i64: 2>, scalar_prefetch = 1 : i64, scratch_operands = 2 : i64, tpu.core_type = #tpu.core_type<tc>, window_params = [{}, {pipeline_mode = #tpu.pipeline_mode<synchronous>, transform_indices = @transform_1, window_bounds = array<i64: 5, 64, 128>}, {pipeline_mode = #tpu.pipeline_mode<synchronous>, transform_indices = @transform_2, window_bounds = array<i64: 1, 128>}, {pipeline_mode = #tpu.pipeline_mode<synchronous>, transform_indices = @transform_3, window_bounds = array<i64: 16, 128>}, {pipeline_mode = #tpu.pipeline_mode<synchronous>, transform_indices = @transform_4, window_bounds = array<i64: 1, 128>}, {pipeline_mode = #tpu.pipeline_mode<synchronous>, transform_indices = @transform_5, window_bounds = array<i64: 1, 1>}, {transform_indices = @transform_6, window_bounds = array<i64: 1, 1, 128>}]} {
    %cst = arith.constant 0.000000e+00 : f32
    %0 = vector.broadcast %cst : f32 to vector<8x64xf32>
    %c16 = arith.constant 16 : index
    %c0 = arith.constant 0 : index
    %1 = vector.load %arg9[%c16, %c0] : memref<24x64xf32, #tpu.memory_space<vmem>>, vector<8x64xf32>
    tpu.vector_store %arg9[%c16, %c0], %0 {strides = array<i32>} : memref<24x64xf32, #tpu.memory_space<vmem>>, vector<8x64xf32>,
    %2 = arith.index_cast %arg0 : i32 to index
    %c0_0 = arith.constant 0 : index
    %3 = memref.load %arg1[%2, %c0_0] : memref<2x16xi32, #tpu.memory_space<smem>>
    %c0_i32 = arith.constant 0 : i32
    %c0_i32_1 = arith.constant 0 : i32
    %4 = tpu.memref_slice %arg2[%3, %c0_i32_1] : memref<50x64xf32, #tpu.memory_space<any>> -> memref<1x64xf32, #tpu.memory_space<any>>
    %c0_i32_2 = arith.constant 0 : i32
    %c0_i32_3 = arith.constant 0 : i32
    %5 = tpu.memref_slice %arg9[%c0_i32_2, %c0_i32_3] : memref<24x64xf32, #tpu.memory_space<vmem>> -> memref<1x64xf32, #tpu.memory_space<vmem>>
    %6 = tpu.memref_slice %arg10[%c0_i32] : memref<16x!tpu.dma_semaphore, #tpu.memory_space<semaphore_mem>> -> memref<1x!tpu.dma_semaphore, #tpu.memory_space<semaphore_mem>>
    %7 = tpu.memref_squeeze %6 : memref<1x!tpu.dma_semaphore, #tpu.memory_space<semaphore_mem>> -> memref<!tpu.dma_semaphore, #tpu.memory_space<semaphore_mem>>
    tpu.enqueue_dma source(%4 : memref<1x64xf32, #tpu.memory_space<any>>) target(%5 : memref<1x64xf32, #tpu.memory_space<vmem>>) target_semaphore(%7 : memref<!tpu.dma_semaphore, #tpu.memory_space<semaphore_mem>>)
    %8 = arith.index_cast %arg0 : i32 to index
    %c1 = arith.constant 1 : index
    %9 = memref.load %arg1[%8, %c1] : memref<2x16xi32, #tpu.memory_space<smem>>
    %c1_i32 = arith.constant 1 : i32
    %c0_i32_4 = arith.constant 0 : i32
    %10 = tpu.memref_slice %arg2[%9, %c0_i32_4] : memref<50x64xf32, #tpu.memory_space<any>> -> memref<1x64xf32, #tpu.memory_space<any>>
    %c1_i32_5 = arith.constant 1 : i32
    %c0_i32_6 = arith.constant 0 : i32
    %11 = tpu.memref_slice %arg9[%c1_i32_5, %c0_i32_6] : memref<24x64xf32, #tpu.memory_space<vmem>> -> memref<1x64xf32, #tpu.memory_space<vmem>>
    %12 = tpu.memref_slice %arg10[%c1_i32] : memref<16x!tpu.dma_semaphore, #tpu.memory_space<semaphore_mem>> -> memref<1x!tpu.dma_semaphore, #tpu.memory_space<semaphore_mem>>
    %13 = tpu.memref_squeeze %12 : memref<1x!tpu.dma_semaphore, #tpu.memory_space<semaphore_mem>> -> memref<!tpu.dma_semaphore, #tpu.memory_space<semaphore_mem>>
    tpu.enqueue_dma source(%10 : memref<1x64xf32, #tpu.memory_space<any>>) target(%11 : memref<1x64xf32, #tpu.memory_space<vmem>>) target_semaphore(%13 : memref<!tpu.dma_semaphore, #tpu.memory_space<semaphore_mem>>)
    %14 = arith.index_cast %arg0 : i32 to index
    %c2 = arith.constant 2 : index
    %15 = memref.load %arg1[%14, %c2] : memref<2x16xi32, #tpu.memory_space<smem>>
    %c2_i32 = arith.constant 2 : i32
    %c0_i32_7 = arith.constant 0 : i32
    %16 = tpu.memref_slice %arg2[%15, %c0_i32_7] : memref<50x64xf32, #tpu.memory_space<any>> -> memref<1x64xf32, #tpu.memory_space<any>>
    %c2_i32_8 = arith.constant 2 : i32
    %c0_i32_9 = arith.constant 0 : i32
    %17 = tpu.memref_slice %arg9[%c2_i32_8, %c0_i32_9] : memref<24x64xf32, #tpu.memory_space<vmem>> -> memref<1x64xf32, #tpu.memory_space<vmem>>
    %18 = tpu.memref_slice %arg10[%c2_i32] : memref<16x!tpu.dma_semaphore, #tpu.memory_space<semaphore_mem>> -> memref<1x!tpu.dma_semaphore, #tpu.memory_space<semaphore_mem>>
    %19 = tpu.memref_squeeze %18 : memref<1x!tpu.dma_semaphore, #tpu.memory_space<semaphore_mem>> -> memref<!tpu.dma_semaphore, #tpu.memory_space<semaphore_mem>>
    tpu.enqueue_dma source(%16 : memref<1x64xf32, #tpu.memory_space<any>>) target(%17 : memref<1x64xf32, #tpu.memory_space<vmem>>) target_semaphore(%19 : memref<!tpu.dma_semaphore, #tpu.memory_space<semaphore_mem>>)
    %20 = arith.index_cast %arg0 : i32 to index
    %c3 = arith.constant 3 : index
    %21 = memref.load %arg1[%20, %c3] : memref<2x16xi32, #tpu.memory_space<smem>>
    %c3_i32 = arith.constant 3 : i32
    %c0_i32_10 = arith.constant 0 : i32
    %22 = tpu.memref_slice %arg2[%21, %c0_i32_10] : memref<50x64xf32, #tpu.memory_space<any>> -> memref<1x64xf32, #tpu.memory_space<any>>
    %c3_i32_11 = arith.constant 3 : i32
    %c0_i32_12 = arith.constant 0 : i32
    %23 = tpu.memref_slice %arg9[%c3_i32_11, %c0_i32_12] : memref<24x64xf32, #tpu.memory_space<vmem>> -> memref<1x64xf32, #tpu.memory_space<vmem>>
    %24 = tpu.memref_slice %arg10[%c3_i32] : memref<16x!tpu.dma_semaphore, #tpu.memory_space<semaphore_mem>> -> memref<1x!tpu.dma_semaphore, #tpu.memory_space<semaphore_mem>>
    %25 = tpu.memref_squeeze %24 : memref<1x!tpu.dma_semaphore, #tpu.memory_space<semaphore_mem>> -> memref<!tpu.dma_semaphore, #tpu.memory_space<semaphore_mem>>
    tpu.enqueue_dma source(%22 : memref<1x64xf32, #tpu.memory_space<any>>) target(%23 : memref<1x64xf32, #tpu.memory_space<vmem>>) target_semaphore(%25 : memref<!tpu.dma_semaphore, #tpu.memory_space<semaphore_mem>>)
    %26 = arith.index_cast %arg0 : i32 to index
    %c4 = arith.constant 4 : index
    %27 = memref.load %arg1[%26, %c4] : memref<2x16xi32, #tpu.memory_space<smem>>
    %c4_i32 = arith.constant 4 : i32
    %c0_i32_13 = arith.constant 0 : i32
    %28 = tpu.memref_slice %arg2[%27, %c0_i32_13] : memref<50x64xf32, #tpu.memory_space<any>> -> memref<1x64xf32, #tpu.memory_space<any>>
    %c4_i32_14 = arith.constant 4 : i32
    %c0_i32_15 = arith.constant 0 : i32
    %29 = tpu.memref_slice %arg9[%c4_i32_14, %c0_i32_15] : memref<24x64xf32, #tpu.memory_space<vmem>> -> memref<1x64xf32, #tpu.memory_space<vmem>>
    %30 = tpu.memref_slice %arg10[%c4_i32] : memref<16x!tpu.dma_semaphore, #tpu.memory_space<semaphore_mem>> -> memref<1x!tpu.dma_semaphore, #tpu.memory_space<semaphore_mem>>
    %31 = tpu.memref_squeeze %30 : memref<1x!tpu.dma_semaphore, #tpu.memory_space<semaphore_mem>> -> memref<!tpu.dma_semaphore, #tpu.memory_space<semaphore_mem>>
    tpu.enqueue_dma source(%28 : memref<1x64xf32, #tpu.memory_space<any>>) target(%29 : memref<1x64xf32, #tpu.memory_space<vmem>>) target_semaphore(%31 : memref<!tpu.dma_semaphore, #tpu.memory_space<semaphore_mem>>)
    %32 = arith.index_cast %arg0 : i32 to index
    %c5 = arith.constant 5 : index
    %33 = memref.load %arg1[%32, %c5] : memref<2x16xi32, #tpu.memory_space<smem>>
    %c5_i32 = arith.constant 5 : i32
    %c0_i32_16 = arith.constant 0 : i32
    %34 = tpu.memref_slice %arg2[%33, %c0_i32_16] : memref<50x64xf32, #tpu.memory_space<any>> -> memref<1x64xf32, #tpu.memory_space<any>>
    %c5_i32_17 = arith.constant 5 : i32
    %c0_i32_18 = arith.constant 0 : i32
    %35 = tpu.memref_slice %arg9[%c5_i32_17, %c0_i32_18] : memref<24x64xf32, #tpu.memory_space<vmem>> -> memref<1x64xf32, #tpu.memory_space<vmem>>
    %36 = tpu.memref_slice %arg10[%c5_i32] : memref<16x!tpu.dma_semaphore, #tpu.memory_space<semaphore_mem>> -> memref<1x!tpu.dma_semaphore, #tpu.memory_space<semaphore_mem>>
    %37 = tpu.memref_squeeze %36 : memref<1x!tpu.dma_semaphore, #tpu.memory_space<semaphore_mem>> -> memref<!tpu.dma_semaphore, #tpu.memory_space<semaphore_mem>>
    tpu.enqueue_dma source(%34 : memref<1x64xf32, #tpu.memory_space<any>>) target(%35 : memref<1x64xf32, #tpu.memory_space<vmem>>) target_semaphore(%37 : memref<!tpu.dma_semaphore, #tpu.memory_space<semaphore_mem>>)
    %38 = arith.index_cast %arg0 : i32 to index
    %c6 = arith.constant 6 : index
    %39 = memref.load %arg1[%38, %c6] : memref<2x16xi32, #tpu.memory_space<smem>>
    %c6_i32 = arith.constant 6 : i32
    %c0_i32_19 = arith.constant 0 : i32
    %40 = tpu.memref_slice %arg2[%39, %c0_i32_19] : memref<50x64xf32, #tpu.memory_space<any>> -> memref<1x64xf32, #tpu.memory_space<any>>
    %c6_i32_20 = arith.constant 6 : i32
    %c0_i32_21 = arith.constant 0 : i32
    %41 = tpu.memref_slice %arg9[%c6_i32_20, %c0_i32_21] : memref<24x64xf32, #tpu.memory_space<vmem>> -> memref<1x64xf32, #tpu.memory_space<vmem>>
    %42 = tpu.memref_slice %arg10[%c6_i32] : memref<16x!tpu.dma_semaphore, #tpu.memory_space<semaphore_mem>> -> memref<1x!tpu.dma_semaphore, #tpu.memory_space<semaphore_mem>>
    %43 = tpu.memref_squeeze %42 : memref<1x!tpu.dma_semaphore, #tpu.memory_space<semaphore_mem>> -> memref<!tpu.dma_semaphore, #tpu.memory_space<semaphore_mem>>
    tpu.enqueue_dma source(%40 : memref<1x64xf32, #tpu.memory_space<any>>) target(%41 : memref<1x64xf32, #tpu.memory_space<vmem>>) target_semaphore(%43 : memref<!tpu.dma_semaphore, #tpu.memory_space<semaphore_mem>>)
    %44 = arith.index_cast %arg0 : i32 to index
    %c7 = arith.constant 7 : index
    %45 = memref.load %arg1[%44, %c7] : memref<2x16xi32, #tpu.memory_space<smem>>
    %c7_i32 = arith.constant 7 : i32
    %c0_i32_22 = arith.constant 0 : i32
    %46 = tpu.memref_slice %arg2[%45, %c0_i32_22] : memref<50x64xf32, #tpu.memory_space<any>> -> memref<1x64xf32, #tpu.memory_space<any>>
    %c7_i32_23 = arith.constant 7 : i32
    %c0_i32_24 = arith.constant 0 : i32
    %47 = tpu.memref_slice %arg9[%c7_i32_23, %c0_i32_24] : memref<24x64xf32, #tpu.memory_space<vmem>> -> memref<1x64xf32, #tpu.memory_space<vmem>>
    %48 = tpu.memref_slice %arg10[%c7_i32] : memref<16x!tpu.dma_semaphore, #tpu.memory_space<semaphore_mem>> -> memref<1x!tpu.dma_semaphore, #tpu.memory_space<semaphore_mem>>
    %49 = tpu.memref_squeeze %48 : memref<1x!tpu.dma_semaphore, #tpu.memory_space<semaphore_mem>> -> memref<!tpu.dma_semaphore, #tpu.memory_space<semaphore_mem>>
    tpu.enqueue_dma source(%46 : memref<1x64xf32, #tpu.memory_space<any>>) target(%47 : memref<1x64xf32, #tpu.memory_space<vmem>>) target_semaphore(%49 : memref<!tpu.dma_semaphore, #tpu.memory_space<semaphore_mem>>)
    %50 = arith.index_cast %arg0 : i32 to index
    %c8 = arith.constant 8 : index
    %51 = memref.load %arg1[%50, %c8] : memref<2x16xi32, #tpu.memory_space<smem>>
    %c8_i32 = arith.constant 8 : i32
    %c0_i32_25 = arith.constant 0 : i32
    %52 = tpu.memref_slice %arg2[%51, %c0_i32_25] : memref<50x64xf32, #tpu.memory_space<any>> -> memref<1x64xf32, #tpu.memory_space<any>>
    %c8_i32_26 = arith.constant 8 : i32
    %c0_i32_27 = arith.constant 0 : i32
    %53 = tpu.memref_slice %arg9[%c8_i32_26, %c0_i32_27] : memref<24x64xf32, #tpu.memory_space<vmem>> -> memref<1x64xf32, #tpu.memory_space<vmem>>
    %54 = tpu.memref_slice %arg10[%c8_i32] : memref<16x!tpu.dma_semaphore, #tpu.memory_space<semaphore_mem>> -> memref<1x!tpu.dma_semaphore, #tpu.memory_space<semaphore_mem>>
    %55 = tpu.memref_squeeze %54 : memref<1x!tpu.dma_semaphore, #tpu.memory_space<semaphore_mem>> -> memref<!tpu.dma_semaphore, #tpu.memory_space<semaphore_mem>>
    tpu.enqueue_dma source(%52 : memref<1x64xf32, #tpu.memory_space<any>>) target(%53 : memref<1x64xf32, #tpu.memory_space<vmem>>) target_semaphore(%55 : memref<!tpu.dma_semaphore, #tpu.memory_space<semaphore_mem>>)
    %56 = arith.index_cast %arg0 : i32 to index
    %c9 = arith.constant 9 : index
    %57 = memref.load %arg1[%56, %c9] : memref<2x16xi32, #tpu.memory_space<smem>>
    %c9_i32 = arith.constant 9 : i32
    %c0_i32_28 = arith.constant 0 : i32
    %58 = tpu.memref_slice %arg2[%57, %c0_i32_28] : memref<50x64xf32, #tpu.memory_space<any>> -> memref<1x64xf32, #tpu.memory_space<any>>
    %c9_i32_29 = arith.constant 9 : i32
    %c0_i32_30 = arith.constant 0 : i32
    %59 = tpu.memref_slice %arg9[%c9_i32_29, %c0_i32_30] : memref<24x64xf32, #tpu.memory_space<vmem>> -> memref<1x64xf32, #tpu.memory_space<vmem>>
    %60 = tpu.memref_slice %arg10[%c9_i32] : memref<16x!tpu.dma_semaphore, #tpu.memory_space<semaphore_mem>> -> memref<1x!tpu.dma_semaphore, #tpu.memory_space<semaphore_mem>>
    %61 = tpu.memref_squeeze %60 : memref<1x!tpu.dma_semaphore, #tpu.memory_space<semaphore_mem>> -> memref<!tpu.dma_semaphore, #tpu.memory_space<semaphore_mem>>
    tpu.enqueue_dma source(%58 : memref<1x64xf32, #tpu.memory_space<any>>) target(%59 : memref<1x64xf32, #tpu.memory_space<vmem>>) target_semaphore(%61 : memref<!tpu.dma_semaphore, #tpu.memory_space<semaphore_mem>>)
    %62 = arith.index_cast %arg0 : i32 to index
    %c10 = arith.constant 10 : index
    %63 = memref.load %arg1[%62, %c10] : memref<2x16xi32, #tpu.memory_space<smem>>
    %c10_i32 = arith.constant 10 : i32
    %c0_i32_31 = arith.constant 0 : i32
    %64 = tpu.memref_slice %arg2[%63, %c0_i32_31] : memref<50x64xf32, #tpu.memory_space<any>> -> memref<1x64xf32, #tpu.memory_space<any>>
    %c10_i32_32 = arith.constant 10 : i32
    %c0_i32_33 = arith.constant 0 : i32
    %65 = tpu.memref_slice %arg9[%c10_i32_32, %c0_i32_33] : memref<24x64xf32, #tpu.memory_space<vmem>> -> memref<1x64xf32, #tpu.memory_space<vmem>>
    %66 = tpu.memref_slice %arg10[%c10_i32] : memref<16x!tpu.dma_semaphore, #tpu.memory_space<semaphore_mem>> -> memref<1x!tpu.dma_semaphore, #tpu.memory_space<semaphore_mem>>
    %67 = tpu.memref_squeeze %66 : memref<1x!tpu.dma_semaphore, #tpu.memory_space<semaphore_mem>> -> memref<!tpu.dma_semaphore, #tpu.memory_space<semaphore_mem>>
    tpu.enqueue_dma source(%64 : memref<1x64xf32, #tpu.memory_space<any>>) target(%65 : memref<1x64xf32, #tpu.memory_space<vmem>>) target_semaphore(%67 : memref<!tpu.dma_semaphore, #tpu.memory_space<semaphore_mem>>)
    %68 = arith.index_cast %arg0 : i32 to index
    %c11 = arith.constant 11 : index
    %69 = memref.load %arg1[%68, %c11] : memref<2x16xi32, #tpu.memory_space<smem>>
    %c11_i32 = arith.constant 11 : i32
    %c0_i32_34 = arith.constant 0 : i32
    %70 = tpu.memref_slice %arg2[%69, %c0_i32_34] : memref<50x64xf32, #tpu.memory_space<any>> -> memref<1x64xf32, #tpu.memory_space<any>>
    %c11_i32_35 = arith.constant 11 : i32
    %c0_i32_36 = arith.constant 0 : i32
    %71 = tpu.memref_slice %arg9[%c11_i32_35, %c0_i32_36] : memref<24x64xf32, #tpu.memory_space<vmem>> -> memref<1x64xf32, #tpu.memory_space<vmem>>
    %72 = tpu.memref_slice %arg10[%c11_i32] : memref<16x!tpu.dma_semaphore, #tpu.memory_space<semaphore_mem>> -> memref<1x!tpu.dma_semaphore, #tpu.memory_space<semaphore_mem>>
    %73 = tpu.memref_squeeze %72 : memref<1x!tpu.dma_semaphore, #tpu.memory_space<semaphore_mem>> -> memref<!tpu.dma_semaphore, #tpu.memory_space<semaphore_mem>>
    tpu.enqueue_dma source(%70 : memref<1x64xf32, #tpu.memory_space<any>>) target(%71 : memref<1x64xf32, #tpu.memory_space<vmem>>) target_semaphore(%73 : memref<!tpu.dma_semaphore, #tpu.memory_space<semaphore_mem>>)
    %74 = arith.index_cast %arg0 : i32 to index
    %c12 = arith.constant 12 : index
    %75 = memref.load %arg1[%74, %c12] : memref<2x16xi32, #tpu.memory_space<smem>>
    %c12_i32 = arith.constant 12 : i32
    %c0_i32_37 = arith.constant 0 : i32
    %76 = tpu.memref_slice %arg2[%75, %c0_i32_37] : memref<50x64xf32, #tpu.memory_space<any>> -> memref<1x64xf32, #tpu.memory_space<any>>
    %c12_i32_38 = arith.constant 12 : i32
    %c0_i32_39 = arith.constant 0 : i32
    %77 = tpu.memref_slice %arg9[%c12_i32_38, %c0_i32_39] : memref<24x64xf32, #tpu.memory_space<vmem>> -> memref<1x64xf32, #tpu.memory_space<vmem>>
    %78 = tpu.memref_slice %arg10[%c12_i32] : memref<16x!tpu.dma_semaphore, #tpu.memory_space<semaphore_mem>> -> memref<1x!tpu.dma_semaphore, #tpu.memory_space<semaphore_mem>>
    %79 = tpu.memref_squeeze %78 : memref<1x!tpu.dma_semaphore, #tpu.memory_space<semaphore_mem>> -> memref<!tpu.dma_semaphore, #tpu.memory_space<semaphore_mem>>
    tpu.enqueue_dma source(%76 : memref<1x64xf32, #tpu.memory_space<any>>) target(%77 : memref<1x64xf32, #tpu.memory_space<vmem>>) target_semaphore(%79 : memref<!tpu.dma_semaphore, #tpu.memory_space<semaphore_mem>>)
    %80 = arith.index_cast %arg0 : i32 to index
    %c13 = arith.constant 13 : index
    %81 = memref.load %arg1[%80, %c13] : memref<2x16xi32, #tpu.memory_space<smem>>
    %c13_i32 = arith.constant 13 : i32
    %c0_i32_40 = arith.constant 0 : i32
    %82 = tpu.memref_slice %arg2[%81, %c0_i32_40] : memref<50x64xf32, #tpu.memory_space<any>> -> memref<1x64xf32, #tpu.memory_space<any>>
    %c13_i32_41 = arith.constant 13 : i32
    %c0_i32_42 = arith.constant 0 : i32
    %83 = tpu.memref_slice %arg9[%c13_i32_41, %c0_i32_42] : memref<24x64xf32, #tpu.memory_space<vmem>> -> memref<1x64xf32, #tpu.memory_space<vmem>>
    %84 = tpu.memref_slice %arg10[%c13_i32] : memref<16x!tpu.dma_semaphore, #tpu.memory_space<semaphore_mem>> -> memref<1x!tpu.dma_semaphore, #tpu.memory_space<semaphore_mem>>
    %85 = tpu.memref_squeeze %84 : memref<1x!tpu.dma_semaphore, #tpu.memory_space<semaphore_mem>> -> memref<!tpu.dma_semaphore, #tpu.memory_space<semaphore_mem>>
    tpu.enqueue_dma source(%82 : memref<1x64xf32, #tpu.memory_space<any>>) target(%83 : memref<1x64xf32, #tpu.memory_space<vmem>>) target_semaphore(%85 : memref<!tpu.dma_semaphore, #tpu.memory_space<semaphore_mem>>)
    %86 = arith.index_cast %arg0 : i32 to index
    %c14 = arith.constant 14 : index
    %87 = memref.load %arg1[%86, %c14] : memref<2x16xi32, #tpu.memory_space<smem>>
    %c14_i32 = arith.constant 14 : i32
    %c0_i32_43 = arith.constant 0 : i32
    %88 = tpu.memref_slice %arg2[%87, %c0_i32_43] : memref<50x64xf32, #tpu.memory_space<any>> -> memref<1x64xf32, #tpu.memory_space<any>>
    %c14_i32_44 = arith.constant 14 : i32
    %c0_i32_45 = arith.constant 0 : i32
    %89 = tpu.memref_slice %arg9[%c14_i32_44, %c0_i32_45] : memref<24x64xf32, #tpu.memory_space<vmem>> -> memref<1x64xf32, #tpu.memory_space<vmem>>
    %90 = tpu.memref_slice %arg10[%c14_i32] : memref<16x!tpu.dma_semaphore, #tpu.memory_space<semaphore_mem>> -> memref<1x!tpu.dma_semaphore, #tpu.memory_space<semaphore_mem>>
    %91 = tpu.memref_squeeze %90 : memref<1x!tpu.dma_semaphore, #tpu.memory_space<semaphore_mem>> -> memref<!tpu.dma_semaphore, #tpu.memory_space<semaphore_mem>>
    tpu.enqueue_dma source(%88 : memref<1x64xf32, #tpu.memory_space<any>>) target(%89 : memref<1x64xf32, #tpu.memory_space<vmem>>) target_semaphore(%91 : memref<!tpu.dma_semaphore, #tpu.memory_space<semaphore_mem>>)
    %92 = arith.index_cast %arg0 : i32 to index
    %c15 = arith.constant 15 : index
    %93 = memref.load %arg1[%92, %c15] : memref<2x16xi32, #tpu.memory_space<smem>>
    %c15_i32 = arith.constant 15 : i32
    %c0_i32_46 = arith.constant 0 : i32
    %94 = tpu.memref_slice %arg2[%93, %c0_i32_46] : memref<50x64xf32, #tpu.memory_space<any>> -> memref<1x64xf32, #tpu.memory_space<any>>
    %c15_i32_47 = arith.constant 15 : i32
    %c0_i32_48 = arith.constant 0 : i32
    %95 = tpu.memref_slice %arg9[%c15_i32_47, %c0_i32_48] : memref<24x64xf32, #tpu.memory_space<vmem>> -> memref<1x64xf32, #tpu.memory_space<vmem>>
    %96 = tpu.memref_slice %arg10[%c15_i32] : memref<16x!tpu.dma_semaphore, #tpu.memory_space<semaphore_mem>> -> memref<1x!tpu.dma_semaphore, #tpu.memory_space<semaphore_mem>>
    %97 = tpu.memref_squeeze %96 : memref<1x!tpu.dma_semaphore, #tpu.memory_space<semaphore_mem>> -> memref<!tpu.dma_semaphore, #tpu.memory_space<semaphore_mem>>
    tpu.enqueue_dma source(%94 : memref<1x64xf32, #tpu.memory_space<any>>) target(%95 : memref<1x64xf32, #tpu.memory_space<vmem>>) target_semaphore(%97 : memref<!tpu.dma_semaphore, #tpu.memory_space<semaphore_mem>>)
    %c0_i32_49 = arith.constant 0 : i32
    %c0_i32_50 = arith.constant 0 : i32
    %98 = tpu.memref_slice %arg2[%3, %c0_i32_50] : memref<50x64xf32, #tpu.memory_space<any>> -> memref<1x64xf32, #tpu.memory_space<any>>
    %c0_i32_51 = arith.constant 0 : i32
    %c0_i32_52 = arith.constant 0 : i32
    %99 = tpu.memref_slice %arg9[%c0_i32_51, %c0_i32_52] : memref<24x64xf32, #tpu.memory_space<vmem>> -> memref<1x64xf32, #tpu.memory_space<vmem>>
    %100 = tpu.memref_slice %arg10[%c0_i32_49] : memref<16x!tpu.dma_semaphore, #tpu.memory_space<semaphore_mem>> -> memref<1x!tpu.dma_semaphore, #tpu.memory_space<semaphore_mem>>
    %101 = tpu.memref_squeeze %100 : memref<1x!tpu.dma_semaphore, #tpu.memory_space<semaphore_mem>> -> memref<!tpu.dma_semaphore, #tpu.memory_space<semaphore_mem>>
    tpu.wait_dma2 semaphore(%101 : memref<!tpu.dma_semaphore, #tpu.memory_space<semaphore_mem>>) src(%98 : memref<1x64xf32, #tpu.memory_space<any>>) dst(%99 : memref<1x64xf32, #tpu.memory_space<vmem>>)
    %c1_i32_53 = arith.constant 1 : i32
    %c0_i32_54 = arith.constant 0 : i32
    %102 = tpu.memref_slice %arg2[%9, %c0_i32_54] : memref<50x64xf32, #tpu.memory_space<any>> -> memref<1x64xf32, #tpu.memory_space<any>>
    %c1_i32_55 = arith.constant 1 : i32
    %c0_i32_56 = arith.constant 0 : i32
    %103 = tpu.memref_slice %arg9[%c1_i32_55, %c0_i32_56] : memref<24x64xf32, #tpu.memory_space<vmem>> -> memref<1x64xf32, #tpu.memory_space<vmem>>
    %104 = tpu.memref_slice %arg10[%c1_i32_53] : memref<16x!tpu.dma_semaphore, #tpu.memory_space<semaphore_mem>> -> memref<1x!tpu.dma_semaphore, #tpu.memory_space<semaphore_mem>>
    %105 = tpu.memref_squeeze %104 : memref<1x!tpu.dma_semaphore, #tpu.memory_space<semaphore_mem>> -> memref<!tpu.dma_semaphore, #tpu.memory_space<semaphore_mem>>
    tpu.wait_dma2 semaphore(%105 : memref<!tpu.dma_semaphore, #tpu.memory_space<semaphore_mem>>) src(%102 : memref<1x64xf32, #tpu.memory_space<any>>) dst(%103 : memref<1x64xf32, #tpu.memory_space<vmem>>)
    %c2_i32_57 = arith.constant 2 : i32
    %c0_i32_58 = arith.constant 0 : i32
    %106 = tpu.memref_slice %arg2[%15, %c0_i32_58] : memref<50x64xf32, #tpu.memory_space<any>> -> memref<1x64xf32, #tpu.memory_space<any>>
    %c2_i32_59 = arith.constant 2 : i32
    %c0_i32_60 = arith.constant 0 : i32
    %107 = tpu.memref_slice %arg9[%c2_i32_59, %c0_i32_60] : memref<24x64xf32, #tpu.memory_space<vmem>> -> memref<1x64xf32, #tpu.memory_space<vmem>>
    %108 = tpu.memref_slice %arg10[%c2_i32_57] : memref<16x!tpu.dma_semaphore, #tpu.memory_space<semaphore_mem>> -> memref<1x!tpu.dma_semaphore, #tpu.memory_space<semaphore_mem>>
    %109 = tpu.memref_squeeze %108 : memref<1x!tpu.dma_semaphore, #tpu.memory_space<semaphore_mem>> -> memref<!tpu.dma_semaphore, #tpu.memory_space<semaphore_mem>>
    tpu.wait_dma2 semaphore(%109 : memref<!tpu.dma_semaphore, #tpu.memory_space<semaphore_mem>>) src(%106 : memref<1x64xf32, #tpu.memory_space<any>>) dst(%107 : memref<1x64xf32, #tpu.memory_space<vmem>>)
    %c3_i32_61 = arith.constant 3 : i32
    %c0_i32_62 = arith.constant 0 : i32
    %110 = tpu.memref_slice %arg2[%21, %c0_i32_62] : memref<50x64xf32, #tpu.memory_space<any>> -> memref<1x64xf32, #tpu.memory_space<any>>
    %c3_i32_63 = arith.constant 3 : i32
    %c0_i32_64 = arith.constant 0 : i32
    %111 = tpu.memref_slice %arg9[%c3_i32_63, %c0_i32_64] : memref<24x64xf32, #tpu.memory_space<vmem>> -> memref<1x64xf32, #tpu.memory_space<vmem>>
    %112 = tpu.memref_slice %arg10[%c3_i32_61] : memref<16x!tpu.dma_semaphore, #tpu.memory_space<semaphore_mem>> -> memref<1x!tpu.dma_semaphore, #tpu.memory_space<semaphore_mem>>
    %113 = tpu.memref_squeeze %112 : memref<1x!tpu.dma_semaphore, #tpu.memory_space<semaphore_mem>> -> memref<!tpu.dma_semaphore, #tpu.memory_space<semaphore_mem>>
    tpu.wait_dma2 semaphore(%113 : memref<!tpu.dma_semaphore, #tpu.memory_space<semaphore_mem>>) src(%110 : memref<1x64xf32, #tpu.memory_space<any>>) dst(%111 : memref<1x64xf32, #tpu.memory_space<vmem>>)
    %c4_i32_65 = arith.constant 4 : i32
    %c0_i32_66 = arith.constant 0 : i32
    %114 = tpu.memref_slice %arg2[%27, %c0_i32_66] : memref<50x64xf32, #tpu.memory_space<any>> -> memref<1x64xf32, #tpu.memory_space<any>>
    %c4_i32_67 = arith.constant 4 : i32
    %c0_i32_68 = arith.constant 0 : i32
    %115 = tpu.memref_slice %arg9[%c4_i32_67, %c0_i32_68] : memref<24x64xf32, #tpu.memory_space<vmem>> -> memref<1x64xf32, #tpu.memory_space<vmem>>
    %116 = tpu.memref_slice %arg10[%c4_i32_65] : memref<16x!tpu.dma_semaphore, #tpu.memory_space<semaphore_mem>> -> memref<1x!tpu.dma_semaphore, #tpu.memory_space<semaphore_mem>>
    %117 = tpu.memref_squeeze %116 : memref<1x!tpu.dma_semaphore, #tpu.memory_space<semaphore_mem>> -> memref<!tpu.dma_semaphore, #tpu.memory_space<semaphore_mem>>
    tpu.wait_dma2 semaphore(%117 : memref<!tpu.dma_semaphore, #tpu.memory_space<semaphore_mem>>) src(%114 : memref<1x64xf32, #tpu.memory_space<any>>) dst(%115 : memref<1x64xf32, #tpu.memory_space<vmem>>)
    %c5_i32_69 = arith.constant 5 : i32
    %c0_i32_70 = arith.constant 0 : i32
    %118 = tpu.memref_slice %arg2[%33, %c0_i32_70] : memref<50x64xf32, #tpu.memory_space<any>> -> memref<1x64xf32, #tpu.memory_space<any>>
    %c5_i32_71 = arith.constant 5 : i32
    %c0_i32_72 = arith.constant 0 : i32
    %119 = tpu.memref_slice %arg9[%c5_i32_71, %c0_i32_72] : memref<24x64xf32, #tpu.memory_space<vmem>> -> memref<1x64xf32, #tpu.memory_space<vmem>>
    %120 = tpu.memref_slice %arg10[%c5_i32_69] : memref<16x!tpu.dma_semaphore, #tpu.memory_space<semaphore_mem>> -> memref<1x!tpu.dma_semaphore, #tpu.memory_space<semaphore_mem>>
    %121 = tpu.memref_squeeze %120 : memref<1x!tpu.dma_semaphore, #tpu.memory_space<semaphore_mem>> -> memref<!tpu.dma_semaphore, #tpu.memory_space<semaphore_mem>>
    tpu.wait_dma2 semaphore(%121 : memref<!tpu.dma_semaphore, #tpu.memory_space<semaphore_mem>>) src(%118 : memref<1x64xf32, #tpu.memory_space<any>>) dst(%119 : memref<1x64xf32, #tpu.memory_space<vmem>>)
    %c6_i32_73 = arith.constant 6 : i32
    %c0_i32_74 = arith.constant 0 : i32
    %122 = tpu.memref_slice %arg2[%39, %c0_i32_74] : memref<50x64xf32, #tpu.memory_space<any>> -> memref<1x64xf32, #tpu.memory_space<any>>
    %c6_i32_75 = arith.constant 6 : i32
    %c0_i32_76 = arith.constant 0 : i32
    %123 = tpu.memref_slice %arg9[%c6_i32_75, %c0_i32_76] : memref<24x64xf32, #tpu.memory_space<vmem>> -> memref<1x64xf32, #tpu.memory_space<vmem>>
    %124 = tpu.memref_slice %arg10[%c6_i32_73] : memref<16x!tpu.dma_semaphore, #tpu.memory_space<semaphore_mem>> -> memref<1x!tpu.dma_semaphore, #tpu.memory_space<semaphore_mem>>
    %125 = tpu.memref_squeeze %124 : memref<1x!tpu.dma_semaphore, #tpu.memory_space<semaphore_mem>> -> memref<!tpu.dma_semaphore, #tpu.memory_space<semaphore_mem>>
    tpu.wait_dma2 semaphore(%125 : memref<!tpu.dma_semaphore, #tpu.memory_space<semaphore_mem>>) src(%122 : memref<1x64xf32, #tpu.memory_space<any>>) dst(%123 : memref<1x64xf32, #tpu.memory_space<vmem>>)
    %c7_i32_77 = arith.constant 7 : i32
    %c0_i32_78 = arith.constant 0 : i32
    %126 = tpu.memref_slice %arg2[%45, %c0_i32_78] : memref<50x64xf32, #tpu.memory_space<any>> -> memref<1x64xf32, #tpu.memory_space<any>>
    %c7_i32_79 = arith.constant 7 : i32
    %c0_i32_80 = arith.constant 0 : i32
    %127 = tpu.memref_slice %arg9[%c7_i32_79, %c0_i32_80] : memref<24x64xf32, #tpu.memory_space<vmem>> -> memref<1x64xf32, #tpu.memory_space<vmem>>
    %128 = tpu.memref_slice %arg10[%c7_i32_77] : memref<16x!tpu.dma_semaphore, #tpu.memory_space<semaphore_mem>> -> memref<1x!tpu.dma_semaphore, #tpu.memory_space<semaphore_mem>>
    %129 = tpu.memref_squeeze %128 : memref<1x!tpu.dma_semaphore, #tpu.memory_space<semaphore_mem>> -> memref<!tpu.dma_semaphore, #tpu.memory_space<semaphore_mem>>
    tpu.wait_dma2 semaphore(%129 : memref<!tpu.dma_semaphore, #tpu.memory_space<semaphore_mem>>) src(%126 : memref<1x64xf32, #tpu.memory_space<any>>) dst(%127 : memref<1x64xf32, #tpu.memory_space<vmem>>)
    %c8_i32_81 = arith.constant 8 : i32
    %c0_i32_82 = arith.constant 0 : i32
    %130 = tpu.memref_slice %arg2[%51, %c0_i32_82] : memref<50x64xf32, #tpu.memory_space<any>> -> memref<1x64xf32, #tpu.memory_space<any>>
    %c8_i32_83 = arith.constant 8 : i32
    %c0_i32_84 = arith.constant 0 : i32
    %131 = tpu.memref_slice %arg9[%c8_i32_83, %c0_i32_84] : memref<24x64xf32, #tpu.memory_space<vmem>> -> memref<1x64xf32, #tpu.memory_space<vmem>>
    %132 = tpu.memref_slice %arg10[%c8_i32_81] : memref<16x!tpu.dma_semaphore, #tpu.memory_space<semaphore_mem>> -> memref<1x!tpu.dma_semaphore, #tpu.memory_space<semaphore_mem>>
    %133 = tpu.memref_squeeze %132 : memref<1x!tpu.dma_semaphore, #tpu.memory_space<semaphore_mem>> -> memref<!tpu.dma_semaphore, #tpu.memory_space<semaphore_mem>>
    tpu.wait_dma2 semaphore(%133 : memref<!tpu.dma_semaphore, #tpu.memory_space<semaphore_mem>>) src(%130 : memref<1x64xf32, #tpu.memory_space<any>>) dst(%131 : memref<1x64xf32, #tpu.memory_space<vmem>>)
    %c9_i32_85 = arith.constant 9 : i32
    %c0_i32_86 = arith.constant 0 : i32
    %134 = tpu.memref_slice %arg2[%57, %c0_i32_86] : memref<50x64xf32, #tpu.memory_space<any>> -> memref<1x64xf32, #tpu.memory_space<any>>
    %c9_i32_87 = arith.constant 9 : i32
    %c0_i32_88 = arith.constant 0 : i32
    %135 = tpu.memref_slice %arg9[%c9_i32_87, %c0_i32_88] : memref<24x64xf32, #tpu.memory_space<vmem>> -> memref<1x64xf32, #tpu.memory_space<vmem>>
    %136 = tpu.memref_slice %arg10[%c9_i32_85] : memref<16x!tpu.dma_semaphore, #tpu.memory_space<semaphore_mem>> -> memref<1x!tpu.dma_semaphore, #tpu.memory_space<semaphore_mem>>
    %137 = tpu.memref_squeeze %136 : memref<1x!tpu.dma_semaphore, #tpu.memory_space<semaphore_mem>> -> memref<!tpu.dma_semaphore, #tpu.memory_space<semaphore_mem>>
    tpu.wait_dma2 semaphore(%137 : memref<!tpu.dma_semaphore, #tpu.memory_space<semaphore_mem>>) src(%134 : memref<1x64xf32, #tpu.memory_space<any>>) dst(%135 : memref<1x64xf32, #tpu.memory_space<vmem>>)
    %c10_i32_89 = arith.constant 10 : i32
    %c0_i32_90 = arith.constant 0 : i32
    %138 = tpu.memref_slice %arg2[%63, %c0_i32_90] : memref<50x64xf32, #tpu.memory_space<any>> -> memref<1x64xf32, #tpu.memory_space<any>>
    %c10_i32_91 = arith.constant 10 : i32
    %c0_i32_92 = arith.constant 0 : i32
    %139 = tpu.memref_slice %arg9[%c10_i32_91, %c0_i32_92] : memref<24x64xf32, #tpu.memory_space<vmem>> -> memref<1x64xf32, #tpu.memory_space<vmem>>
    %140 = tpu.memref_slice %arg10[%c10_i32_89] : memref<16x!tpu.dma_semaphore, #tpu.memory_space<semaphore_mem>> -> memref<1x!tpu.dma_semaphore, #tpu.memory_space<semaphore_mem>>
    %141 = tpu.memref_squeeze %140 : memref<1x!tpu.dma_semaphore, #tpu.memory_space<semaphore_mem>> -> memref<!tpu.dma_semaphore, #tpu.memory_space<semaphore_mem>>
    tpu.wait_dma2 semaphore(%141 : memref<!tpu.dma_semaphore, #tpu.memory_space<semaphore_mem>>) src(%138 : memref<1x64xf32, #tpu.memory_space<any>>) dst(%139 : memref<1x64xf32, #tpu.memory_space<vmem>>)
    %c11_i32_93 = arith.constant 11 : i32
    %c0_i32_94 = arith.constant 0 : i32
    %142 = tpu.memref_slice %arg2[%69, %c0_i32_94] : memref<50x64xf32, #tpu.memory_space<any>> -> memref<1x64xf32, #tpu.memory_space<any>>
    %c11_i32_95 = arith.constant 11 : i32
    %c0_i32_96 = arith.constant 0 : i32
    %143 = tpu.memref_slice %arg9[%c11_i32_95, %c0_i32_96] : memref<24x64xf32, #tpu.memory_space<vmem>> -> memref<1x64xf32, #tpu.memory_space<vmem>>
    %144 = tpu.memref_slice %arg10[%c11_i32_93] : memref<16x!tpu.dma_semaphore, #tpu.memory_space<semaphore_mem>> -> memref<1x!tpu.dma_semaphore, #tpu.memory_space<semaphore_mem>>
    %145 = tpu.memref_squeeze %144 : memref<1x!tpu.dma_semaphore, #tpu.memory_space<semaphore_mem>> -> memref<!tpu.dma_semaphore, #tpu.memory_space<semaphore_mem>>
    tpu.wait_dma2 semaphore(%145 : memref<!tpu.dma_semaphore, #tpu.memory_space<semaphore_mem>>) src(%142 : memref<1x64xf32, #tpu.memory_space<any>>) dst(%143 : memref<1x64xf32, #tpu.memory_space<vmem>>)
    %c12_i32_97 = arith.constant 12 : i32
    %c0_i32_98 = arith.constant 0 : i32
    %146 = tpu.memref_slice %arg2[%75, %c0_i32_98] : memref<50x64xf32, #tpu.memory_space<any>> -> memref<1x64xf32, #tpu.memory_space<any>>
    %c12_i32_99 = arith.constant 12 : i32
    %c0_i32_100 = arith.constant 0 : i32
    %147 = tpu.memref_slice %arg9[%c12_i32_99, %c0_i32_100] : memref<24x64xf32, #tpu.memory_space<vmem>> -> memref<1x64xf32, #tpu.memory_space<vmem>>
    %148 = tpu.memref_slice %arg10[%c12_i32_97] : memref<16x!tpu.dma_semaphore, #tpu.memory_space<semaphore_mem>> -> memref<1x!tpu.dma_semaphore, #tpu.memory_space<semaphore_mem>>
    %149 = tpu.memref_squeeze %148 : memref<1x!tpu.dma_semaphore, #tpu.memory_space<semaphore_mem>> -> memref<!tpu.dma_semaphore, #tpu.memory_space<semaphore_mem>>
    tpu.wait_dma2 semaphore(%149 : memref<!tpu.dma_semaphore, #tpu.memory_space<semaphore_mem>>) src(%146 : memref<1x64xf32, #tpu.memory_space<any>>) dst(%147 : memref<1x64xf32, #tpu.memory_space<vmem>>)
    %c13_i32_101 = arith.constant 13 : i32
    %c0_i32_102 = arith.constant 0 : i32
    %150 = tpu.memref_slice %arg2[%81, %c0_i32_102] : memref<50x64xf32, #tpu.memory_space<any>> -> memref<1x64xf32, #tpu.memory_space<any>>
    %c13_i32_103 = arith.constant 13 : i32
    %c0_i32_104 = arith.constant 0 : i32
    %151 = tpu.memref_slice %arg9[%c13_i32_103, %c0_i32_104] : memref<24x64xf32, #tpu.memory_space<vmem>> -> memref<1x64xf32, #tpu.memory_space<vmem>>
    %152 = tpu.memref_slice %arg10[%c13_i32_101] : memref<16x!tpu.dma_semaphore, #tpu.memory_space<semaphore_mem>> -> memref<1x!tpu.dma_semaphore, #tpu.memory_space<semaphore_mem>>
    %153 = tpu.memref_squeeze %152 : memref<1x!tpu.dma_semaphore, #tpu.memory_space<semaphore_mem>> -> memref<!tpu.dma_semaphore, #tpu.memory_space<semaphore_mem>>
    tpu.wait_dma2 semaphore(%153 : memref<!tpu.dma_semaphore, #tpu.memory_space<semaphore_mem>>) src(%150 : memref<1x64xf32, #tpu.memory_space<any>>) dst(%151 : memref<1x64xf32, #tpu.memory_space<vmem>>)
    %c14_i32_105 = arith.constant 14 : i32
    %c0_i32_106 = arith.constant 0 : i32
    %154 = tpu.memref_slice %arg2[%87, %c0_i32_106] : memref<50x64xf32, #tpu.memory_space<any>> -> memref<1x64xf32, #tpu.memory_space<any>>
    %c14_i32_107 = arith.constant 14 : i32
    %c0_i32_108 = arith.constant 0 : i32
    %155 = tpu.memref_slice %arg9[%c14_i32_107, %c0_i32_108] : memref<24x64xf32, #tpu.memory_space<vmem>> -> memref<1x64xf32, #tpu.memory_space<vmem>>
    %156 = tpu.memref_slice %arg10[%c14_i32_105] : memref<16x!tpu.dma_semaphore, #tpu.memory_space<semaphore_mem>> -> memref<1x!tpu.dma_semaphore, #tpu.memory_space<semaphore_mem>>
    %157 = tpu.memref_squeeze %156 : memref<1x!tpu.dma_semaphore, #tpu.memory_space<semaphore_mem>> -> memref<!tpu.dma_semaphore, #tpu.memory_space<semaphore_mem>>
    tpu.wait_dma2 semaphore(%157 : memref<!tpu.dma_semaphore, #tpu.memory_space<semaphore_mem>>) src(%154 : memref<1x64xf32, #tpu.memory_space<any>>) dst(%155 : memref<1x64xf32, #tpu.memory_space<vmem>>)
    %c15_i32_109 = arith.constant 15 : i32
    %c0_i32_110 = arith.constant 0 : i32
    %158 = tpu.memref_slice %arg2[%93, %c0_i32_110] : memref<50x64xf32, #tpu.memory_space<any>> -> memref<1x64xf32, #tpu.memory_space<any>>
    %c15_i32_111 = arith.constant 15 : i32
    %c0_i32_112 = arith.constant 0 : i32
    %159 = tpu.memref_slice %arg9[%c15_i32_111, %c0_i32_112] : memref<24x64xf32, #tpu.memory_space<vmem>> -> memref<1x64xf32, #tpu.memory_space<vmem>>
    %160 = tpu.memref_slice %arg10[%c15_i32_109] : memref<16x!tpu.dma_semaphore, #tpu.memory_space<semaphore_mem>> -> memref<1x!tpu.dma_semaphore, #tpu.memory_space<semaphore_mem>>
    %161 = tpu.memref_squeeze %160 : memref<1x!tpu.dma_semaphore, #tpu.memory_space<semaphore_mem>> -> memref<!tpu.dma_semaphore, #tpu.memory_space<semaphore_mem>>
    tpu.wait_dma2 semaphore(%161 : memref<!tpu.dma_semaphore, #tpu.memory_space<semaphore_mem>>) src(%158 : memref<1x64xf32, #tpu.memory_space<any>>) dst(%159 : memref<1x64xf32, #tpu.memory_space<vmem>>)
    %c0_113 = arith.constant 0 : index
    %c0_114 = arith.constant 0 : index
    %162 = vector.load %arg9[%c0_113, %c0_114] : memref<24x64xf32, #tpu.memory_space<vmem>>, vector<24x64xf32>
    %cst_115 = arith.constant 0.000000e+00 : f32
    %163 = vector.broadcast %cst_115 : f32 to vector<16x128xf32>
    %164 = vector.extract_strided_slice %162 {offsets = [0, 0], sizes = [16, 64], strides = [1, 1]} : vector<24x64xf32> to vector<16x64xf32>
    %165 = arith.truncf %164 : vector<16x64xf32> to vector<16x64xbf16>
    %c0_116 = arith.constant 0 : index
    %c0_117 = arith.constant 0 : index
    %c0_118 = arith.constant 0 : index
    %166 = vector.load %arg3[%c0_116, %c0_117, %c0_118] : memref<5x64x128xbf16, #tpu.memory_space<vmem>>, vector<1x64x128xbf16>
    %167 = vector.shape_cast %166 : vector<1x64x128xbf16> to vector<64x128xbf16>
    %cst_119 = arith.constant dense<0.000000e+00> : vector<16x128xf32>
    %168 = tpu.matmul %165, %167, %cst_119 {dimension_numbers = #tpu.dot_dimension_numbers<[1], [0], [0], [1], [0, 0, 1, 1], [], []>} : vector<16x64xbf16>, vector<64x128xbf16>, vector<16x128xf32> -> vector<16x128xf32>
    %169 = arith.addf %163, %168 : vector<16x128xf32>
    %170 = vector.extract_strided_slice %162 {offsets = [1, 0], sizes = [16, 64], strides = [1, 1]} : vector<24x64xf32> to vector<16x64xf32>
    %171 = arith.truncf %170 : vector<16x64xf32> to vector<16x64xbf16>
    %c1_120 = arith.constant 1 : index
    %c0_121 = arith.constant 0 : index
    %c0_122 = arith.constant 0 : index
    %172 = vector.load %arg3[%c1_120, %c0_121, %c0_122] : memref<5x64x128xbf16, #tpu.memory_space<vmem>>, vector<1x64x128xbf16>
    %173 = vector.shape_cast %172 : vector<1x64x128xbf16> to vector<64x128xbf16>
    %cst_123 = arith.constant dense<0.000000e+00> : vector<16x128xf32>
    %174 = tpu.matmul %171, %173, %cst_123 {dimension_numbers = #tpu.dot_dimension_numbers<[1], [0], [0], [1], [0, 0, 1, 1], [], []>} : vector<16x64xbf16>, vector<64x128xbf16>, vector<16x128xf32> -> vector<16x128xf32>
    %175 = arith.addf %169, %174 : vector<16x128xf32>
    %176 = vector.extract_strided_slice %162 {offsets = [2, 0], sizes = [16, 64], strides = [1, 1]} : vector<24x64xf32> to vector<16x64xf32>
    %177 = arith.truncf %176 : vector<16x64xf32> to vector<16x64xbf16>
    %c2_124 = arith.constant 2 : index
    %c0_125 = arith.constant 0 : index
    %c0_126 = arith.constant 0 : index
    %178 = vector.load %arg3[%c2_124, %c0_125, %c0_126] : memref<5x64x128xbf16, #tpu.memory_space<vmem>>, vector<1x64x128xbf16>
    %179 = vector.shape_cast %178 : vector<1x64x128xbf16> to vector<64x128xbf16>
    %cst_127 = arith.constant dense<0.000000e+00> : vector<16x128xf32>
    %180 = tpu.matmul %177, %179, %cst_127 {dimension_numbers = #tpu.dot_dimension_numbers<[1], [0], [0], [1], [0, 0, 1, 1], [], []>} : vector<16x64xbf16>, vector<64x128xbf16>, vector<16x128xf32> -> vector<16x128xf32>
    %181 = arith.addf %175, %180 : vector<16x128xf32>
    %182 = vector.extract_strided_slice %162 {offsets = [3, 0], sizes = [16, 64], strides = [1, 1]} : vector<24x64xf32> to vector<16x64xf32>
    %183 = arith.truncf %182 : vector<16x64xf32> to vector<16x64xbf16>
    %c3_128 = arith.constant 3 : index
    %c0_129 = arith.constant 0 : index
    %c0_130 = arith.constant 0 : index
    %184 = vector.load %arg3[%c3_128, %c0_129, %c0_130] : memref<5x64x128xbf16, #tpu.memory_space<vmem>>, vector<1x64x128xbf16>
    %185 = vector.shape_cast %184 : vector<1x64x128xbf16> to vector<64x128xbf16>
    %cst_131 = arith.constant dense<0.000000e+00> : vector<16x128xf32>
    %186 = tpu.matmul %183, %185, %cst_131 {dimension_numbers = #tpu.dot_dimension_numbers<[1], [0], [0], [1], [0, 0, 1, 1], [], []>} : vector<16x64xbf16>, vector<64x128xbf16>, vector<16x128xf32> -> vector<16x128xf32>
    %187 = arith.addf %181, %186 : vector<16x128xf32>
    %188 = vector.extract_strided_slice %162 {offsets = [4, 0], sizes = [16, 64], strides = [1, 1]} : vector<24x64xf32> to vector<16x64xf32>
    %189 = arith.truncf %188 : vector<16x64xf32> to vector<16x64xbf16>
    %c4_132 = arith.constant 4 : index
    %c0_133 = arith.constant 0 : index
    %c0_134 = arith.constant 0 : index
    %190 = vector.load %arg3[%c4_132, %c0_133, %c0_134] : memref<5x64x128xbf16, #tpu.memory_space<vmem>>, vector<1x64x128xbf16>
    %191 = vector.shape_cast %190 : vector<1x64x128xbf16> to vector<64x128xbf16>
    %cst_135 = arith.constant dense<0.000000e+00> : vector<16x128xf32>
    %192 = tpu.matmul %189, %191, %cst_135 {dimension_numbers = #tpu.dot_dimension_numbers<[1], [0], [0], [1], [0, 0, 1, 1], [], []>} : vector<16x64xbf16>, vector<64x128xbf16>, vector<16x128xf32> -> vector<16x128xf32>
    %193 = arith.addf %187, %192 : vector<16x128xf32>
    %c0_136 = arith.constant 0 : index
    %c0_137 = arith.constant 0 : index
    %194 = vector.load %arg4[%c0_136, %c0_137] : memref<1x128xf32, #tpu.memory_space<vmem>>, vector<1x128xf32>
    %195 = vector.broadcast %194 : vector<1x128xf32> to vector<16x128xf32>
    %196 = arith.addf %193, %195 : vector<16x128xf32>
    %cst_138 = arith.constant 0.000000e+00 : f32
    %197 = vector.broadcast %cst_138 : f32 to vector<16x128xf32>
    %198 = arith.maximumf %196, %197 : vector<16x128xf32>
    %c0_139 = arith.constant 0 : index
    %c0_140 = arith.constant 0 : index
    %199 = vector.load %arg5[%c0_139, %c0_140] : memref<16x128xf32, #tpu.memory_space<vmem>>, vector<16x128xf32>
    %cst_141 = arith.constant 5.000000e-01 : f32
    %200 = vector.broadcast %cst_141 : f32 to vector<16x128xf32>
    %201 = arith.cmpf ogt, %199, %200 : vector<16x128xf32>
    %cst_142 = arith.constant 0.000000e+00 : f32
    %202 = vector.broadcast %cst_142 : f32 to vector<16x128xf32>
    %203 = arith.select %201, %198, %202 : vector<16x128xi1>, vector<16x128xf32>
    %cst_143 = arith.constant dense<0xFF800000> : vector<128xf32>
    %204 = vector.multi_reduction <maximumf>, %203, %cst_143 [0] : vector<16x128xf32> to vector<128xf32>
    %205 = vector.shape_cast %204 : vector<128xf32> to vector<1x128xf32>
    %c0_144 = arith.constant 0 : index
    %c0_145 = arith.constant 0 : index
    %206 = vector.load %arg6[%c0_144, %c0_145] : memref<1x128xf32, #tpu.memory_space<vmem>>, vector<1x128xf32>
    %207 = arith.mulf %205, %206 : vector<1x128xf32>
    %cst_146 = arith.constant dense<0.000000e+00> : vector<1xf32>
    %208 = vector.multi_reduction <add>, %207, %cst_146 [1] : vector<1x128xf32> to vector<1xf32>
    %209 = vector.shape_cast %208 : vector<1xf32> to vector<1x1xf32>
    %c0_147 = arith.constant 0 : index
    %c0_148 = arith.constant 0 : index
    %210 = vector.load %arg7[%c0_147, %c0_148] : memref<1x1xf32, #tpu.memory_space<vmem>>, vector<1x1xf32>
    %211 = arith.addf %209, %210 : vector<1x1xf32>
    %cst_149 = arith.constant 0.000000e+00 : f32
    %212 = vector.broadcast %cst_149 : f32 to vector<1x1xf32>
    %213 = arith.subf %212, %211 : vector<1x1xf32>
    %214 = math.exp %213 : vector<1x1xf32>
    %cst_150 = arith.constant 1.000000e+00 : f32
    %215 = vector.broadcast %cst_150 : f32 to vector<1x1xf32>
    %216 = arith.addf %215, %214 : vector<1x1xf32>
    %cst_151 = arith.constant 1.000000e+00 : f32
    %217 = vector.broadcast %cst_151 : f32 to vector<1x1xf32>
    %218 = arith.divf %217, %216 : vector<1x1xf32>
    %cst_152 = arith.constant 1.000000e+00 : f32
    %219 = vector.broadcast %cst_152 : f32 to vector<1x1xf32>
    %220 = arith.subf %219, %218 : vector<1x1xf32>
    %221 = tpu.iota {dimensions = array<i32: 1>} : vector<1x128xi32>
    %c126_i32 = arith.constant 126 : i32
    %222 = vector.broadcast %c126_i32 : i32 to vector<1x128xi32>
    %223 = arith.cmpi eq, %221, %222 : vector<1x128xi32>
    %cst_153 = arith.constant 0.000000e+00 : f32
    %224 = vector.shape_cast %220 : vector<1x1xf32> to vector<1x1xf32>
    %225 = vector.broadcast %224 : vector<1x1xf32> to vector<1x128xf32>
    %226 = vector.broadcast %cst_153 : f32 to vector<1x128xf32>
    %227 = arith.select %223, %225, %226 : vector<1x128xi1>, vector<1x128xf32>
    %228 = arith.addf %205, %227 : vector<1x128xf32>
    %c127_i32 = arith.constant 127 : i32
    %229 = vector.broadcast %c127_i32 : i32 to vector<1x128xi32>
    %230 = arith.cmpi eq, %221, %229 : vector<1x128xi32>
    %cst_154 = arith.constant 0.000000e+00 : f32
    %231 = vector.shape_cast %218 : vector<1x1xf32> to vector<1x1xf32>
    %232 = vector.broadcast %231 : vector<1x1xf32> to vector<1x128xf32>
    %233 = vector.broadcast %cst_154 : f32 to vector<1x128xf32>
    %234 = arith.select %230, %232, %233 : vector<1x128xi1>, vector<1x128xf32>
    %235 = arith.addf %228, %234 : vector<1x128xf32>
    %c0_155 = arith.constant 0 : index
    %c0_156 = arith.constant 0 : index
    %c0_157 = arith.constant 0 : index
    %236 = vector.load %arg8[%c0_155, %c0_156, %c0_157] : memref<1x1x128xf32, #tpu.memory_space<vmem>>, vector<1x1x128xf32>
    %237 = vector.shape_cast %236 : vector<1x1x128xf32> to vector<1x128xf32>
    %238 = vector.shape_cast %235 : vector<1x128xf32> to vector<1x1x128xf32>
    tpu.vector_store %arg8[%c0_155, %c0_156, %c0_157], %238 {strides = array<i32>} : memref<1x1x128xf32, #tpu.memory_space<vmem>>, vector<1x1x128xf32>,
    return
  }
  func.func @transform_1(%arg0: i32, %arg1: memref<2x16xi32, #tpu.memory_space<smem>>) -> (i32, i32, i32) {
    %c0_i32 = arith.constant 0 : i32
    %c0_i32_0 = arith.constant 0 : i32
    %c0_i32_1 = arith.constant 0 : i32
    %c0_i32_2 = arith.constant 0 : i32
    return %c0_i32, %c0_i32_0, %c0_i32_1 : i32, i32, i32
  }
  func.func @transform_2(%arg0: i32, %arg1: memref<2x16xi32, #tpu.memory_space<smem>>) -> (i32, i32) {
    %c0_i32 = arith.constant 0 : i32
    %c0_i32_0 = arith.constant 0 : i32
    %c0_i32_1 = arith.constant 0 : i32
    return %c0_i32, %c0_i32_0 : i32, i32
  }
  func.func @transform_3(%arg0: i32, %arg1: memref<2x16xi32, #tpu.memory_space<smem>>) -> (i32, i32) {
    %c0_i32 = arith.constant 0 : i32
    %c0_i32_0 = arith.constant 0 : i32
    %c0_i32_1 = arith.constant 0 : i32
    return %c0_i32, %c0_i32_0 : i32, i32
  }
  func.func @transform_4(%arg0: i32, %arg1: memref<2x16xi32, #tpu.memory_space<smem>>) -> (i32, i32) {
    %c0_i32 = arith.constant 0 : i32
    %c0_i32_0 = arith.constant 0 : i32
    %c0_i32_1 = arith.constant 0 : i32
    return %c0_i32, %c0_i32_0 : i32, i32
  }
  func.func @transform_5(%arg0: i32, %arg1: memref<2x16xi32, #tpu.memory_space<smem>>) -> (i32, i32) {
    %c0_i32 = arith.constant 0 : i32
    %c0_i32_0 = arith.constant 0 : i32
    %c0_i32_1 = arith.constant 0 : i32
    return %c0_i32, %c0_i32_0 : i32, i32
  }
  func.func @transform_6(%arg0: i32, %arg1: memref<2x16xi32, #tpu.memory_space<smem>>) -> (i32, i32, i32) {
    %c0_i32 = arith.constant 0 : i32
    %c0_i32_0 = arith.constant 0 : i32
    %c0_i32_1 = arith.constant 0 : i32
    return %arg0, %c0_i32, %c0_i32_0 : i32, i32, i32
  }
}

</mosaic_0001>

<llo_original>
// kernel: tile.6
$region0: #{tile.6}
  #allocation0 [shape = 's32[1]{0}', space=sflag, size = 0x4, scoped, tag = 'scoped memory for tile.6']
  %s0 = inlined_call_operand.vmem [shape: s32[3], index: 0, kind: input, shape index: {}]
  %s1 = inlined_call_operand.vmem [shape: s32[32,3], index: 1, kind: output, shape index: {}]
  // Predicated region
  $region2: #{tile.6} parent=0 // pred_check
    _
  $region3: #{tile.6} parent=0 // pred_check_branch
    %3 = sbr.rel (0) target = $region5
  $region4: #{tile.6} parent=0 // pred_region
    _
  $region5: #{tile.6} parent=0 // pred_fallthru
    _
  %v4 = vld [vmem:[%s0] ss:$0 sm:$0xff]
  %5 = vst [vmem:[%s1] sm:$0xff] %v4
  %s6 = scalar_lea.vmem %s1, 8
  %7 = vst [vmem:[%s6] sm:$0xff] %v4
  %s8 = scalar_lea.vmem %s1, 16
  %9 = vst [vmem:[%s8] sm:$0xff] %v4
  %s10 = scalar_lea.vmem %s1, 24
  %11 = vst [vmem:[%s10] sm:$0xff] %v4

// kernel: tile.7
$region0: #{tile.7}
  %s0 = inlined_call_operand.vmem [shape: s32[32,3], index: 0, kind: input, shape index: {}]
  %s1 = inlined_call_operand.vmem [shape: s32[96], index: 1, kind: output, shape index: {}]
  $region1: #{tile.7} parent=0
    #allocation0 [shape = 'u8[4096]{0}', space=vmem, size = 0x1000, scoped, tag = 'scoped mem for output reshape']
    %v2 = vld [vmem:[%s0] sm:$0x1]
    %vm3 = vcmask 23552
    %4 = vst.msk [vmem:[#allocation0] sm:$0x1] %vm3, %v2
    %s5 = scalar_lea.vmem %s0, 31
    %v6 = vld [vmem:[%s5] sm:$0x1]
    %7 = vrot.lane.b32.xlu0 %v6, 93
    %v8 = vpop.permute.xlu0 %7
    %vm9 = vcmask 786152
    %10 = vst.msk [vmem:[#allocation0] sm:$0x1] %vm9, %v8
    %s11 = scalar_lea.vmem %s0, 30
    %v12 = vld [vmem:[%s11] sm:$0x1]
    %13 = vrot.lane.b32.xlu0 %v12, 90
    %v14 = vpop.permute.xlu0 %13
    %vm15 = vcmask 761552
    %16 = vst.msk [vmem:[#allocation0] sm:$0x1] %vm15, %v14
    %s17 = scalar_lea.vmem %s0, 29
    %v18 = vld [vmem:[%s17] sm:$0x1]
    %19 = vrot.lane.b32.xlu0 %v18, 87
    %v20 = vpop.permute.xlu0 %19
    %vm21 = vcmask 736952
    %22 = vst.msk [vmem:[#allocation0] sm:$0x1] %vm21, %v20
    %s23 = scalar_lea.vmem %s0, 28
    %v24 = vld [vmem:[%s23] sm:$0x1]
    %25 = vrot.lane.b32.xlu0 %v24, 84
    %v26 = vpop.permute.xlu0 %25
    %vm27 = vcmask 712352
    %28 = vst.msk [vmem:[#allocation0] sm:$0x1] %vm27, %v26
    %s29 = scalar_lea.vmem %s0, 27
    %v30 = vld [vmem:[%s29] sm:$0x1]
    %31 = vrot.lane.b32.xlu0 %v30, 81
    %v32 = vpop.permute.xlu0 %31
    %vm33 = vcmask 687752
    %34 = vst.msk [vmem:[#allocation0] sm:$0x1] %vm33, %v32
    %s35 = scalar_lea.vmem %s0, 26
    %v36 = vld [vmem:[%s35] sm:$0x1]
    %37 = vrot.lane.b32.xlu0 %v36, 78
    %v38 = vpop.permute.xlu0 %37
    %vm39 = vcmask 663152
    %40 = vst.msk [vmem:[#allocation0] sm:$0x1] %vm39, %v38
    %s41 = scalar_lea.vmem %s0, 25
    %v42 = vld [vmem:[%s41] sm:$0x1]
    %43 = vrot.lane.b32.xlu0 %v42, 75
    %v44 = vpop.permute.xlu0 %43
    %vm45 = vcmask 638552
    %46 = vst.msk [vmem:[#allocation0] sm:$0x1] %vm45, %v44
    %s47 = scalar_lea.vmem %s0, 24
    %v48 = vld [vmem:[%s47] sm:$0x1]
    %49 = vrot.lane.b32.xlu0 %v48, 72
    %v50 = vpop.permute.xlu0 %49
    %vm51 = vcmask 613952
    %52 = vst.msk [vmem:[#allocation0] sm:$0x1] %vm51, %v50
    %s53 = scalar_lea.vmem %s0, 23
    %v54 = vld [vmem:[%s53] sm:$0x1]
    %55 = vrot.lane.b32.xlu0 %v54, 69
    %v56 = vpop.permute.xlu0 %55
    %vm57 = vcmask 589352
    %58 = vst.msk [vmem:[#allocation0] sm:$0x1] %vm57, %v56
    %s59 = scalar_lea.vmem %s0, 22
    %v60 = vld [vmem:[%s59] sm:$0x1]
    %61 = vrot.lane.b32.xlu0 %v60, 66
    %v62 = vpop.permute.xlu0 %61
    %vm63 = vcmask 564752
    %64 = vst.msk [vmem:[#allocation0] sm:$0x1] %vm63, %v62
    %s65 = scalar_lea.vmem %s0, 21
    %v66 = vld [vmem:[%s65] sm:$0x1]
    %67 = vrot.lane.b32.xlu0 %v66, 63
    %v68 = vpop.permute.xlu0 %67
    %vm69 = vcmask 540152
    %70 = vst.msk [vmem:[#allocation0] sm:$0x1] %vm69, %v68
    %s71 = scalar_lea.vmem %s0, 20
    %v72 = vld [vmem:[%s71] sm:$0x1]
    %73 = vrot.lane.b32.xlu0 %v72, 60
    %v74 = vpop.permute.xlu0 %73
    %vm75 = vcmask 515552
    %76 = vst.msk [vmem:[#allocation0] sm:$0x1] %vm75, %v74
    %s77 = scalar_lea.vmem %s0, 19
    %v78 = vld [vmem:[%s77] sm:$0x1]
    %79 = vrot.lane.b32.xlu0 %v78, 57
    %v80 = vpop.permute.xlu0 %79
    %vm81 = vcmask 490952
    %82 = vst.msk [vmem:[#allocation0] sm:$0x1] %vm81, %v80
    %s83 = scalar_lea.vmem %s0, 18
    %v84 = vld [vmem:[%s83] sm:$0x1]
    %85 = vrot.lane.b32.xlu0 %v84, 54
    %v86 = vpop.permute.xlu0 %85
    %vm87 = vcmask 466352
    %88 = vst.msk [vmem:[#allocation0] sm:$0x1] %vm87, %v86
    %s89 = scalar_lea.vmem %s0, 17
    %v90 = vld [vmem:[%s89] sm:$0x1]
    %91 = vrot.lane.b32.xlu0 %v90, 51
    %v92 = vpop.permute.xlu0 %91
    %vm93 = vcmask 441752
    %94 = vst.msk [vmem:[#allocation0] sm:$0x1] %vm93, %v92
    %s95 = scalar_lea.vmem %s0, 16
    %v96 = vld [vmem:[%s95] sm:$0x1]
    %97 = vrot.lane.b32.xlu0 %v96, 48
    %v98 = vpop.permute.xlu0 %97
    %vm99 = vcmask 417152
    %100 = vst.msk [vmem:[#allocation0] sm:$0x1] %vm99, %v98
    %s101 = scalar_lea.vmem %s0, 15
    %v102 = vld [vmem:[%s101] sm:$0x1]
    %103 = vrot.lane.b32.xlu0 %v102, 45
    %v104 = vpop.permute.xlu0 %103
    %vm105 = vcmask 392552
    %106 = vst.msk [vmem:[#allocation0] sm:$0x1] %vm105, %v104
    %s107 = scalar_lea.vmem %s0, 14
    %v108 = vld [vmem:[%s107] sm:$0x1]
    %109 = vrot.lane.b32.xlu0 %v108, 42
    %v110 = vpop.permute.xlu0 %109
    %vm111 = vcmask 367952
    %112 = vst.msk [vmem:[#allocation0] sm:$0x1] %vm111, %v110
    %s113 = scalar_lea.vmem %s0, 13
    %v114 = vld [vmem:[%s113] sm:$0x1]
    %115 = vrot.lane.b32.xlu0 %v114, 39
    %v116 = vpop.permute.xlu0 %115
    %vm117 = vcmask 343352
    %118 = vst.msk [vmem:[#allocation0] sm:$0x1] %vm117, %v116
    %s119 = scalar_lea.vmem %s0, 12
    %v120 = vld [vmem:[%s119] sm:$0x1]
    %121 = vrot.lane.b32.xlu0 %v120, 36
    %v122 = vpop.permute.xlu0 %121
    %vm123 = vcmask 318752
    %124 = vst.msk [vmem:[#allocation0] sm:$0x1] %vm123, %v122
    %s125 = scalar_lea.vmem %s0, 11
    %v126 = vld [vmem:[%s125] sm:$0x1]
    %127 = vrot.lane.b32.xlu0 %v126, 33
    %v128 = vpop.permute.xlu0 %127
    %vm129 = vcmask 294152
    %130 = vst.msk [vmem:[#allocation0] sm:$0x1] %vm129, %v128
    %s131 = scalar_lea.vmem %s0, 10
    %v132 = vld [vmem:[%s131] sm:$0x1]
    %133 = vrot.lane.b32.xlu0 %v132, 30
    %v134 = vpop.permute.xlu0 %133
    %vm135 = vcmask 269552
    %136 = vst.msk [vmem:[#allocation0] sm:$0x1] %vm135, %v134
    %s137 = scalar_lea.vmem %s0, 9
    %v138 = vld [vmem:[%s137] sm:$0x1]
    %139 = vrot.lane.b32.xlu0 %v138, 27
    %v140 = vpop.permute.xlu0 %139
    %vm141 = vcmask 244952
    %142 = vst.msk [vmem:[#allocation0] sm:$0x1] %vm141, %v140
    %s143 = scalar_lea.vmem %s0, 8
    %v144 = vld [vmem:[%s143] sm:$0x1]
    %145 = vrot.lane.b32.xlu0 %v144, 24
    %v146 = vpop.permute.xlu0 %145
    %vm147 = vcmask 220352
    %148 = vst.msk [vmem:[#allocation0] sm:$0x1] %vm147, %v146
    %s149 = scalar_lea.vmem %s0, 7
    %v150 = vld [vmem:[%s149] sm:$0x1]
    %151 = vrot.lane.b32.xlu0 %v150, 21
    %v152 = vpop.permute.xlu0 %151
    %vm153 = vcmask 195752
    %154 = vst.msk [vmem:[#allocation0] sm:$0x1] %vm153, %v152
    %s155 = scalar_lea.vmem %s0, 6
    %v156 = vld [vmem:[%s155] sm:$0x1]
    %157 = vrot.lane.b32.xlu0 %v156, 18
    %v158 = vpop.permute.xlu0 %157
    %vm159 = vcmask 171152
    %160 = vst.msk [vmem:[#allocation0] sm:$0x1] %vm159, %v158
    %s161 = scalar_lea.vmem %s0, 5
    %v162 = vld [vmem:[%s161] sm:$0x1]
    %163 = vrot.lane.b32.xlu0 %v162, 15
    %v164 = vpop.permute.xlu0 %163
    %vm165 = vcmask 146552
    %166 = vst.msk [vmem:[#allocation0] sm:$0x1] %vm165, %v164
    %s167 = scalar_lea.vmem %s0, 4
    %v168 = vld [vmem:[%s167] sm:$0x1]
    %169 = vrot.lane.b32.xlu0 %v168, 12
    %v170 = vpop.permute.xlu0 %169
    %vm171 = vcmask 121952
    %172 = vst.msk [vmem:[#allocation0] sm:$0x1] %vm171, %v170
    %s173 = scalar_lea.vmem %s0, 3
    %v174 = vld [vmem:[%s173] sm:$0x1]
    %175 = vrot.lane.b32.xlu0 %v174, 9
    %v176 = vpop.permute.xlu0 %175
    %vm177 = vcmask 97352
    %178 = vst.msk [vmem:[#allocation0] sm:$0x1] %vm177, %v176
    %s179 = scalar_lea.vmem %s0, 2
    %v180 = vld [vmem:[%s179] sm:$0x1]
    %181 = vrot.lane.b32.xlu0 %v180, 6
    %v182 = vpop.permute.xlu0 %181
    %vm183 = vcmask 72752
    %184 = vst.msk [vmem:[#allocation0] sm:$0x1] %vm183, %v182
    %s185 = scalar_lea.vmem %s0, 1
    %v186 = vld [vmem:[%s185] sm:$0x1]
    %187 = vrot.lane.b32.xlu0 %v186, 3
    %v188 = vpop.permute.xlu0 %187
    %vm189 = vcmask 48152
    %190 = vst.msk [vmem:[#allocation0] sm:$0x1] %vm189, %v188
    %s192 = sshll.u32 1, 1
    %s193 = ssub.s32 %s192, 1
    %v195 = vld [vmem:[#allocation0] sm:%s193]
    %s196 = sshll.u32 1, 1
    %s197 = ssub.s32 %s196, 1
    %198 = vst [vmem:[%s1] sm:%s197] %v195

// kernel: cnn_forward.1
$region0: #{cnn_forward.1}
  #allocation0 [shape = 'u32[]', space=smem, size = 0x4, offset = 0x4, fixed_abs, tag = 'smem constant byte address 0x4 - core index']
  #allocation1 [shape = 'u32[144,128]{1,0:T(1,128)}', space=vmem, size = 0x12000, scoped, tag = 'internal scratch']
  #allocation2 [shape = 'f32[24,64]{1,0:T(8,128)}', space=vmem, size = 0x3000, scoped, tag = 'scratch operand']
  #allocation3 [shape = 's32[16]{0}', space=sflag, size = 0x40, scoped, tag = 'scratch operand']
  #allocation4 [shape = 's32[1]{0}', space=sflag, size = 0x4, scoped, tag = 'scoped memory for cnn_forward.1']
  #allocation5 [shape = 'u8[1024]{0}', space=smem, size = 0x400, scoped, tag = 'prefetched SMEM operand 0']
  #allocation6 [shape = 'f32[1,1]{1,0:T(1,128)S(1)}', space=vmem, size = 0x200, scoped, tag = 'scoped memory for cnn_forward.1']
  #allocation7 [shape = 's32[]', space=sflag, size = 0x4, offset = 0, fixed_abs, tag = 'sflag constant byte address 0x0 - dummy sync flag']
  #allocation8 [shape = 's32[]', space=sflag, size = 0x4, offset = 0, fixed_abs, tag = 'sflag constant byte address 0x0 - dummy sync flag']
  #allocation9 [shape = 's32[]', space=sflag, size = 0x4, offset = 0, fixed_abs, tag = 'sflag constant byte address 0x0 - dummy sync flag']
  #allocation10 [shape = 's32[]', space=sflag, size = 0x4, offset = 0, fixed_abs, tag = 'sflag constant byte address 0x0 - dummy sync flag']
  #allocation11 [shape = 's32[]', space=sflag, size = 0x4, offset = 0, fixed_abs, tag = 'sflag constant byte address 0x0 - dummy sync flag']
  #allocation12 [shape = 's32[]', space=sflag, size = 0x4, offset = 0, fixed_abs, tag = 'sflag constant byte address 0x0 - dummy sync flag']
  #allocation13 [shape = 's32[]', space=sflag, size = 0x4, offset = 0, fixed_abs, tag = 'sflag constant byte address 0x0 - dummy sync flag']
  #allocation14 [shape = 's32[]', space=sflag, size = 0x4, offset = 0, fixed_abs, tag = 'sflag constant byte address 0x0 - dummy sync flag']
  #allocation15 [shape = 's32[]', space=sflag, size = 0x4, offset = 0, fixed_abs, tag = 'sflag constant byte address 0x0 - dummy sync flag']
  #allocation16 [shape = 's32[]', space=sflag, size = 0x4, offset = 0, fixed_abs, tag = 'sflag constant byte address 0x0 - dummy sync flag']
  #allocation17 [shape = 's32[]', space=sflag, size = 0x4, offset = 0, fixed_abs, tag = 'sflag constant byte address 0x0 - dummy sync flag']
  #allocation18 [shape = 's32[]', space=sflag, size = 0x4, offset = 0, fixed_abs, tag = 'sflag constant byte address 0x0 - dummy sync flag']
  #allocation19 [shape = 's32[]', space=sflag, size = 0x4, offset = 0, fixed_abs, tag = 'sflag constant byte address 0x0 - dummy sync flag']
  #allocation20 [shape = 's32[]', space=sflag, size = 0x4, offset = 0, fixed_abs, tag = 'sflag constant byte address 0x0 - dummy sync flag']
  #allocation21 [shape = 's32[]', space=sflag, size = 0x4, offset = 0, fixed_abs, tag = 'sflag constant byte address 0x0 - dummy sync flag']
  #allocation22 [shape = 's32[]', space=sflag, size = 0x4, offset = 0, fixed_abs, tag = 'sflag constant byte address 0x0 - dummy sync flag']
  %s0 = inlined_call_operand.vmem [shape: s32[2,16], index: 0, kind: input, shape index: {}]
  %s1 = inlined_call_operand.vmem [shape: f32[50,64], index: 1, kind: input, shape index: {}]
  %s2 = inlined_call_operand.vmem [shape: bf16[5,64,128], index: 2, kind: input, shape index: {}]
  %s3 = inlined_call_operand.vmem [shape: f32[1,128], index: 3, kind: input, shape index: {}]
  %s4 = inlined_call_operand.vmem [shape: f32[16,128], index: 4, kind: input, shape index: {}]
  %s5 = inlined_call_operand.vmem [shape: f32[1,128], index: 5, kind: input, shape index: {}]
  %s6 = inlined_call_operand.<no memory space> [shape: f32[1,1], index: 6, kind: input, shape index: {}]
  %s7 = inlined_call_operand.vmem [shape: f32[2,1,128], index: 7, kind: output, shape index: {}]
  %s8 = sld [smem:[#allocation0]]
  $region533: #{cnn_forward.1} parent=0
    _
  %s10 = ssub.s32 1, %s8
  %s11 = scalar_select 0, %s10, %s8
  %s12 = sshll.u32 %s0, 4
  %s13 = int_to_ptr.vmem [resolvable:$true] %s12
  %15 = dma.vmem_to_smem %s13, 32, [#allocation5], [#allocation4]
  %v16 = vstv %s6
  %17 = vst [vmem:[#allocation6] sm:$0x1] %v16
  %18 = dma.done [#allocation4], 32
  %19 = sfence
  loop: start=0, step=1, limit=4
  $region2: #{cnn_forward.1} parent=0 // loop_pre_header
    _
  $region3: #{cnn_forward.1} parent=0 // loop_header
    %s21 = sphi 0, %s25
    %p22 = scmp.ge.s32.totalorder %s21, 4
    %s29 = sphi 0, %s29
    %s31 = sphi 0, %s29
    %s32 = sphi 0, %s31
    %s46 = sphi 0, %s32
    %s50 = sphi 0, %s50
    %s52 = sphi 0, %s50
    %s53 = sphi 0, %s52
    %s67 = sphi 0, %s53
    %s71 = sphi 0, %s71
    %s73 = sphi 0, %s71
    %s74 = sphi 0, %s73
    %s88 = sphi 0, %s74
    %s92 = sphi 0, %s92
    %s94 = sphi 0, %s92
    %s95 = sphi 0, %s94
    %s109 = sphi 0, %s95
    %s113 = sphi 0, %s113
    %s115 = sphi 0, %s113
    %s116 = sphi 0, %s115
    %s130 = sphi 0, %s116
    %s136 = sphi 0, %s138
    %s139 = sphi 0, %s136
    %s140 = sphi 0, %s139
    %s156 = sphi 0, %s140
  $region4: #{cnn_forward.1} parent=0 // loop_header_branch
    %24 = sbr.rel (%p22) target = $region8
  $region5: #{cnn_forward.1} parent=0 // loop_body
    %s26 = ssub.s32 %s21, 1
    %s27 = ssub.s32 %s21, 2
    %s28 = sadd.s32 %s21, 1
    %s30 = sadd.s32 %s29, 1
    %p33 = scmp.eq.s32.totalorder %s21, 1
    %p34 = scmp.ne.s32.totalorder %s29, %s31
    %p35 = scmp.eq.s32.totalorder %s21, 0
    %p36 = por %p34, %p35
    %p37 = scmp.ne.s32.totalorder %s29, %s31
    %p38 = scmp.eq.s32.totalorder %s26, 1
    %p39 = por %p37, %p38
    %p40 = scmp.ne.s32.totalorder %s31, %s32
    %p41 = scmp.eq.s32.totalorder %s26, 0
    %p42 = por %p40, %p41
    %p43 = scmp.ne.s32.totalorder %s31, %s32
    %p44 = scmp.eq.s32.totalorder %s27, 1
    %p45 = por %p43, %p44
    %p47 = scmp.ne.s32.totalorder %s32, %s46
    %p48 = scmp.eq.s32.totalorder %s27, 0
    %p49 = por %p47, %p48
    %s51 = sadd.s32 %s50, 1
    %p54 = scmp.eq.s32.totalorder %s21, 1
    %p55 = scmp.ne.s32.totalorder %s50, %s52
    %p56 = scmp.eq.s32.totalorder %s21, 0
    %p57 = por %p55, %p56
    %p58 = scmp.ne.s32.totalorder %s50, %s52
    %p59 = scmp.eq.s32.totalorder %s26, 1
    %p60 = por %p58, %p59
    %p61 = scmp.ne.s32.totalorder %s52, %s53
    %p62 = scmp.eq.s32.totalorder %s26, 0
    %p63 = por %p61, %p62
    %p64 = scmp.ne.s32.totalorder %s52, %s53
    %p65 = scmp.eq.s32.totalorder %s27, 1
    %p66 = por %p64, %p65
    %p68 = scmp.ne.s32.totalorder %s53, %s67
    %p69 = scmp.eq.s32.totalorder %s27, 0
    %p70 = por %p68, %p69
    %s72 = sadd.s32 %s71, 1
    %p75 = scmp.eq.s32.totalorder %s21, 1
    %p76 = scmp.ne.s32.totalorder %s71, %s73
    %p77 = scmp.eq.s32.totalorder %s21, 0
    %p78 = por %p76, %p77
    %p79 = scmp.ne.s32.totalorder %s71, %s73
    %p80 = scmp.eq.s32.totalorder %s26, 1
    %p81 = por %p79, %p80
    %p82 = scmp.ne.s32.totalorder %s73, %s74
    %p83 = scmp.eq.s32.totalorder %s26, 0
    %p84 = por %p82, %p83
    %p85 = scmp.ne.s32.totalorder %s73, %s74
    %p86 = scmp.eq.s32.totalorder %s27, 1
    %p87 = por %p85, %p86
    %p89 = scmp.ne.s32.totalorder %s74, %s88
    %p90 = scmp.eq.s32.totalorder %s27, 0
    %p91 = por %p89, %p90
    %s93 = sadd.s32 %s92, 1
    %p96 = scmp.eq.s32.totalorder %s21, 1
    %p97 = scmp.ne.s32.totalorder %s92, %s94
    %p98 = scmp.eq.s32.totalorder %s21, 0
    %p99 = por %p97, %p98
    %p100 = scmp.ne.s32.totalorder %s92, %s94
    %p101 = scmp.eq.s32.totalorder %s26, 1
    %p102 = por %p100, %p101
    %p103 = scmp.ne.s32.totalorder %s94, %s95
    %p104 = scmp.eq.s32.totalorder %s26, 0
    %p105 = por %p103, %p104
    %p106 = scmp.ne.s32.totalorder %s94, %s95
    %p107 = scmp.eq.s32.totalorder %s27, 1
    %p108 = por %p106, %p107
    %p110 = scmp.ne.s32.totalorder %s95, %s109
    %p111 = scmp.eq.s32.totalorder %s27, 0
    %p112 = por %p110, %p111
    %s114 = sadd.s32 %s113, 1
    %p117 = scmp.eq.s32.totalorder %s21, 1
    %p118 = scmp.ne.s32.totalorder %s113, %s115
    %p119 = scmp.eq.s32.totalorder %s21, 0
    %p120 = por %p118, %p119
    %p121 = scmp.ne.s32.totalorder %s113, %s115
    %p122 = scmp.eq.s32.totalorder %s26, 1
    %p123 = por %p121, %p122
    %p124 = scmp.ne.s32.totalorder %s115, %s116
    %p125 = scmp.eq.s32.totalorder %s26, 0
    %p126 = por %p124, %p125
    %p127 = scmp.ne.s32.totalorder %s115, %s116
    %p128 = scmp.eq.s32.totalorder %s27, 1
    %p129 = por %p127, %p128
    %p131 = scmp.ne.s32.totalorder %s116, %s130
    %p132 = scmp.eq.s32.totalorder %s27, 0
    %p133 = por %p131, %p132
    %s134 = ssub.s32 %s21, %s28
    %p135 = scmp.eq.s32.totalorder %s134, 0
    %s137 = sadd.s32 %s136, 1
    %s138 = scalar_select %p135, %s136, %s137
    %p141 = pneg %p135
    %p142 = scmp.eq.s32.totalorder %s21, 1
    %p143 = por %p141, %p142
    %p144 = scmp.ne.s32.totalorder %s136, %s139
    %p145 = scmp.eq.s32.totalorder %s21, 0
    %p146 = por %p144, %p145
    %p147 = scmp.ne.s32.totalorder %s136, %s139
    %p148 = scmp.eq.s32.totalorder %s26, 1
    %p149 = por %p147, %p148
    %p150 = scmp.ne.s32.totalorder %s139, %s140
    %p151 = scmp.eq.s32.totalorder %s26, 0
    %p152 = por %p150, %p151
    %p153 = scmp.ne.s32.totalorder %s139, %s140
    %p154 = scmp.eq.s32.totalorder %s27, 1
    %p155 = por %p153, %p154
    %p157 = scmp.ne.s32.totalorder %s140, %s156
    %p158 = scmp.eq.s32.totalorder %s27, 0
    %p159 = por %p157, %p158
    %p160 = scmp.le.s32.totalorder 1, %s21
    %p161 = scmp.lt.s32.totalorder %s21, 3
    %p162 = pnand %p160, %p161
    %p163 = pneg %p162
    // Predicated region
    $region9: #{cnn_forward.1} parent=5 // pred_check
      _
    $region10: #{cnn_forward.1} parent=5 // pred_check_branch
      %165 = sbr.rel (%p162) target = $region12
    $region11: #{cnn_forward.1} parent=5 // pred_region
      %s166 = ssub.s32 %s21, 1
      // Predicated region
      $region13: #{cnn_forward.1} parent=11 // pred_check
        %p167 = pneg %p42
      $region14: #{cnn_forward.1} parent=11 // pred_check_branch
        %169 = sbr.rel (%p167) target = $region16
      $region15: #{cnn_forward.1} parent=11 // pred_region
        _
      $region16: #{cnn_forward.1} parent=11 // pred_fallthru
        _
      // Predicated region
      $region17: #{cnn_forward.1} parent=11 // pred_check
        %p170 = pneg %p63
      $region18: #{cnn_forward.1} parent=11 // pred_check_branch
        %172 = sbr.rel (%p170) target = $region20
      $region19: #{cnn_forward.1} parent=11 // pred_region
        _
      $region20: #{cnn_forward.1} parent=11 // pred_fallthru
        _
      // Predicated region
      $region21: #{cnn_forward.1} parent=11 // pred_check
        %p173 = pneg %p84
      $region22: #{cnn_forward.1} parent=11 // pred_check_branch
        %175 = sbr.rel (%p173) target = $region24
      $region23: #{cnn_forward.1} parent=11 // pred_region
        _
      $region24: #{cnn_forward.1} parent=11 // pred_fallthru
        _
      // Predicated region
      $region25: #{cnn_forward.1} parent=11 // pred_check
        %p176 = pneg %p105
      $region26: #{cnn_forward.1} parent=11 // pred_check_branch
        %178 = sbr.rel (%p176) target = $region28
      $region27: #{cnn_forward.1} parent=11 // pred_region
        _
      $region28: #{cnn_forward.1} parent=11 // pred_fallthru
        _
      // Predicated region
      $region29: #{cnn_forward.1} parent=11 // pred_check
        %p179 = pneg %p126
      $region30: #{cnn_forward.1} parent=11 // pred_check_branch
        %181 = sbr.rel (%p179) target = $region32
      $region31: #{cnn_forward.1} parent=11 // pred_region
        _
      $region32: #{cnn_forward.1} parent=11 // pred_fallthru
        _
    $region12: #{cnn_forward.1} parent=5 // pred_fallthru
      _
    %p182 = scmp.lt.s32.totalorder %s21, 2
    // Predicated region
    $region33: #{cnn_forward.1} parent=5 // pred_check
      %p183 = pneg %p182
    $region34: #{cnn_forward.1} parent=5 // pred_check_branch
      %185 = sbr.rel (%p183) target = $region36
    $region35: #{cnn_forward.1} parent=5 // pred_region
      _
    $region36: #{cnn_forward.1} parent=5 // pred_fallthru
      _
    %p186 = scmp.le.s32.totalorder 1, %s21
    %p187 = scmp.lt.s32.totalorder %s21, 3
    %p188 = pnand %p186, %p187
    %p189 = pneg %p188
    // Predicated region
    $region37: #{cnn_forward.1} parent=5 // pred_check
      _
    $region38: #{cnn_forward.1} parent=5 // pred_check_branch
      %191 = sbr.rel (%p188) target = $region40
    $region39: #{cnn_forward.1} parent=5 // pred_region
      %s192 = ssub.s32 %s21, 1
      %p193 = pneg %p42
      %p194 = pneg %p39
      %p195 = pneg %p63
      %p196 = pneg %p60
      %p197 = pneg %p84
      %p198 = pneg %p81
      %p199 = pneg %p105
      %p200 = pneg %p102
      %p201 = pneg %p126
      %p202 = pneg %p123
      %p203 = pneg %p152
      %p204 = pneg %p149
      %p205 = scmp.lt.s32.totalorder %s26, 1
      %s206 = scalar_select %p205, %s26, 1
      %s207 = scalar_lea.vmem %s7, %s206
      %p208 = scmp.lt.s32.totalorder %s26, 1
      %s209 = scalar_select %p208, %s26, 1
      %s210 = scalar_lea.vmem %s7, %s209
      %vm212 = vcmask 523264
      %213 = vst.msk [vmem:[#allocation2 + $0x10] sm:$0xff] %vm212, 0.0
      %s214 = smul.u32 %s26, 128
      %s215 = sld [smem:[#allocation5 + %s214]]
      %s216 = scalar_lea.vmem %s1, %s215
      %p218 = scmp.lt.u32.totalorder 1, 8
      %p219 = pneg %p218
      // Predicated region
      $region41: #{cnn_forward.1} parent=39 // pred_check
        _
      $region42: #{cnn_forward.1} parent=39 // pred_check_branch
        %221 = sbr.rel (%p218) target = $region44
      $region43: #{cnn_forward.1} parent=39 // pred_region
        %s237 = sand.u32 1, 7
        %p238 = scmp.eq.s32.totalorder %s237, 0
        %p239 = pneg %p238
        // Predicated region
        $region56: #{cnn_forward.1} parent=43 // pred_check
          _
        $region57: #{cnn_forward.1} parent=43 // pred_check_branch
          %241 = sbr.rel (%p238) target = $region59
        $region58: #{cnn_forward.1} parent=43 // pred_region
          %s242 = sand.u32 1, 7
          %s243 = ssub.s32 1, %s242
          %s244 = scalar_lea.vmem %s216, %s243
          %s245 = ssub.s32 1, %s242
          %s246 = scalar_lea.vmem [#allocation2], %s245
          %s247 = sshll.u32 1, %s242
          %s248 = ssub.s32 %s247, 1
          loop: start=0, step=1, limit=1
          $region60: #{cnn_forward.1} parent=58 // loop_pre_header
            _
          $region61: #{cnn_forward.1} parent=58 // loop_header
            %s250 = sphi 0, %s254
            %p251 = scmp.ge.s32.totalorder %s250, 1
            %s255 = sphi %s244, %s244
            %s256 = sphi %s246, %s246
          $region62: #{cnn_forward.1} parent=58 // loop_header_branch
            %253 = sbr.rel (%p251) target = $region66
          $region63: #{cnn_forward.1} parent=58 // loop_body
            %v257 = vld [vmem:[%s255] sm:%s248]
            %258 = vst [vmem:[%s256] sm:%s248] %v257
          $region64: #{cnn_forward.1} parent=58 // loop_footer
            %s254 = sadd.s32 1, %s250
          $region65: #{cnn_forward.1} parent=58 // loop_footer_branch
            %249 = sbr.rel target = $region61
          $region66: #{cnn_forward.1} parent=58 // loop_exit
            _
        $region59: #{cnn_forward.1} parent=43 // pred_fallthru
          _
      $region44: #{cnn_forward.1} parent=39 // pred_fallthru
        _
      // Predicated region
      $region45: #{cnn_forward.1} parent=39 // pred_check
        %p222 = pneg %p218
      $region46: #{cnn_forward.1} parent=39 // pred_check_branch
        %224 = sbr.rel (%p222) target = $region48
      $region47: #{cnn_forward.1} parent=39 // pred_region
        %s225 = sshll.u32 1, 1
        %s226 = ssub.s32 %s225, 1
        loop: start=0, step=1, limit=1
        $region49: #{cnn_forward.1} parent=47 // loop_pre_header
          _
        $region50: #{cnn_forward.1} parent=47 // loop_header
          %s228 = sphi 0, %s232
          %p229 = scmp.ge.s32.totalorder %s228, 1
          %s233 = sphi %s216, %s216
          %s234 = sphi [#allocation2], [#allocation2]
        $region51: #{cnn_forward.1} parent=47 // loop_header_branch
          %231 = sbr.rel (%p229) target = $region55
        $region52: #{cnn_forward.1} parent=47 // loop_body
          %v235 = vld [vmem:[%s233] sm:%s226]
          %236 = vst [vmem:[%s234] sm:%s226] %v235
        $region53: #{cnn_forward.1} parent=47 // loop_footer
          %s232 = sadd.s32 1, %s228
        $region54: #{cnn_forward.1} parent=47 // loop_footer_branch
          %227 = sbr.rel target = $region50
        $region55: #{cnn_forward.1} parent=47 // loop_exit
          _
      $region48: #{cnn_forward.1} parent=39 // pred_fallthru
        _
      // Predicated region
      $region67: #{cnn_forward.1} parent=39 // pred_check
        _
      $region68: #{cnn_forward.1} parent=39 // pred_check_branch
        %261 = sbr.rel (0) target = $region70
      $region69: #{cnn_forward.1} parent=39 // pred_region
        %262 = vsyncadd [#allocation3], 16
      $region70: #{cnn_forward.1} parent=39 // pred_fallthru
        _
      %s263 = sadd.s32 %s214, 1
      %s264 = sld [smem:[#allocation5 + %s263]]
      %s265 = scalar_lea.vmem %s1, %s264
      %s266 = scalar_lea.vmem [#allocation2], 1
      %s267 = scalar_lea.sflag [#allocation3], 1
      %p269 = scmp.lt.u32.totalorder 1, 8
      %p270 = pneg %p269
      // Predicated region
      $region71: #{cnn_forward.1} parent=39 // pred_check
        _
      $region72: #{cnn_forward.1} parent=39 // pred_check_branch
        %272 = sbr.rel (%p269) target = $region74
      $region73: #{cnn_forward.1} parent=39 // pred_region
        %s288 = sand.u32 1, 7
        %p289 = scmp.eq.s32.totalorder %s288, 0
        %p290 = pneg %p289
        // Predicated region
        $region86: #{cnn_forward.1} parent=73 // pred_check
          _
        $region87: #{cnn_forward.1} parent=73 // pred_check_branch
          %292 = sbr.rel (%p289) target = $region89
        $region88: #{cnn_forward.1} parent=73 // pred_region
          %s293 = sand.u32 1, 7
          %s294 = ssub.s32 1, %s293
          %s295 = scalar_lea.vmem %s265, %s294
          %s296 = ssub.s32 1, %s293
          %s297 = scalar_lea.vmem %s266, %s296 [#allocation2]
          %s298 = sshll.u32 1, %s293
          %s299 = ssub.s32 %s298, 1
          loop: start=0, step=1, limit=1
          $region90: #{cnn_forward.1} parent=88 // loop_pre_header
            _
          $region91: #{cnn_forward.1} parent=88 // loop_header
            %s301 = sphi 0, %s305
            %p302 = scmp.ge.s32.totalorder %s301, 1
            %s306 = sphi %s295, %s295
            %s307 = sphi %s297, %s297
          $region92: #{cnn_forward.1} parent=88 // loop_header_branch
            %304 = sbr.rel (%p302) target = $region96
          $region93: #{cnn_forward.1} parent=88 // loop_body
            %v308 = vld [vmem:[%s306] sm:%s299]
            %309 = vst [vmem:[%s307] sm:%s299] %v308
          $region94: #{cnn_forward.1} parent=88 // loop_footer
            %s305 = sadd.s32 1, %s301
          $region95: #{cnn_forward.1} parent=88 // loop_footer_branch
            %300 = sbr.rel target = $region91
          $region96: #{cnn_forward.1} parent=88 // loop_exit
            _
        $region89: #{cnn_forward.1} parent=73 // pred_fallthru
          _
      $region74: #{cnn_forward.1} parent=39 // pred_fallthru
        _
      // Predicated region
      $region75: #{cnn_forward.1} parent=39 // pred_check
        %p273 = pneg %p269
      $region76: #{cnn_forward.1} parent=39 // pred_check_branch
        %275 = sbr.rel (%p273) target = $region78
      $region77: #{cnn_forward.1} parent=39 // pred_region
        %s276 = sshll.u32 1, 1
        %s277 = ssub.s32 %s276, 1
        loop: start=0, step=1, limit=1
        $region79: #{cnn_forward.1} parent=77 // loop_pre_header
          _
        $region80: #{cnn_forward.1} parent=77 // loop_header
          %s279 = sphi 0, %s283
          %p280 = scmp.ge.s32.totalorder %s279, 1
          %s284 = sphi %s265, %s265
          %s285 = sphi %s266, %s266
        $region81: #{cnn_forward.1} parent=77 // loop_header_branch
          %282 = sbr.rel (%p280) target = $region85
        $region82: #{cnn_forward.1} parent=77 // loop_body
          %v286 = vld [vmem:[%s284] sm:%s277]
          %287 = vst [vmem:[%s285] sm:%s277] %v286
        $region83: #{cnn_forward.1} parent=77 // loop_footer
          %s283 = sadd.s32 1, %s279
        $region84: #{cnn_forward.1} parent=77 // loop_footer_branch
          %278 = sbr.rel target = $region80
        $region85: #{cnn_forward.1} parent=77 // loop_exit
          _
      $region78: #{cnn_forward.1} parent=39 // pred_fallthru
        _
      // Predicated region
      $region97: #{cnn_forward.1} parent=39 // pred_check
        _
      $region98: #{cnn_forward.1} parent=39 // pred_check_branch
        %312 = sbr.rel (0) target = $region100
      $region99: #{cnn_forward.1} parent=39 // pred_region
        %313 = vsyncadd %s267, 16
      $region100: #{cnn_forward.1} parent=39 // pred_fallthru
        _
      %s314 = sadd.s32 %s214, 2
      %s315 = sld [smem:[#allocation5 + %s314]]
      %s316 = scalar_lea.vmem %s1, %s315
      %s317 = scalar_lea.vmem [#allocation2], 2
      %s318 = scalar_lea.sflag [#allocation3], 2
      %p320 = scmp.lt.u32.totalorder 1, 8
      %p321 = pneg %p320
      // Predicated region
      $region101: #{cnn_forward.1} parent=39 // pred_check
        _
      $region102: #{cnn_forward.1} parent=39 // pred_check_branch
        %323 = sbr.rel (%p320) target = $region104
      $region103: #{cnn_forward.1} parent=39 // pred_region
        %s339 = sand.u32 1, 7
        %p340 = scmp.eq.s32.totalorder %s339, 0
        %p341 = pneg %p340
        // Predicated region
        $region116: #{cnn_forward.1} parent=103 // pred_check
          _
        $region117: #{cnn_forward.1} parent=103 // pred_check_branch
          %343 = sbr.rel (%p340) target = $region119
        $region118: #{cnn_forward.1} parent=103 // pred_region
          %s344 = sand.u32 1, 7
          %s345 = ssub.s32 1, %s344
          %s346 = scalar_lea.vmem %s316, %s345
          %s347 = ssub.s32 1, %s344
          %s348 = scalar_lea.vmem %s317, %s347 [#allocation2]
          %s349 = sshll.u32 1, %s344
          %s350 = ssub.s32 %s349, 1
          loop: start=0, step=1, limit=1
          $region120: #{cnn_forward.1} parent=118 // loop_pre_header
            _
          $region121: #{cnn_forward.1} parent=118 // loop_header
            %s352 = sphi 0, %s356
            %p353 = scmp.ge.s32.totalorder %s352, 1
            %s357 = sphi %s346, %s346
            %s358 = sphi %s348, %s348
          $region122: #{cnn_forward.1} parent=118 // loop_header_branch
            %355 = sbr.rel (%p353) target = $region126
          $region123: #{cnn_forward.1} parent=118 // loop_body
            %v359 = vld [vmem:[%s357] sm:%s350]
            %360 = vst [vmem:[%s358] sm:%s350] %v359
          $region124: #{cnn_forward.1} parent=118 // loop_footer
            %s356 = sadd.s32 1, %s352
          $region125: #{cnn_forward.1} parent=118 // loop_footer_branch
            %351 = sbr.rel target = $region121
          $region126: #{cnn_forward.1} parent=118 // loop_exit
            _
        $region119: #{cnn_forward.1} parent=103 // pred_fallthru
          _
      $region104: #{cnn_forward.1} parent=39 // pred_fallthru
        _
      // Predicated region
      $region105: #{cnn_forward.1} parent=39 // pred_check
        %p324 = pneg %p320
      $region106: #{cnn_forward.1} parent=39 // pred_check_branch
        %326 = sbr.rel (%p324) target = $region108
      $region107: #{cnn_forward.1} parent=39 // pred_region
        %s327 = sshll.u32 1, 1
        %s328 = ssub.s32 %s327, 1
        loop: start=0, step=1, limit=1
        $region109: #{cnn_forward.1} parent=107 // loop_pre_header
          _
        $region110: #{cnn_forward.1} parent=107 // loop_header
          %s330 = sphi 0, %s334
          %p331 = scmp.ge.s32.totalorder %s330, 1
          %s335 = sphi %s316, %s316
          %s336 = sphi %s317, %s317
        $region111: #{cnn_forward.1} parent=107 // loop_header_branch
          %333 = sbr.rel (%p331) target = $region115
        $region112: #{cnn_forward.1} parent=107 // loop_body
          %v337 = vld [vmem:[%s335] sm:%s328]
          %338 = vst [vmem:[%s336] sm:%s328] %v337
        $region113: #{cnn_forward.1} parent=107 // loop_footer
          %s334 = sadd.s32 1, %s330
        $region114: #{cnn_forward.1} parent=107 // loop_footer_branch
          %329 = sbr.rel target = $region110
        $region115: #{cnn_forward.1} parent=107 // loop_exit
          _
      $region108: #{cnn_forward.1} parent=39 // pred_fallthru
        _
      // Predicated region
      $region127: #{cnn_forward.1} parent=39 // pred_check
        _
      $region128: #{cnn_forward.1} parent=39 // pred_check_branch
        %363 = sbr.rel (0) target = $region130
      $region129: #{cnn_forward.1} parent=39 // pred_region
        %364 = vsyncadd %s318, 16
      $region130: #{cnn_forward.1} parent=39 // pred_fallthru
        _
      %s365 = sadd.s32 %s214, 3
      %s366 = sld [smem:[#allocation5 + %s365]]
      %s367 = scalar_lea.vmem %s1, %s366
      %s368 = scalar_lea.vmem [#allocation2], 3
      %s369 = scalar_lea.sflag [#allocation3], 3
      %p371 = scmp.lt.u32.totalorder 1, 8
      %p372 = pneg %p371
      // Predicated region
      $region131: #{cnn_forward.1} parent=39 // pred_check
        _
      $region132: #{cnn_forward.1} parent=39 // pred_check_branch
        %374 = sbr.rel (%p371) target = $region134
      $region133: #{cnn_forward.1} parent=39 // pred_region
        %s390 = sand.u32 1, 7
        %p391 = scmp.eq.s32.totalorder %s390, 0
        %p392 = pneg %p391
        // Predicated region
        $region146: #{cnn_forward.1} parent=133 // pred_check
          _
        $region147: #{cnn_forward.1} parent=133 // pred_check_branch
          %394 = sbr.rel (%p391) target = $region149
        $region148: #{cnn_forward.1} parent=133 // pred_region
          %s395 = sand.u32 1, 7
          %s396 = ssub.s32 1, %s395
          %s397 = scalar_lea.vmem %s367, %s396
          %s398 = ssub.s32 1, %s395
          %s399 = scalar_lea.vmem %s368, %s398 [#allocation2]
          %s400 = sshll.u32 1, %s395
          %s401 = ssub.s32 %s400, 1
          loop: start=0, step=1, limit=1
          $region150: #{cnn_forward.1} parent=148 // loop_pre_header
            _
          $region151: #{cnn_forward.1} parent=148 // loop_header
            %s403 = sphi 0, %s407
            %p404 = scmp.ge.s32.totalorder %s403, 1
            %s408 = sphi %s397, %s397
            %s409 = sphi %s399, %s399
          $region152: #{cnn_forward.1} parent=148 // loop_header_branch
            %406 = sbr.rel (%p404) target = $region156
          $region153: #{cnn_forward.1} parent=148 // loop_body
            %v410 = vld [vmem:[%s408] sm:%s401]
            %411 = vst [vmem:[%s409] sm:%s401] %v410
          $region154: #{cnn_forward.1} parent=148 // loop_footer
            %s407 = sadd.s32 1, %s403
          $region155: #{cnn_forward.1} parent=148 // loop_footer_branch
            %402 = sbr.rel target = $region151
          $region156: #{cnn_forward.1} parent=148 // loop_exit
            _
        $region149: #{cnn_forward.1} parent=133 // pred_fallthru
          _
      $region134: #{cnn_forward.1} parent=39 // pred_fallthru
        _
      // Predicated region
      $region135: #{cnn_forward.1} parent=39 // pred_check
        %p375 = pneg %p371
      $region136: #{cnn_forward.1} parent=39 // pred_check_branch
        %377 = sbr.rel (%p375) target = $region138
      $region137: #{cnn_forward.1} parent=39 // pred_region
        %s378 = sshll.u32 1, 1
        %s379 = ssub.s32 %s378, 1
        loop: start=0, step=1, limit=1
        $region139: #{cnn_forward.1} parent=137 // loop_pre_header
          _
        $region140: #{cnn_forward.1} parent=137 // loop_header
          %s381 = sphi 0, %s385
          %p382 = scmp.ge.s32.totalorder %s381, 1
          %s386 = sphi %s367, %s367
          %s387 = sphi %s368, %s368
        $region141: #{cnn_forward.1} parent=137 // loop_header_branch
          %384 = sbr.rel (%p382) target = $region145
        $region142: #{cnn_forward.1} parent=137 // loop_body
          %v388 = vld [vmem:[%s386] sm:%s379]
          %389 = vst [vmem:[%s387] sm:%s379] %v388
        $region143: #{cnn_forward.1} parent=137 // loop_footer
          %s385 = sadd.s32 1, %s381
        $region144: #{cnn_forward.1} parent=137 // loop_footer_branch
          %380 = sbr.rel target = $region140
        $region145: #{cnn_forward.1} parent=137 // loop_exit
          _
      $region138: #{cnn_forward.1} parent=39 // pred_fallthru
        _
      // Predicated region
      $region157: #{cnn_forward.1} parent=39 // pred_check
        _
      $region158: #{cnn_forward.1} parent=39 // pred_check_branch
        %414 = sbr.rel (0) target = $region160
      $region159: #{cnn_forward.1} parent=39 // pred_region
        %415 = vsyncadd %s369, 16
      $region160: #{cnn_forward.1} parent=39 // pred_fallthru
        _
      %s416 = sadd.s32 %s214, 4
      %s417 = sld [smem:[#allocation5 + %s416]]
      %s418 = scalar_lea.vmem %s1, %s417
      %s419 = scalar_lea.vmem [#allocation2], 4
      %s420 = scalar_lea.sflag [#allocation3], 4
      %p422 = scmp.lt.u32.totalorder 1, 8
      %p423 = pneg %p422
      // Predicated region
      $region161: #{cnn_forward.1} parent=39 // pred_check
        _
      $region162: #{cnn_forward.1} parent=39 // pred_check_branch
        %425 = sbr.rel (%p422) target = $region164
      $region163: #{cnn_forward.1} parent=39 // pred_region
        %s441 = sand.u32 1, 7
        %p442 = scmp.eq.s32.totalorder %s441, 0
        %p443 = pneg %p442
        // Predicated region
        $region176: #{cnn_forward.1} parent=163 // pred_check
          _
        $region177: #{cnn_forward.1} parent=163 // pred_check_branch
          %445 = sbr.rel (%p442) target = $region179
        $region178: #{cnn_forward.1} parent=163 // pred_region
          %s446 = sand.u32 1, 7
          %s447 = ssub.s32 1, %s446
          %s448 = scalar_lea.vmem %s418, %s447
          %s449 = ssub.s32 1, %s446
          %s450 = scalar_lea.vmem %s419, %s449 [#allocation2]
          %s451 = sshll.u32 1, %s446
          %s452 = ssub.s32 %s451, 1
          loop: start=0, step=1, limit=1
          $region180: #{cnn_forward.1} parent=178 // loop_pre_header
            _
          $region181: #{cnn_forward.1} parent=178 // loop_header
            %s454 = sphi 0, %s458
            %p455 = scmp.ge.s32.totalorder %s454, 1
            %s459 = sphi %s448, %s448
            %s460 = sphi %s450, %s450
          $region182: #{cnn_forward.1} parent=178 // loop_header_branch
            %457 = sbr.rel (%p455) target = $region186
          $region183: #{cnn_forward.1} parent=178 // loop_body
            %v461 = vld [vmem:[%s459] sm:%s452]
            %462 = vst [vmem:[%s460] sm:%s452] %v461
          $region184: #{cnn_forward.1} parent=178 // loop_footer
            %s458 = sadd.s32 1, %s454
          $region185: #{cnn_forward.1} parent=178 // loop_footer_branch
            %453 = sbr.rel target = $region181
          $region186: #{cnn_forward.1} parent=178 // loop_exit
            _
        $region179: #{cnn_forward.1} parent=163 // pred_fallthru
          _
      $region164: #{cnn_forward.1} parent=39 // pred_fallthru
        _
      // Predicated region
      $region165: #{cnn_forward.1} parent=39 // pred_check
        %p426 = pneg %p422
      $region166: #{cnn_forward.1} parent=39 // pred_check_branch
        %428 = sbr.rel (%p426) target = $region168
      $region167: #{cnn_forward.1} parent=39 // pred_region
        %s429 = sshll.u32 1, 1
        %s430 = ssub.s32 %s429, 1
        loop: start=0, step=1, limit=1
        $region169: #{cnn_forward.1} parent=167 // loop_pre_header
          _
        $region170: #{cnn_forward.1} parent=167 // loop_header
          %s432 = sphi 0, %s436
          %p433 = scmp.ge.s32.totalorder %s432, 1
          %s437 = sphi %s418, %s418
          %s438 = sphi %s419, %s419
        $region171: #{cnn_forward.1} parent=167 // loop_header_branch
          %435 = sbr.rel (%p433) target = $region175
        $region172: #{cnn_forward.1} parent=167 // loop_body
          %v439 = vld [vmem:[%s437] sm:%s430]
          %440 = vst [vmem:[%s438] sm:%s430] %v439
        $region173: #{cnn_forward.1} parent=167 // loop_footer
          %s436 = sadd.s32 1, %s432
        $region174: #{cnn_forward.1} parent=167 // loop_footer_branch
          %431 = sbr.rel target = $region170
        $region175: #{cnn_forward.1} parent=167 // loop_exit
          _
      $region168: #{cnn_forward.1} parent=39 // pred_fallthru
        _
      // Predicated region
      $region187: #{cnn_forward.1} parent=39 // pred_check
        _
      $region188: #{cnn_forward.1} parent=39 // pred_check_branch
        %465 = sbr.rel (0) target = $region190
      $region189: #{cnn_forward.1} parent=39 // pred_region
        %466 = vsyncadd %s420, 16
      $region190: #{cnn_forward.1} parent=39 // pred_fallthru
        _
      %s467 = sadd.s32 %s214, 5
      %s468 = sld [smem:[#allocation5 + %s467]]
      %s469 = scalar_lea.vmem %s1, %s468
      %s470 = scalar_lea.vmem [#allocation2], 5
      %s471 = scalar_lea.sflag [#allocation3], 5
      %p473 = scmp.lt.u32.totalorder 1, 8
      %p474 = pneg %p473
      // Predicated region
      $region191: #{cnn_forward.1} parent=39 // pred_check
        _
      $region192: #{cnn_forward.1} parent=39 // pred_check_branch
        %476 = sbr.rel (%p473) target = $region194
      $region193: #{cnn_forward.1} parent=39 // pred_region
        %s492 = sand.u32 1, 7
        %p493 = scmp.eq.s32.totalorder %s492, 0
        %p494 = pneg %p493
        // Predicated region
        $region206: #{cnn_forward.1} parent=193 // pred_check
          _
        $region207: #{cnn_forward.1} parent=193 // pred_check_branch
          %496 = sbr.rel (%p493) target = $region209
        $region208: #{cnn_forward.1} parent=193 // pred_region
          %s497 = sand.u32 1, 7
          %s498 = ssub.s32 1, %s497
          %s499 = scalar_lea.vmem %s469, %s498
          %s500 = ssub.s32 1, %s497
          %s501 = scalar_lea.vmem %s470, %s500 [#allocation2]
          %s502 = sshll.u32 1, %s497
          %s503 = ssub.s32 %s502, 1
          loop: start=0, step=1, limit=1
          $region210: #{cnn_forward.1} parent=208 // loop_pre_header
            _
          $region211: #{cnn_forward.1} parent=208 // loop_header
            %s505 = sphi 0, %s509
            %p506 = scmp.ge.s32.totalorder %s505, 1
            %s510 = sphi %s499, %s499
            %s511 = sphi %s501, %s501
          $region212: #{cnn_forward.1} parent=208 // loop_header_branch
            %508 = sbr.rel (%p506) target = $region216
          $region213: #{cnn_forward.1} parent=208 // loop_body
            %v512 = vld [vmem:[%s510] sm:%s503]
            %513 = vst [vmem:[%s511] sm:%s503] %v512
          $region214: #{cnn_forward.1} parent=208 // loop_footer
            %s509 = sadd.s32 1, %s505
          $region215: #{cnn_forward.1} parent=208 // loop_footer_branch
            %504 = sbr.rel target = $region211
          $region216: #{cnn_forward.1} parent=208 // loop_exit
            _
        $region209: #{cnn_forward.1} parent=193 // pred_fallthru
          _
      $region194: #{cnn_forward.1} parent=39 // pred_fallthru
        _
      // Predicated region
      $region195: #{cnn_forward.1} parent=39 // pred_check
        %p477 = pneg %p473
      $region196: #{cnn_forward.1} parent=39 // pred_check_branch
        %479 = sbr.rel (%p477) target = $region198
      $region197: #{cnn_forward.1} parent=39 // pred_region
        %s480 = sshll.u32 1, 1
        %s481 = ssub.s32 %s480, 1
        loop: start=0, step=1, limit=1
        $region199: #{cnn_forward.1} parent=197 // loop_pre_header
          _
        $region200: #{cnn_forward.1} parent=197 // loop_header
          %s483 = sphi 0, %s487
          %p484 = scmp.ge.s32.totalorder %s483, 1
          %s488 = sphi %s469, %s469
          %s489 = sphi %s470, %s470
        $region201: #{cnn_forward.1} parent=197 // loop_header_branch
          %486 = sbr.rel (%p484) target = $region205
        $region202: #{cnn_forward.1} parent=197 // loop_body
          %v490 = vld [vmem:[%s488] sm:%s481]
          %491 = vst [vmem:[%s489] sm:%s481] %v490
        $region203: #{cnn_forward.1} parent=197 // loop_footer
          %s487 = sadd.s32 1, %s483
        $region204: #{cnn_forward.1} parent=197 // loop_footer_branch
          %482 = sbr.rel target = $region200
        $region205: #{cnn_forward.1} parent=197 // loop_exit
          _
      $region198: #{cnn_forward.1} parent=39 // pred_fallthru
        _
      // Predicated region
      $region217: #{cnn_forward.1} parent=39 // pred_check
        _
      $region218: #{cnn_forward.1} parent=39 // pred_check_branch
        %516 = sbr.rel (0) target = $region220
      $region219: #{cnn_forward.1} parent=39 // pred_region
        %517 = vsyncadd %s471, 16
      $region220: #{cnn_forward.1} parent=39 // pred_fallthru
        _
      %s518 = sadd.s32 %s214, 6
      %s519 = sld [smem:[#allocation5 + %s518]]
      %s520 = scalar_lea.vmem %s1, %s519
      %s521 = scalar_lea.vmem [#allocation2], 6
      %s522 = scalar_lea.sflag [#allocation3], 6
      %p524 = scmp.lt.u32.totalorder 1, 8
      %p525 = pneg %p524
      // Predicated region
      $region221: #{cnn_forward.1} parent=39 // pred_check
        _
      $region222: #{cnn_forward.1} parent=39 // pred_check_branch
        %527 = sbr.rel (%p524) target = $region224
      $region223: #{cnn_forward.1} parent=39 // pred_region
        %s543 = sand.u32 1, 7
        %p544 = scmp.eq.s32.totalorder %s543, 0
        %p545 = pneg %p544
        // Predicated region
        $region236: #{cnn_forward.1} parent=223 // pred_check
          _
        $region237: #{cnn_forward.1} parent=223 // pred_check_branch
          %547 = sbr.rel (%p544) target = $region239
        $region238: #{cnn_forward.1} parent=223 // pred_region
          %s548 = sand.u32 1, 7
          %s549 = ssub.s32 1, %s548
          %s550 = scalar_lea.vmem %s520, %s549
          %s551 = ssub.s32 1, %s548
          %s552 = scalar_lea.vmem %s521, %s551 [#allocation2]
          %s553 = sshll.u32 1, %s548
          %s554 = ssub.s32 %s553, 1
          loop: start=0, step=1, limit=1
          $region240: #{cnn_forward.1} parent=238 // loop_pre_header
            _
          $region241: #{cnn_forward.1} parent=238 // loop_header
            %s556 = sphi 0, %s560
            %p557 = scmp.ge.s32.totalorder %s556, 1
            %s561 = sphi %s550, %s550
            %s562 = sphi %s552, %s552
          $region242: #{cnn_forward.1} parent=238 // loop_header_branch
            %559 = sbr.rel (%p557) target = $region246
          $region243: #{cnn_forward.1} parent=238 // loop_body
            %v563 = vld [vmem:[%s561] sm:%s554]
            %564 = vst [vmem:[%s562] sm:%s554] %v563
          $region244: #{cnn_forward.1} parent=238 // loop_footer
            %s560 = sadd.s32 1, %s556
          $region245: #{cnn_forward.1} parent=238 // loop_footer_branch
            %555 = sbr.rel target = $region241
          $region246: #{cnn_forward.1} parent=238 // loop_exit
            _
        $region239: #{cnn_forward.1} parent=223 // pred_fallthru
          _
      $region224: #{cnn_forward.1} parent=39 // pred_fallthru
        _
      // Predicated region
      $region225: #{cnn_forward.1} parent=39 // pred_check
        %p528 = pneg %p524
      $region226: #{cnn_forward.1} parent=39 // pred_check_branch
        %530 = sbr.rel (%p528) target = $region228
      $region227: #{cnn_forward.1} parent=39 // pred_region
        %s531 = sshll.u32 1, 1
        %s532 = ssub.s32 %s531, 1
        loop: start=0, step=1, limit=1
        $region229: #{cnn_forward.1} parent=227 // loop_pre_header
          _
        $region230: #{cnn_forward.1} parent=227 // loop_header
          %s534 = sphi 0, %s538
          %p535 = scmp.ge.s32.totalorder %s534, 1
          %s539 = sphi %s520, %s520
          %s540 = sphi %s521, %s521
        $region231: #{cnn_forward.1} parent=227 // loop_header_branch
          %537 = sbr.rel (%p535) target = $region235
        $region232: #{cnn_forward.1} parent=227 // loop_body
          %v541 = vld [vmem:[%s539] sm:%s532]
          %542 = vst [vmem:[%s540] sm:%s532] %v541
        $region233: #{cnn_forward.1} parent=227 // loop_footer
          %s538 = sadd.s32 1, %s534
        $region234: #{cnn_forward.1} parent=227 // loop_footer_branch
          %533 = sbr.rel target = $region230
        $region235: #{cnn_forward.1} parent=227 // loop_exit
          _
      $region228: #{cnn_forward.1} parent=39 // pred_fallthru
        _
      // Predicated region
      $region247: #{cnn_forward.1} parent=39 // pred_check
        _
      $region248: #{cnn_forward.1} parent=39 // pred_check_branch
        %567 = sbr.rel (0) target = $region250
      $region249: #{cnn_forward.1} parent=39 // pred_region
        %568 = vsyncadd %s522, 16
      $region250: #{cnn_forward.1} parent=39 // pred_fallthru
        _
      %s569 = sadd.s32 %s214, 7
      %s570 = sld [smem:[#allocation5 + %s569]]
      %s571 = scalar_lea.vmem %s1, %s570
      %s572 = scalar_lea.vmem [#allocation2], 7
      %s573 = scalar_lea.sflag [#allocation3], 7
      %p575 = scmp.lt.u32.totalorder 1, 8
      %p576 = pneg %p575
      // Predicated region
      $region251: #{cnn_forward.1} parent=39 // pred_check
        _
      $region252: #{cnn_forward.1} parent=39 // pred_check_branch
        %578 = sbr.rel (%p575) target = $region254
      $region253: #{cnn_forward.1} parent=39 // pred_region
        %s594 = sand.u32 1, 7
        %p595 = scmp.eq.s32.totalorder %s594, 0
        %p596 = pneg %p595
        // Predicated region
        $region266: #{cnn_forward.1} parent=253 // pred_check
          _
        $region267: #{cnn_forward.1} parent=253 // pred_check_branch
          %598 = sbr.rel (%p595) target = $region269
        $region268: #{cnn_forward.1} parent=253 // pred_region
          %s599 = sand.u32 1, 7
          %s600 = ssub.s32 1, %s599
          %s601 = scalar_lea.vmem %s571, %s600
          %s602 = ssub.s32 1, %s599
          %s603 = scalar_lea.vmem %s572, %s602 [#allocation2]
          %s604 = sshll.u32 1, %s599
          %s605 = ssub.s32 %s604, 1
          loop: start=0, step=1, limit=1
          $region270: #{cnn_forward.1} parent=268 // loop_pre_header
            _
          $region271: #{cnn_forward.1} parent=268 // loop_header
            %s607 = sphi 0, %s611
            %p608 = scmp.ge.s32.totalorder %s607, 1
            %s612 = sphi %s601, %s601
            %s613 = sphi %s603, %s603
          $region272: #{cnn_forward.1} parent=268 // loop_header_branch
            %610 = sbr.rel (%p608) target = $region276
          $region273: #{cnn_forward.1} parent=268 // loop_body
            %v614 = vld [vmem:[%s612] sm:%s605]
            %615 = vst [vmem:[%s613] sm:%s605] %v614
          $region274: #{cnn_forward.1} parent=268 // loop_footer
            %s611 = sadd.s32 1, %s607
          $region275: #{cnn_forward.1} parent=268 // loop_footer_branch
            %606 = sbr.rel target = $region271
          $region276: #{cnn_forward.1} parent=268 // loop_exit
            _
        $region269: #{cnn_forward.1} parent=253 // pred_fallthru
          _
      $region254: #{cnn_forward.1} parent=39 // pred_fallthru
        _
      // Predicated region
      $region255: #{cnn_forward.1} parent=39 // pred_check
        %p579 = pneg %p575
      $region256: #{cnn_forward.1} parent=39 // pred_check_branch
        %581 = sbr.rel (%p579) target = $region258
      $region257: #{cnn_forward.1} parent=39 // pred_region
        %s582 = sshll.u32 1, 1
        %s583 = ssub.s32 %s582, 1
        loop: start=0, step=1, limit=1
        $region259: #{cnn_forward.1} parent=257 // loop_pre_header
          _
        $region260: #{cnn_forward.1} parent=257 // loop_header
          %s585 = sphi 0, %s589
          %p586 = scmp.ge.s32.totalorder %s585, 1
          %s590 = sphi %s571, %s571
          %s591 = sphi %s572, %s572
        $region261: #{cnn_forward.1} parent=257 // loop_header_branch
          %588 = sbr.rel (%p586) target = $region265
        $region262: #{cnn_forward.1} parent=257 // loop_body
          %v592 = vld [vmem:[%s590] sm:%s583]
          %593 = vst [vmem:[%s591] sm:%s583] %v592
        $region263: #{cnn_forward.1} parent=257 // loop_footer
          %s589 = sadd.s32 1, %s585
        $region264: #{cnn_forward.1} parent=257 // loop_footer_branch
          %584 = sbr.rel target = $region260
        $region265: #{cnn_forward.1} parent=257 // loop_exit
          _
      $region258: #{cnn_forward.1} parent=39 // pred_fallthru
        _
      // Predicated region
      $region277: #{cnn_forward.1} parent=39 // pred_check
        _
      $region278: #{cnn_forward.1} parent=39 // pred_check_branch
        %618 = sbr.rel (0) target = $region280
      $region279: #{cnn_forward.1} parent=39 // pred_region
        %619 = vsyncadd %s573, 16
      $region280: #{cnn_forward.1} parent=39 // pred_fallthru
        _
      %s620 = sadd.s32 %s214, 8
      %s621 = sld [smem:[#allocation5 + %s620]]
      %s622 = scalar_lea.vmem %s1, %s621
      %s623 = scalar_lea.vmem [#allocation2], 8
      %s624 = scalar_lea.sflag [#allocation3], 8
      %p626 = scmp.lt.u32.totalorder 1, 8
      %p627 = pneg %p626
      // Predicated region
      $region281: #{cnn_forward.1} parent=39 // pred_check
        _
      $region282: #{cnn_forward.1} parent=39 // pred_check_branch
        %629 = sbr.rel (%p626) target = $region284
      $region283: #{cnn_forward.1} parent=39 // pred_region
        %s645 = sand.u32 1, 7
        %p646 = scmp.eq.s32.totalorder %s645, 0
        %p647 = pneg %p646
        // Predicated region
        $region296: #{cnn_forward.1} parent=283 // pred_check
          _
        $region297: #{cnn_forward.1} parent=283 // pred_check_branch
          %649 = sbr.rel (%p646) target = $region299
        $region298: #{cnn_forward.1} parent=283 // pred_region
          %s650 = sand.u32 1, 7
          %s651 = ssub.s32 1, %s650
          %s652 = scalar_lea.vmem %s622, %s651
          %s653 = ssub.s32 1, %s650
          %s654 = scalar_lea.vmem %s623, %s653 [#allocation2]
          %s655 = sshll.u32 1, %s650
          %s656 = ssub.s32 %s655, 1
          loop: start=0, step=1, limit=1
          $region300: #{cnn_forward.1} parent=298 // loop_pre_header
            _
          $region301: #{cnn_forward.1} parent=298 // loop_header
            %s658 = sphi 0, %s662
            %p659 = scmp.ge.s32.totalorder %s658, 1
            %s663 = sphi %s652, %s652
            %s664 = sphi %s654, %s654
          $region302: #{cnn_forward.1} parent=298 // loop_header_branch
            %661 = sbr.rel (%p659) target = $region306
          $region303: #{cnn_forward.1} parent=298 // loop_body
            %v665 = vld [vmem:[%s663] sm:%s656]
            %666 = vst [vmem:[%s664] sm:%s656] %v665
          $region304: #{cnn_forward.1} parent=298 // loop_footer
            %s662 = sadd.s32 1, %s658
          $region305: #{cnn_forward.1} parent=298 // loop_footer_branch
            %657 = sbr.rel target = $region301
          $region306: #{cnn_forward.1} parent=298 // loop_exit
            _
        $region299: #{cnn_forward.1} parent=283 // pred_fallthru
          _
      $region284: #{cnn_forward.1} parent=39 // pred_fallthru
        _
      // Predicated region
      $region285: #{cnn_forward.1} parent=39 // pred_check
        %p630 = pneg %p626
      $region286: #{cnn_forward.1} parent=39 // pred_check_branch
        %632 = sbr.rel (%p630) target = $region288
      $region287: #{cnn_forward.1} parent=39 // pred_region
        %s633 = sshll.u32 1, 1
        %s634 = ssub.s32 %s633, 1
        loop: start=0, step=1, limit=1
        $region289: #{cnn_forward.1} parent=287 // loop_pre_header
          _
        $region290: #{cnn_forward.1} parent=287 // loop_header
          %s636 = sphi 0, %s640
          %p637 = scmp.ge.s32.totalorder %s636, 1
          %s641 = sphi %s622, %s622
          %s642 = sphi %s623, %s623
        $region291: #{cnn_forward.1} parent=287 // loop_header_branch
          %639 = sbr.rel (%p637) target = $region295
        $region292: #{cnn_forward.1} parent=287 // loop_body
          %v643 = vld [vmem:[%s641] sm:%s634]
          %644 = vst [vmem:[%s642] sm:%s634] %v643
        $region293: #{cnn_forward.1} parent=287 // loop_footer
          %s640 = sadd.s32 1, %s636
        $region294: #{cnn_forward.1} parent=287 // loop_footer_branch
          %635 = sbr.rel target = $region290
        $region295: #{cnn_forward.1} parent=287 // loop_exit
          _
      $region288: #{cnn_forward.1} parent=39 // pred_fallthru
        _
      // Predicated region
      $region307: #{cnn_forward.1} parent=39 // pred_check
        _
      $region308: #{cnn_forward.1} parent=39 // pred_check_branch
        %669 = sbr.rel (0) target = $region310
      $region309: #{cnn_forward.1} parent=39 // pred_region
        %670 = vsyncadd %s624, 16
      $region310: #{cnn_forward.1} parent=39 // pred_fallthru
        _
      %s671 = sadd.s32 %s214, 9
      %s672 = sld [smem:[#allocation5 + %s671]]
      %s673 = scalar_lea.vmem %s1, %s672
      %s674 = scalar_lea.vmem [#allocation2], 9
      %s675 = scalar_lea.sflag [#allocation3], 9
      %p677 = scmp.lt.u32.totalorder 1, 8
      %p678 = pneg %p677
      // Predicated region
      $region311: #{cnn_forward.1} parent=39 // pred_check
        _
      $region312: #{cnn_forward.1} parent=39 // pred_check_branch
        %680 = sbr.rel (%p677) target = $region314
      $region313: #{cnn_forward.1} parent=39 // pred_region
        %s696 = sand.u32 1, 7
        %p697 = scmp.eq.s32.totalorder %s696, 0
        %p698 = pneg %p697
        // Predicated region
        $region326: #{cnn_forward.1} parent=313 // pred_check
          _
        $region327: #{cnn_forward.1} parent=313 // pred_check_branch
          %700 = sbr.rel (%p697) target = $region329
        $region328: #{cnn_forward.1} parent=313 // pred_region
          %s701 = sand.u32 1, 7
          %s702 = ssub.s32 1, %s701
          %s703 = scalar_lea.vmem %s673, %s702
          %s704 = ssub.s32 1, %s701
          %s705 = scalar_lea.vmem %s674, %s704 [#allocation2]
          %s706 = sshll.u32 1, %s701
          %s707 = ssub.s32 %s706, 1
          loop: start=0, step=1, limit=1
          $region330: #{cnn_forward.1} parent=328 // loop_pre_header
            _
          $region331: #{cnn_forward.1} parent=328 // loop_header
            %s709 = sphi 0, %s713
            %p710 = scmp.ge.s32.totalorder %s709, 1
            %s714 = sphi %s703, %s703
            %s715 = sphi %s705, %s705
          $region332: #{cnn_forward.1} parent=328 // loop_header_branch
            %712 = sbr.rel (%p710) target = $region336
          $region333: #{cnn_forward.1} parent=328 // loop_body
            %v716 = vld [vmem:[%s714] sm:%s707]
            %717 = vst [vmem:[%s715] sm:%s707] %v716
          $region334: #{cnn_forward.1} parent=328 // loop_footer
            %s713 = sadd.s32 1, %s709
          $region335: #{cnn_forward.1} parent=328 // loop_footer_branch
            %708 = sbr.rel target = $region331
          $region336: #{cnn_forward.1} parent=328 // loop_exit
            _
        $region329: #{cnn_forward.1} parent=313 // pred_fallthru
          _
      $region314: #{cnn_forward.1} parent=39 // pred_fallthru
        _
      // Predicated region
      $region315: #{cnn_forward.1} parent=39 // pred_check
        %p681 = pneg %p677
      $region316: #{cnn_forward.1} parent=39 // pred_check_branch
        %683 = sbr.rel (%p681) target = $region318
      $region317: #{cnn_forward.1} parent=39 // pred_region
        %s684 = sshll.u32 1, 1
        %s685 = ssub.s32 %s684, 1
        loop: start=0, step=1, limit=1
        $region319: #{cnn_forward.1} parent=317 // loop_pre_header
          _
        $region320: #{cnn_forward.1} parent=317 // loop_header
          %s687 = sphi 0, %s691
          %p688 = scmp.ge.s32.totalorder %s687, 1
          %s692 = sphi %s673, %s673
          %s693 = sphi %s674, %s674
        $region321: #{cnn_forward.1} parent=317 // loop_header_branch
          %690 = sbr.rel (%p688) target = $region325
        $region322: #{cnn_forward.1} parent=317 // loop_body
          %v694 = vld [vmem:[%s692] sm:%s685]
          %695 = vst [vmem:[%s693] sm:%s685] %v694
        $region323: #{cnn_forward.1} parent=317 // loop_footer
          %s691 = sadd.s32 1, %s687
        $region324: #{cnn_forward.1} parent=317 // loop_footer_branch
          %686 = sbr.rel target = $region320
        $region325: #{cnn_forward.1} parent=317 // loop_exit
          _
      $region318: #{cnn_forward.1} parent=39 // pred_fallthru
        _
      // Predicated region
      $region337: #{cnn_forward.1} parent=39 // pred_check
        _
      $region338: #{cnn_forward.1} parent=39 // pred_check_branch
        %720 = sbr.rel (0) target = $region340
      $region339: #{cnn_forward.1} parent=39 // pred_region
        %721 = vsyncadd %s675, 16
      $region340: #{cnn_forward.1} parent=39 // pred_fallthru
        _
      %s722 = sadd.s32 %s214, 10
      %s723 = sld [smem:[#allocation5 + %s722]]
      %s724 = scalar_lea.vmem %s1, %s723
      %s725 = scalar_lea.vmem [#allocation2], 10
      %s726 = scalar_lea.sflag [#allocation3], 10
      %p728 = scmp.lt.u32.totalorder 1, 8
      %p729 = pneg %p728
      // Predicated region
      $region341: #{cnn_forward.1} parent=39 // pred_check
        _
      $region342: #{cnn_forward.1} parent=39 // pred_check_branch
        %731 = sbr.rel (%p728) target = $region344
      $region343: #{cnn_forward.1} parent=39 // pred_region
        %s747 = sand.u32 1, 7
        %p748 = scmp.eq.s32.totalorder %s747, 0
        %p749 = pneg %p748
        // Predicated region
        $region356: #{cnn_forward.1} parent=343 // pred_check
          _
        $region357: #{cnn_forward.1} parent=343 // pred_check_branch
          %751 = sbr.rel (%p748) target = $region359
        $region358: #{cnn_forward.1} parent=343 // pred_region
          %s752 = sand.u32 1, 7
          %s753 = ssub.s32 1, %s752
          %s754 = scalar_lea.vmem %s724, %s753
          %s755 = ssub.s32 1, %s752
          %s756 = scalar_lea.vmem %s725, %s755 [#allocation2]
          %s757 = sshll.u32 1, %s752
          %s758 = ssub.s32 %s757, 1
          loop: start=0, step=1, limit=1
          $region360: #{cnn_forward.1} parent=358 // loop_pre_header
            _
          $region361: #{cnn_forward.1} parent=358 // loop_header
            %s760 = sphi 0, %s764
            %p761 = scmp.ge.s32.totalorder %s760, 1
            %s765 = sphi %s754, %s754
            %s766 = sphi %s756, %s756
          $region362: #{cnn_forward.1} parent=358 // loop_header_branch
            %763 = sbr.rel (%p761) target = $region366
          $region363: #{cnn_forward.1} parent=358 // loop_body
            %v767 = vld [vmem:[%s765] sm:%s758]
            %768 = vst [vmem:[%s766] sm:%s758] %v767
          $region364: #{cnn_forward.1} parent=358 // loop_footer
            %s764 = sadd.s32 1, %s760
          $region365: #{cnn_forward.1} parent=358 // loop_footer_branch
            %759 = sbr.rel target = $region361
          $region366: #{cnn_forward.1} parent=358 // loop_exit
            _
        $region359: #{cnn_forward.1} parent=343 // pred_fallthru
          _
      $region344: #{cnn_forward.1} parent=39 // pred_fallthru
        _
      // Predicated region
      $region345: #{cnn_forward.1} parent=39 // pred_check
        %p732 = pneg %p728
      $region346: #{cnn_forward.1} parent=39 // pred_check_branch
        %734 = sbr.rel (%p732) target = $region348
      $region347: #{cnn_forward.1} parent=39 // pred_region
        %s735 = sshll.u32 1, 1
        %s736 = ssub.s32 %s735, 1
        loop: start=0, step=1, limit=1
        $region349: #{cnn_forward.1} parent=347 // loop_pre_header
          _
        $region350: #{cnn_forward.1} parent=347 // loop_header
          %s738 = sphi 0, %s742
          %p739 = scmp.ge.s32.totalorder %s738, 1
          %s743 = sphi %s724, %s724
          %s744 = sphi %s725, %s725
        $region351: #{cnn_forward.1} parent=347 // loop_header_branch
          %741 = sbr.rel (%p739) target = $region355
        $region352: #{cnn_forward.1} parent=347 // loop_body
          %v745 = vld [vmem:[%s743] sm:%s736]
          %746 = vst [vmem:[%s744] sm:%s736] %v745
        $region353: #{cnn_forward.1} parent=347 // loop_footer
          %s742 = sadd.s32 1, %s738
        $region354: #{cnn_forward.1} parent=347 // loop_footer_branch
          %737 = sbr.rel target = $region350
        $region355: #{cnn_forward.1} parent=347 // loop_exit
          _
      $region348: #{cnn_forward.1} parent=39 // pred_fallthru
        _
      // Predicated region
      $region367: #{cnn_forward.1} parent=39 // pred_check
        _
      $region368: #{cnn_forward.1} parent=39 // pred_check_branch
        %771 = sbr.rel (0) target = $region370
      $region369: #{cnn_forward.1} parent=39 // pred_region
        %772 = vsyncadd %s726, 16
      $region370: #{cnn_forward.1} parent=39 // pred_fallthru
        _
      %s773 = sadd.s32 %s214, 11
      %s774 = sld [smem:[#allocation5 + %s773]]
      %s775 = scalar_lea.vmem %s1, %s774
      %s776 = scalar_lea.vmem [#allocation2], 11
      %s777 = scalar_lea.sflag [#allocation3], 11
      %p779 = scmp.lt.u32.totalorder 1, 8
      %p780 = pneg %p779
      // Predicated region
      $region371: #{cnn_forward.1} parent=39 // pred_check
        _
      $region372: #{cnn_forward.1} parent=39 // pred_check_branch
        %782 = sbr.rel (%p779) target = $region374
      $region373: #{cnn_forward.1} parent=39 // pred_region
        %s798 = sand.u32 1, 7
        %p799 = scmp.eq.s32.totalorder %s798, 0
        %p800 = pneg %p799
        // Predicated region
        $region386: #{cnn_forward.1} parent=373 // pred_check
          _
        $region387: #{cnn_forward.1} parent=373 // pred_check_branch
          %802 = sbr.rel (%p799) target = $region389
        $region388: #{cnn_forward.1} parent=373 // pred_region
          %s803 = sand.u32 1, 7
          %s804 = ssub.s32 1, %s803
          %s805 = scalar_lea.vmem %s775, %s804
          %s806 = ssub.s32 1, %s803
          %s807 = scalar_lea.vmem %s776, %s806 [#allocation2]
          %s808 = sshll.u32 1, %s803
          %s809 = ssub.s32 %s808, 1
          loop: start=0, step=1, limit=1
          $region390: #{cnn_forward.1} parent=388 // loop_pre_header
            _
          $region391: #{cnn_forward.1} parent=388 // loop_header
            %s811 = sphi 0, %s815
            %p812 = scmp.ge.s32.totalorder %s811, 1
            %s816 = sphi %s805, %s805
            %s817 = sphi %s807, %s807
          $region392: #{cnn_forward.1} parent=388 // loop_header_branch
            %814 = sbr.rel (%p812) target = $region396
          $region393: #{cnn_forward.1} parent=388 // loop_body
            %v818 = vld [vmem:[%s816] sm:%s809]
            %819 = vst [vmem:[%s817] sm:%s809] %v818
          $region394: #{cnn_forward.1} parent=388 // loop_footer
            %s815 = sadd.s32 1, %s811
          $region395: #{cnn_forward.1} parent=388 // loop_footer_branch
            %810 = sbr.rel target = $region391
          $region396: #{cnn_forward.1} parent=388 // loop_exit
            _
        $region389: #{cnn_forward.1} parent=373 // pred_fallthru
          _
      $region374: #{cnn_forward.1} parent=39 // pred_fallthru
        _
      // Predicated region
      $region375: #{cnn_forward.1} parent=39 // pred_check
        %p783 = pneg %p779
      $region376: #{cnn_forward.1} parent=39 // pred_check_branch
        %785 = sbr.rel (%p783) target = $region378
      $region377: #{cnn_forward.1} parent=39 // pred_region
        %s786 = sshll.u32 1, 1
        %s787 = ssub.s32 %s786, 1
        loop: start=0, step=1, limit=1
        $region379: #{cnn_forward.1} parent=377 // loop_pre_header
          _
        $region380: #{cnn_forward.1} parent=377 // loop_header
          %s789 = sphi 0, %s793
          %p790 = scmp.ge.s32.totalorder %s789, 1
          %s794 = sphi %s775, %s775
          %s795 = sphi %s776, %s776
        $region381: #{cnn_forward.1} parent=377 // loop_header_branch
          %792 = sbr.rel (%p790) target = $region385
        $region382: #{cnn_forward.1} parent=377 // loop_body
          %v796 = vld [vmem:[%s794] sm:%s787]
          %797 = vst [vmem:[%s795] sm:%s787] %v796
        $region383: #{cnn_forward.1} parent=377 // loop_footer
          %s793 = sadd.s32 1, %s789
        $region384: #{cnn_forward.1} parent=377 // loop_footer_branch
          %788 = sbr.rel target = $region380
        $region385: #{cnn_forward.1} parent=377 // loop_exit
          _
      $region378: #{cnn_forward.1} parent=39 // pred_fallthru
        _
      // Predicated region
      $region397: #{cnn_forward.1} parent=39 // pred_check
        _
      $region398: #{cnn_forward.1} parent=39 // pred_check_branch
        %822 = sbr.rel (0) target = $region400
      $region399: #{cnn_forward.1} parent=39 // pred_region
        %823 = vsyncadd %s777, 16
      $region400: #{cnn_forward.1} parent=39 // pred_fallthru
        _
      %s824 = sadd.s32 %s214, 12
      %s825 = sld [smem:[#allocation5 + %s824]]
      %s826 = scalar_lea.vmem %s1, %s825
      %s827 = scalar_lea.vmem [#allocation2], 12
      %s828 = scalar_lea.sflag [#allocation3], 12
      %p830 = scmp.lt.u32.totalorder 1, 8
      %p831 = pneg %p830
      // Predicated region
      $region401: #{cnn_forward.1} parent=39 // pred_check
        _
      $region402: #{cnn_forward.1} parent=39 // pred_check_branch
        %833 = sbr.rel (%p830) target = $region404
      $region403: #{cnn_forward.1} parent=39 // pred_region
        %s849 = sand.u32 1, 7
        %p850 = scmp.eq.s32.totalorder %s849, 0
        %p851 = pneg %p850
        // Predicated region
        $region416: #{cnn_forward.1} parent=403 // pred_check
          _
        $region417: #{cnn_forward.1} parent=403 // pred_check_branch
          %853 = sbr.rel (%p850) target = $region419
        $region418: #{cnn_forward.1} parent=403 // pred_region
          %s854 = sand.u32 1, 7
          %s855 = ssub.s32 1, %s854
          %s856 = scalar_lea.vmem %s826, %s855
          %s857 = ssub.s32 1, %s854
          %s858 = scalar_lea.vmem %s827, %s857 [#allocation2]
          %s859 = sshll.u32 1, %s854
          %s860 = ssub.s32 %s859, 1
          loop: start=0, step=1, limit=1
          $region420: #{cnn_forward.1} parent=418 // loop_pre_header
            _
          $region421: #{cnn_forward.1} parent=418 // loop_header
            %s862 = sphi 0, %s866
            %p863 = scmp.ge.s32.totalorder %s862, 1
            %s867 = sphi %s856, %s856
            %s868 = sphi %s858, %s858
          $region422: #{cnn_forward.1} parent=418 // loop_header_branch
            %865 = sbr.rel (%p863) target = $region426
          $region423: #{cnn_forward.1} parent=418 // loop_body
            %v869 = vld [vmem:[%s867] sm:%s860]
            %870 = vst [vmem:[%s868] sm:%s860] %v869
          $region424: #{cnn_forward.1} parent=418 // loop_footer
            %s866 = sadd.s32 1, %s862
          $region425: #{cnn_forward.1} parent=418 // loop_footer_branch
            %861 = sbr.rel target = $region421
          $region426: #{cnn_forward.1} parent=418 // loop_exit
            _
        $region419: #{cnn_forward.1} parent=403 // pred_fallthru
          _
      $region404: #{cnn_forward.1} parent=39 // pred_fallthru
        _
      // Predicated region
      $region405: #{cnn_forward.1} parent=39 // pred_check
        %p834 = pneg %p830
      $region406: #{cnn_forward.1} parent=39 // pred_check_branch
        %836 = sbr.rel (%p834) target = $region408
      $region407: #{cnn_forward.1} parent=39 // pred_region
        %s837 = sshll.u32 1, 1
        %s838 = ssub.s32 %s837, 1
        loop: start=0, step=1, limit=1
        $region409: #{cnn_forward.1} parent=407 // loop_pre_header
          _
        $region410: #{cnn_forward.1} parent=407 // loop_header
          %s840 = sphi 0, %s844
          %p841 = scmp.ge.s32.totalorder %s840, 1
          %s845 = sphi %s826, %s826
          %s846 = sphi %s827, %s827
        $region411: #{cnn_forward.1} parent=407 // loop_header_branch
          %843 = sbr.rel (%p841) target = $region415
        $region412: #{cnn_forward.1} parent=407 // loop_body
          %v847 = vld [vmem:[%s845] sm:%s838]
          %848 = vst [vmem:[%s846] sm:%s838] %v847
        $region413: #{cnn_forward.1} parent=407 // loop_footer
          %s844 = sadd.s32 1, %s840
        $region414: #{cnn_forward.1} parent=407 // loop_footer_branch
          %839 = sbr.rel target = $region410
        $region415: #{cnn_forward.1} parent=407 // loop_exit
          _
      $region408: #{cnn_forward.1} parent=39 // pred_fallthru
        _
      // Predicated region
      $region427: #{cnn_forward.1} parent=39 // pred_check
        _
      $region428: #{cnn_forward.1} parent=39 // pred_check_branch
        %873 = sbr.rel (0) target = $region430
      $region429: #{cnn_forward.1} parent=39 // pred_region
        %874 = vsyncadd %s828, 16
      $region430: #{cnn_forward.1} parent=39 // pred_fallthru
        _
      %s875 = sadd.s32 %s214, 13
      %s876 = sld [smem:[#allocation5 + %s875]]
      %s877 = scalar_lea.vmem %s1, %s876
      %s878 = scalar_lea.vmem [#allocation2], 13
      %s879 = scalar_lea.sflag [#allocation3], 13
      %p881 = scmp.lt.u32.totalorder 1, 8
      %p882 = pneg %p881
      // Predicated region
      $region431: #{cnn_forward.1} parent=39 // pred_check
        _
      $region432: #{cnn_forward.1} parent=39 // pred_check_branch
        %884 = sbr.rel (%p881) target = $region434
      $region433: #{cnn_forward.1} parent=39 // pred_region
        %s900 = sand.u32 1, 7
        %p901 = scmp.eq.s32.totalorder %s900, 0
        %p902 = pneg %p901
        // Predicated region
        $region446: #{cnn_forward.1} parent=433 // pred_check
          _
        $region447: #{cnn_forward.1} parent=433 // pred_check_branch
          %904 = sbr.rel (%p901) target = $region449
        $region448: #{cnn_forward.1} parent=433 // pred_region
          %s905 = sand.u32 1, 7
          %s906 = ssub.s32 1, %s905
          %s907 = scalar_lea.vmem %s877, %s906
          %s908 = ssub.s32 1, %s905
          %s909 = scalar_lea.vmem %s878, %s908 [#allocation2]
          %s910 = sshll.u32 1, %s905
          %s911 = ssub.s32 %s910, 1
          loop: start=0, step=1, limit=1
          $region450: #{cnn_forward.1} parent=448 // loop_pre_header
            _
          $region451: #{cnn_forward.1} parent=448 // loop_header
            %s913 = sphi 0, %s917
            %p914 = scmp.ge.s32.totalorder %s913, 1
            %s918 = sphi %s907, %s907
            %s919 = sphi %s909, %s909
          $region452: #{cnn_forward.1} parent=448 // loop_header_branch
            %916 = sbr.rel (%p914) target = $region456
          $region453: #{cnn_forward.1} parent=448 // loop_body
            %v920 = vld [vmem:[%s918] sm:%s911]
            %921 = vst [vmem:[%s919] sm:%s911] %v920
          $region454: #{cnn_forward.1} parent=448 // loop_footer
            %s917 = sadd.s32 1, %s913
          $region455: #{cnn_forward.1} parent=448 // loop_footer_branch
            %912 = sbr.rel target = $region451
          $region456: #{cnn_forward.1} parent=448 // loop_exit
            _
        $region449: #{cnn_forward.1} parent=433 // pred_fallthru
          _
      $region434: #{cnn_forward.1} parent=39 // pred_fallthru
        _
      // Predicated region
      $region435: #{cnn_forward.1} parent=39 // pred_check
        %p885 = pneg %p881
      $region436: #{cnn_forward.1} parent=39 // pred_check_branch
        %887 = sbr.rel (%p885) target = $region438
      $region437: #{cnn_forward.1} parent=39 // pred_region
        %s888 = sshll.u32 1, 1
        %s889 = ssub.s32 %s888, 1
        loop: start=0, step=1, limit=1
        $region439: #{cnn_forward.1} parent=437 // loop_pre_header
          _
        $region440: #{cnn_forward.1} parent=437 // loop_header
          %s891 = sphi 0, %s895
          %p892 = scmp.ge.s32.totalorder %s891, 1
          %s896 = sphi %s877, %s877
          %s897 = sphi %s878, %s878
        $region441: #{cnn_forward.1} parent=437 // loop_header_branch
          %894 = sbr.rel (%p892) target = $region445
        $region442: #{cnn_forward.1} parent=437 // loop_body
          %v898 = vld [vmem:[%s896] sm:%s889]
          %899 = vst [vmem:[%s897] sm:%s889] %v898
        $region443: #{cnn_forward.1} parent=437 // loop_footer
          %s895 = sadd.s32 1, %s891
        $region444: #{cnn_forward.1} parent=437 // loop_footer_branch
          %890 = sbr.rel target = $region440
        $region445: #{cnn_forward.1} parent=437 // loop_exit
          _
      $region438: #{cnn_forward.1} parent=39 // pred_fallthru
        _
      // Predicated region
      $region457: #{cnn_forward.1} parent=39 // pred_check
        _
      $region458: #{cnn_forward.1} parent=39 // pred_check_branch
        %924 = sbr.rel (0) target = $region460
      $region459: #{cnn_forward.1} parent=39 // pred_region
        %925 = vsyncadd %s879, 16
      $region460: #{cnn_forward.1} parent=39 // pred_fallthru
        _
      %s926 = sadd.s32 %s214, 14
      %s927 = sld [smem:[#allocation5 + %s926]]
      %s928 = scalar_lea.vmem %s1, %s927
      %s929 = scalar_lea.vmem [#allocation2], 14
      %s930 = scalar_lea.sflag [#allocation3], 14
      %p932 = scmp.lt.u32.totalorder 1, 8
      %p933 = pneg %p932
      // Predicated region
      $region461: #{cnn_forward.1} parent=39 // pred_check
        _
      $region462: #{cnn_forward.1} parent=39 // pred_check_branch
        %935 = sbr.rel (%p932) target = $region464
      $region463: #{cnn_forward.1} parent=39 // pred_region
        %s951 = sand.u32 1, 7
        %p952 = scmp.eq.s32.totalorder %s951, 0
        %p953 = pneg %p952
        // Predicated region
        $region476: #{cnn_forward.1} parent=463 // pred_check
          _
        $region477: #{cnn_forward.1} parent=463 // pred_check_branch
          %955 = sbr.rel (%p952) target = $region479
        $region478: #{cnn_forward.1} parent=463 // pred_region
          %s956 = sand.u32 1, 7
          %s957 = ssub.s32 1, %s956
          %s958 = scalar_lea.vmem %s928, %s957
          %s959 = ssub.s32 1, %s956
          %s960 = scalar_lea.vmem %s929, %s959 [#allocation2]
          %s961 = sshll.u32 1, %s956
          %s962 = ssub.s32 %s961, 1
          loop: start=0, step=1, limit=1
          $region480: #{cnn_forward.1} parent=478 // loop_pre_header
            _
          $region481: #{cnn_forward.1} parent=478 // loop_header
            %s964 = sphi 0, %s968
            %p965 = scmp.ge.s32.totalorder %s964, 1
            %s969 = sphi %s958, %s958
            %s970 = sphi %s960, %s960
          $region482: #{cnn_forward.1} parent=478 // loop_header_branch
            %967 = sbr.rel (%p965) target = $region486
          $region483: #{cnn_forward.1} parent=478 // loop_body
            %v971 = vld [vmem:[%s969] sm:%s962]
            %972 = vst [vmem:[%s970] sm:%s962] %v971
          $region484: #{cnn_forward.1} parent=478 // loop_footer
            %s968 = sadd.s32 1, %s964
          $region485: #{cnn_forward.1} parent=478 // loop_footer_branch
            %963 = sbr.rel target = $region481
          $region486: #{cnn_forward.1} parent=478 // loop_exit
            _
        $region479: #{cnn_forward.1} parent=463 // pred_fallthru
          _
      $region464: #{cnn_forward.1} parent=39 // pred_fallthru
        _
      // Predicated region
      $region465: #{cnn_forward.1} parent=39 // pred_check
        %p936 = pneg %p932
      $region466: #{cnn_forward.1} parent=39 // pred_check_branch
        %938 = sbr.rel (%p936) target = $region468
      $region467: #{cnn_forward.1} parent=39 // pred_region
        %s939 = sshll.u32 1, 1
        %s940 = ssub.s32 %s939, 1
        loop: start=0, step=1, limit=1
        $region469: #{cnn_forward.1} parent=467 // loop_pre_header
          _
        $region470: #{cnn_forward.1} parent=467 // loop_header
          %s942 = sphi 0, %s946
          %p943 = scmp.ge.s32.totalorder %s942, 1
          %s947 = sphi %s928, %s928
          %s948 = sphi %s929, %s929
        $region471: #{cnn_forward.1} parent=467 // loop_header_branch
          %945 = sbr.rel (%p943) target = $region475
        $region472: #{cnn_forward.1} parent=467 // loop_body
          %v949 = vld [vmem:[%s947] sm:%s940]
          %950 = vst [vmem:[%s948] sm:%s940] %v949
        $region473: #{cnn_forward.1} parent=467 // loop_footer
          %s946 = sadd.s32 1, %s942
        $region474: #{cnn_forward.1} parent=467 // loop_footer_branch
          %941 = sbr.rel target = $region470
        $region475: #{cnn_forward.1} parent=467 // loop_exit
          _
      $region468: #{cnn_forward.1} parent=39 // pred_fallthru
        _
      // Predicated region
      $region487: #{cnn_forward.1} parent=39 // pred_check
        _
      $region488: #{cnn_forward.1} parent=39 // pred_check_branch
        %975 = sbr.rel (0) target = $region490
      $region489: #{cnn_forward.1} parent=39 // pred_region
        %976 = vsyncadd %s930, 16
      $region490: #{cnn_forward.1} parent=39 // pred_fallthru
        _
      %s977 = sadd.s32 %s214, 15
      %s978 = sld [smem:[#allocation5 + %s977]]
      %s979 = scalar_lea.vmem %s1, %s978
      %s980 = scalar_lea.vmem [#allocation2], 15
      %s981 = scalar_lea.sflag [#allocation3], 15
      %p983 = scmp.lt.u32.totalorder 1, 8
      %p984 = pneg %p983
      // Predicated region
      $region491: #{cnn_forward.1} parent=39 // pred_check
        _
      $region492: #{cnn_forward.1} parent=39 // pred_check_branch
        %986 = sbr.rel (%p983) target = $region494
      $region493: #{cnn_forward.1} parent=39 // pred_region
        %s1002 = sand.u32 1, 7
        %p1003 = scmp.eq.s32.totalorder %s1002, 0
        %p1004 = pneg %p1003
        // Predicated region
        $region506: #{cnn_forward.1} parent=493 // pred_check
          _
        $region507: #{cnn_forward.1} parent=493 // pred_check_branch
          %1006 = sbr.rel (%p1003) target = $region509
        $region508: #{cnn_forward.1} parent=493 // pred_region
          %s1007 = sand.u32 1, 7
          %s1008 = ssub.s32 1, %s1007
          %s1009 = scalar_lea.vmem %s979, %s1008
          %s1010 = ssub.s32 1, %s1007
          %s1011 = scalar_lea.vmem %s980, %s1010 [#allocation2]
          %s1012 = sshll.u32 1, %s1007
          %s1013 = ssub.s32 %s1012, 1
          loop: start=0, step=1, limit=1
          $region510: #{cnn_forward.1} parent=508 // loop_pre_header
            _
          $region511: #{cnn_forward.1} parent=508 // loop_header
            %s1015 = sphi 0, %s1019
            %p1016 = scmp.ge.s32.totalorder %s1015, 1
            %s1020 = sphi %s1009, %s1009
            %s1021 = sphi %s1011, %s1011
          $region512: #{cnn_forward.1} parent=508 // loop_header_branch
            %1018 = sbr.rel (%p1016) target = $region516
          $region513: #{cnn_forward.1} parent=508 // loop_body
            %v1022 = vld [vmem:[%s1020] sm:%s1013]
            %1023 = vst [vmem:[%s1021] sm:%s1013] %v1022
          $region514: #{cnn_forward.1} parent=508 // loop_footer
            %s1019 = sadd.s32 1, %s1015
          $region515: #{cnn_forward.1} parent=508 // loop_footer_branch
            %1014 = sbr.rel target = $region511
          $region516: #{cnn_forward.1} parent=508 // loop_exit
            _
        $region509: #{cnn_forward.1} parent=493 // pred_fallthru
          _
      $region494: #{cnn_forward.1} parent=39 // pred_fallthru
        _
      // Predicated region
      $region495: #{cnn_forward.1} parent=39 // pred_check
        %p987 = pneg %p983
      $region496: #{cnn_forward.1} parent=39 // pred_check_branch
        %989 = sbr.rel (%p987) target = $region498
      $region497: #{cnn_forward.1} parent=39 // pred_region
        %s990 = sshll.u32 1, 1
        %s991 = ssub.s32 %s990, 1
        loop: start=0, step=1, limit=1
        $region499: #{cnn_forward.1} parent=497 // loop_pre_header
          _
        $region500: #{cnn_forward.1} parent=497 // loop_header
          %s993 = sphi 0, %s997
          %p994 = scmp.ge.s32.totalorder %s993, 1
          %s998 = sphi %s979, %s979
          %s999 = sphi %s980, %s980
        $region501: #{cnn_forward.1} parent=497 // loop_header_branch
          %996 = sbr.rel (%p994) target = $region505
        $region502: #{cnn_forward.1} parent=497 // loop_body
          %v1000 = vld [vmem:[%s998] sm:%s991]
          %1001 = vst [vmem:[%s999] sm:%s991] %v1000
        $region503: #{cnn_forward.1} parent=497 // loop_footer
          %s997 = sadd.s32 1, %s993
        $region504: #{cnn_forward.1} parent=497 // loop_footer_branch
          %992 = sbr.rel target = $region500
        $region505: #{cnn_forward.1} parent=497 // loop_exit
          _
      $region498: #{cnn_forward.1} parent=39 // pred_fallthru
        _
      // Predicated region
      $region517: #{cnn_forward.1} parent=39 // pred_check
        _
      $region518: #{cnn_forward.1} parent=39 // pred_check_branch
        %1026 = sbr.rel (0) target = $region520
      $region519: #{cnn_forward.1} parent=39 // pred_region
        %1027 = vsyncadd %s981, 16
      $region520: #{cnn_forward.1} parent=39 // pred_fallthru
        _
      %s1028 = smul.u32 1, 1
      %s1029 = sshll.u32 %s1028, 4
      %1030 = dma.done [#allocation3], %s1029
      %s1031 = sshll.u32 %s1028, 4
      %1032 = dma.done %s267, %s1031
      %s1033 = sshll.u32 %s1028, 4
      %1034 = dma.done %s318, %s1033
      %s1035 = sshll.u32 %s1028, 4
      %1036 = dma.done %s369, %s1035
      %s1037 = sshll.u32 %s1028, 4
      %1038 = dma.done %s420, %s1037
      %s1039 = sshll.u32 %s1028, 4
      %1040 = dma.done %s471, %s1039
      %s1041 = sshll.u32 %s1028, 4
      %1042 = dma.done %s522, %s1041
      %s1043 = sshll.u32 %s1028, 4
      %1044 = dma.done %s573, %s1043
      %s1045 = sshll.u32 %s1028, 4
      %1046 = dma.done %s624, %s1045
      %s1047 = sshll.u32 %s1028, 4
      %1048 = dma.done %s675, %s1047
      %s1049 = sshll.u32 %s1028, 4
      %1050 = dma.done %s726, %s1049
      %s1051 = sshll.u32 %s1028, 4
      %1052 = dma.done %s777, %s1051
      %s1053 = sshll.u32 %s1028, 4
      %1054 = dma.done %s828, %s1053
      %s1055 = sshll.u32 %s1028, 4
      %1056 = dma.done %s879, %s1055
      %s1057 = sshll.u32 %s1028, 4
      %1058 = dma.done %s930, %s1057
      %s1059 = sshll.u32 %s1028, 4
      %1060 = dma.done %s981, %s1059
      %v1061 = vld [vmem:[#allocation2] sm:$0xff]
      %v1062 = vld [vmem:[#allocation2 + $0x8] sm:$0xff]
      %v1063 = vld [vmem:[#allocation2 + $0x10] sm:$0xff]
      %v1064 = vpack.c.bf16 %v1062, %v1061
      %v1065 = vld [vmem:[%s2] sm:$0xf]
      %v1066 = vld [vmem:[%s2 + $0x4] sm:$0xf]
      %v1067 = vld [vmem:[%s2 + $0x8] sm:$0xf]
      %v1068 = vld [vmem:[%s2 + $0xc] sm:$0xf]
      %v1069 = vld [vmem:[%s2 + $0x10] sm:$0xf]
      %v1070 = vld [vmem:[%s2 + $0x14] sm:$0xf]
      %v1071 = vld [vmem:[%s2 + $0x18] sm:$0xf]
      %v1072 = vld [vmem:[%s2 + $0x1c] sm:$0xf]
      %v1073 = vpack.c.bf16 %v1063, %v1063
      %s1074 = scalar_lea.vmem %s2, 32
      %v1075 = vld [vmem:[%s1074] sm:$0xf]
      %v1076 = vld [vmem:[%s1074 + $0x4] sm:$0xf]
      %v1077 = vld [vmem:[%s1074 + $0x8] sm:$0xf]
      %v1078 = vld [vmem:[%s1074 + $0xc] sm:$0xf]
      %v1079 = vld [vmem:[%s1074 + $0x10] sm:$0xf]
      %v1080 = vld [vmem:[%s1074 + $0x14] sm:$0xf]
      %v1081 = vld [vmem:[%s1074 + $0x18] sm:$0xf]
      %v1082 = vld [vmem:[%s1074 + $0x1c] sm:$0xf]
      %vm1083 = vsmask.f32 7424
      %v1085 = vshrl.u32 %v1064, 16
      %v1087 = vshll.u32 %v1064, 16
      %v1089 = vrot.slane %v1087, 1
      %v1090 = vor.u32 %v1085, %v1089
      %v1092 = vshll.u32 %v1073, 16
      %v1094 = vrot.slane %v1092, 1
      %v1095 = vsel %vm1083, %v1090, %v1094
      %v1104 = vunpack.c.l.b16 %v1075
      %v1105 = vunpack.c.l.b16 %v1076
      %v1106 = vunpack.c.l.b16 %v1077
      %v1107 = vunpack.c.l.b16 %v1078
      %v1108 = vunpack.c.l.b16 %v1079
      %v1109 = vunpack.c.l.b16 %v1080
      %v1110 = vunpack.c.l.b16 %v1081
      %v1111 = vunpack.c.l.b16 %v1082
      %v1112 = vpack.c.b16 %v1105, %v1104
      %v1113 = vpack.c.b16 %v1107, %v1106
      %v1114 = vpack.c.b16 %v1109, %v1108
      %v1115 = vpack.c.b16 %v1111, %v1110
      %v1121 = vsel %vm212, %v1095, 0
      %1123 = vmatprep.subr.bf16.mxu0 0
      %1124 = vmatpush1.bf16.msra.mxu0 0
      %1125 = vmatprep.subr.bf16.mxu0 0
      %1126 = vmatpush1.bf16.msra.mxu0 0
      %1127 = vmatprep.subr.bf16.mxu0 0
      %1128 = vmatpush1.bf16.msra.mxu0 0
      %1129 = vmatprep.subr.bf16.mxu0 0
      %1130 = vmatpush1.bf16.msra.mxu0 0
      %1131 = vmatprep.subr.bf16.mxu0 0
      %1132 = vmatpush1.bf16.msra.mxu0 %v1115
      %1133 = vmatprep.subr.bf16.mxu0 0
      %1134 = vmatpush1.bf16.msra.mxu0 %v1114
      %1135 = vmatprep.subr.bf16.mxu0 0
      %1136 = vmatpush1.bf16.msra.mxu0 %v1113
      %1137 = vmatprep.subr.bf16.mxu0 0
      %1138 = vmatpush1.bf16.msra.mxu0 %v1112
      %1139 = vmatprep.subr.bf16.mxu0 0
      %1140 = vmatpush2.bf16.msra.mxu0 0
      %1141 = vmatprep.subr.bf16.mxu0 0
      %1142 = vmatpush2.bf16.msra.mxu0 0
      %1143 = vmatprep.subr.bf16.mxu0 0
      %1144 = vmatpush2.bf16.msra.mxu0 0
      %1145 = vmatprep.subr.bf16.mxu0 0
      %1146 = vmatpush2.bf16.msra.mxu0 0
      %1147 = vmatprep.subr.bf16.mxu0 0
      %1148 = vmatpush2.bf16.msra.mxu0 0
      %1149 = vmatprep.subr.bf16.mxu0 0
      %1150 = vmatpush2.bf16.msra.mxu0 0
      %1151 = vmatprep.subr.bf16.mxu0 0
      %1152 = vmatpush2.bf16.msra.mxu0 0
      %1153 = vmatprep.subr.bf16.mxu0 0
      %1154 = vmatpush2.bf16.msra.mxu0 0
      %1155 = vmatprep.mubr.bf16.mxu0 0
      %1156 = vmatmul.mubr.bf16.gmra.mxu0 %v1121
      %v1157 = vpop.f32.mrf.mxu0
      %v1158 = vadd.f32 0.0, %v1157
      %v1159 = vpop.f32.mrf.mxu0
      %v1160 = vpop.f32.mrf.mxu0
      %v1161 = vadd.f32 0.0, %v1160
      %v1162 = vpop.f32.mrf.mxu0
      %1163 = vdwg.mxu0
      %v1172 = vunpack.c.l.b16 %v1065
      %v1173 = vunpack.c.l.b16 %v1066
      %v1174 = vunpack.c.l.b16 %v1067
      %v1175 = vunpack.c.l.b16 %v1068
      %v1176 = vunpack.c.l.b16 %v1069
      %v1177 = vunpack.c.l.b16 %v1070
      %v1178 = vunpack.c.l.b16 %v1071
      %v1179 = vunpack.c.l.b16 %v1072
      %v1180 = vpack.c.b16 %v1173, %v1172
      %v1181 = vpack.c.b16 %v1175, %v1174
      %v1182 = vpack.c.b16 %v1177, %v1176
      %v1183 = vpack.c.b16 %v1179, %v1178
      %v1188 = vsel %vm212, %v1064, 0
      %1190 = vmatprep.subr.bf16.mxu0 0
      %1191 = vmatpush1.bf16.msra.mxu0 0
      %1192 = vmatprep.subr.bf16.mxu0 0
      %1193 = vmatpush1.bf16.msra.mxu0 0
      %1194 = vmatprep.subr.bf16.mxu0 0
      %1195 = vmatpush1.bf16.msra.mxu0 0
      %1196 = vmatprep.subr.bf16.mxu0 0
      %1197 = vmatpush1.bf16.msra.mxu0 0
      %1198 = vmatprep.subr.bf16.mxu0 0
      %1199 = vmatpush1.bf16.msra.mxu0 %v1183
      %1200 = vmatprep.subr.bf16.mxu0 0
      %1201 = vmatpush1.bf16.msra.mxu0 %v1182
      %1202 = vmatprep.subr.bf16.mxu0 0
      %1203 = vmatpush1.bf16.msra.mxu0 %v1181
      %1204 = vmatprep.subr.bf16.mxu0 0
      %1205 = vmatpush1.bf16.msra.mxu0 %v1180
      %1206 = vmatprep.subr.bf16.mxu0 0
      %1207 = vmatpush2.bf16.msra.mxu0 0
      %1208 = vmatprep.subr.bf16.mxu0 0
      %1209 = vmatpush2.bf16.msra.mxu0 0
      %1210 = vmatprep.subr.bf16.mxu0 0
      %1211 = vmatpush2.bf16.msra.mxu0 0
      %1212 = vmatprep.subr.bf16.mxu0 0
      %1213 = vmatpush2.bf16.msra.mxu0 0
      %1214 = vmatprep.subr.bf16.mxu0 0
      %1215 = vmatpush2.bf16.msra.mxu0 0
      %1216 = vmatprep.subr.bf16.mxu0 0
      %1217 = vmatpush2.bf16.msra.mxu0 0
      %1218 = vmatprep.subr.bf16.mxu0 0
      %1219 = vmatpush2.bf16.msra.mxu0 0
      %1220 = vmatprep.subr.bf16.mxu0 0
      %1221 = vmatpush2.bf16.msra.mxu0 0
      %1222 = vmatprep.mubr.bf16.mxu0 0
      %1223 = vmatmul.mubr.bf16.gmra.mxu0 %v1188
      %v1224 = vpop.f32.mrf.mxu0
      %v1225 = vadd.f32 %v1158, %v1224
      %v1226 = vpop.f32.mrf.mxu0
      %v1227 = vpop.f32.mrf.mxu0
      %v1228 = vadd.f32 %v1161, %v1227
      %v1229 = vpop.f32.mrf.mxu0
      %1230 = vdwg.mxu0
      %s1231 = scalar_lea.vmem %s2, 64
      %v1232 = vld [vmem:[%s1231] sm:$0xf]
      %v1233 = vld [vmem:[%s1231 + $0x4] sm:$0xf]
      %v1234 = vld [vmem:[%s1231 + $0x8] sm:$0xf]
      %v1235 = vld [vmem:[%s1231 + $0xc] sm:$0xf]
      %v1236 = vld [vmem:[%s1231 + $0x10] sm:$0xf]
      %v1237 = vld [vmem:[%s1231 + $0x14] sm:$0xf]
      %v1238 = vld [vmem:[%s1231 + $0x18] sm:$0xf]
      %v1239 = vld [vmem:[%s1231 + $0x1c] sm:$0xf]
      %vm1242 = vcmask 1046528
      %v1243 = vrot.slane %v1064, 1
      %v1244 = vrot.slane %v1073, 1
      %v1245 = vsel %vm1242, %v1243, %v1244
      %v1254 = vunpack.c.l.b16 %v1232
      %v1255 = vunpack.c.l.b16 %v1233
      %v1256 = vunpack.c.l.b16 %v1234
      %v1257 = vunpack.c.l.b16 %v1235
      %v1258 = vunpack.c.l.b16 %v1236
      %v1259 = vunpack.c.l.b16 %v1237
      %v1260 = vunpack.c.l.b16 %v1238
      %v1261 = vunpack.c.l.b16 %v1239
      %v1262 = vpack.c.b16 %v1255, %v1254
      %v1263 = vpack.c.b16 %v1257, %v1256
      %v1264 = vpack.c.b16 %v1259, %v1258
      %v1265 = vpack.c.b16 %v1261, %v1260
      %v1271 = vsel %vm212, %v1245, 0
      %1273 = vmatprep.subr.bf16.mxu0 0
      %1274 = vmatpush1.bf16.msra.mxu0 0
      %1275 = vmatprep.subr.bf16.mxu0 0
      %1276 = vmatpush1.bf16.msra.mxu0 0
      %1277 = vmatprep.subr.bf16.mxu0 0
      %1278 = vmatpush1.bf16.msra.mxu0 0
      %1279 = vmatprep.subr.bf16.mxu0 0
      %1280 = vmatpush1.bf16.msra.mxu0 0
      %1281 = vmatprep.subr.bf16.mxu0 0
      %1282 = vmatpush1.bf16.msra.mxu0 %v1265
      %1283 = vmatprep.subr.bf16.mxu0 0
      %1284 = vmatpush1.bf16.msra.mxu0 %v1264
      %1285 = vmatprep.subr.bf16.mxu0 0
      %1286 = vmatpush1.bf16.msra.mxu0 %v1263
      %1287 = vmatprep.subr.bf16.mxu0 0
      %1288 = vmatpush1.bf16.msra.mxu0 %v1262
      %1289 = vmatprep.subr.bf16.mxu0 0
      %1290 = vmatpush2.bf16.msra.mxu0 0
      %1291 = vmatprep.subr.bf16.mxu0 0
      %1292 = vmatpush2.bf16.msra.mxu0 0
      %1293 = vmatprep.subr.bf16.mxu0 0
      %1294 = vmatpush2.bf16.msra.mxu0 0
      %1295 = vmatprep.subr.bf16.mxu0 0
      %1296 = vmatpush2.bf16.msra.mxu0 0
      %1297 = vmatprep.subr.bf16.mxu0 0
      %1298 = vmatpush2.bf16.msra.mxu0 0
      %1299 = vmatprep.subr.bf16.mxu0 0
      %1300 = vmatpush2.bf16.msra.mxu0 0
      %1301 = vmatprep.subr.bf16.mxu0 0
      %1302 = vmatpush2.bf16.msra.mxu0 0
      %1303 = vmatprep.subr.bf16.mxu0 0
      %1304 = vmatpush2.bf16.msra.mxu0 0
      %1305 = vmatprep.mubr.bf16.mxu0 0
      %1306 = vmatmul.mubr.bf16.gmra.mxu0 %v1271
      %v1307 = vpop.f32.mrf.mxu0
      %v1308 = vadd.f32 0.0, %v1307
      %v1309 = vpop.f32.mrf.mxu0
      %v1310 = vpop.f32.mrf.mxu0
      %v1311 = vadd.f32 0.0, %v1310
      %v1312 = vpop.f32.mrf.mxu0
      %1313 = vdwg.mxu0
      %v1314 = vadd.f32 %v1225, %v1308
      %v1315 = vadd.f32 %v1228, %v1311
      %s1316 = scalar_lea.vmem %s2, 96
      %v1317 = vld [vmem:[%s1316] sm:$0xf]
      %v1318 = vld [vmem:[%s1316 + $0x4] sm:$0xf]
      %v1319 = vld [vmem:[%s1316 + $0x8] sm:$0xf]
      %v1320 = vld [vmem:[%s1316 + $0xc] sm:$0xf]
      %v1321 = vld [vmem:[%s1316 + $0x10] sm:$0xf]
      %v1322 = vld [vmem:[%s1316 + $0x14] sm:$0xf]
      %v1323 = vld [vmem:[%s1316 + $0x18] sm:$0xf]
      %v1324 = vld [vmem:[%s1316 + $0x1c] sm:$0xf]
      %vm1325 = vsmask.f32 6400
      %v1326 = vrot.slane %v1085, 1
      %v1327 = vrot.slane %v1087, 2
      %v1328 = vor.u32 %v1326, %v1327
      %v1329 = vshrl.u32 %v1073, 16
      %v1331 = vrot.slane %v1329, 1
      %v1332 = vrot.slane %v1092, 2
      %v1333 = vor.u32 %v1331, %v1332
      %v1334 = vsel %vm1325, %v1328, %v1333
      %v1343 = vunpack.c.l.b16 %v1317
      %v1344 = vunpack.c.l.b16 %v1318
      %v1345 = vunpack.c.l.b16 %v1319
      %v1346 = vunpack.c.l.b16 %v1320
      %v1347 = vunpack.c.l.b16 %v1321
      %v1348 = vunpack.c.l.b16 %v1322
      %v1349 = vunpack.c.l.b16 %v1323
      %v1350 = vunpack.c.l.b16 %v1324
      %v1351 = vpack.c.b16 %v1344, %v1343
      %v1352 = vpack.c.b16 %v1346, %v1345
      %v1353 = vpack.c.b16 %v1348, %v1347
      %v1354 = vpack.c.b16 %v1350, %v1349
      %v1360 = vsel %vm212, %v1334, 0
      %1362 = vmatprep.subr.bf16.mxu0 0
      %1363 = vmatpush1.bf16.msra.mxu0 0
      %1364 = vmatprep.subr.bf16.mxu0 0
      %1365 = vmatpush1.bf16.msra.mxu0 0
      %1366 = vmatprep.subr.bf16.mxu0 0
      %1367 = vmatpush1.bf16.msra.mxu0 0
      %1368 = vmatprep.subr.bf16.mxu0 0
      %1369 = vmatpush1.bf16.msra.mxu0 0
      %1370 = vmatprep.subr.bf16.mxu0 0
      %1371 = vmatpush1.bf16.msra.mxu0 %v1354
      %1372 = vmatprep.subr.bf16.mxu0 0
      %1373 = vmatpush1.bf16.msra.mxu0 %v1353
      %1374 = vmatprep.subr.bf16.mxu0 0
      %1375 = vmatpush1.bf16.msra.mxu0 %v1352
      %1376 = vmatprep.subr.bf16.mxu0 0
      %1377 = vmatpush1.bf16.msra.mxu0 %v1351
      %1378 = vmatprep.subr.bf16.mxu0 0
      %1379 = vmatpush2.bf16.msra.mxu0 0
      %1380 = vmatprep.subr.bf16.mxu0 0
      %1381 = vmatpush2.bf16.msra.mxu0 0
      %1382 = vmatprep.subr.bf16.mxu0 0
      %1383 = vmatpush2.bf16.msra.mxu0 0
      %1384 = vmatprep.subr.bf16.mxu0 0
      %1385 = vmatpush2.bf16.msra.mxu0 0
      %1386 = vmatprep.subr.bf16.mxu0 0
      %1387 = vmatpush2.bf16.msra.mxu0 0
      %1388 = vmatprep.subr.bf16.mxu0 0
      %1389 = vmatpush2.bf16.msra.mxu0 0
      %1390 = vmatprep.subr.bf16.mxu0 0
      %1391 = vmatpush2.bf16.msra.mxu0 0
      %1392 = vmatprep.subr.bf16.mxu0 0
      %1393 = vmatpush2.bf16.msra.mxu0 0
      %1394 = vmatprep.mubr.bf16.mxu0 0
      %1395 = vmatmul.mubr.bf16.gmra.mxu0 %v1360
      %v1396 = vpop.f32.mrf.mxu0
      %v1397 = vadd.f32 0.0, %v1396
      %v1398 = vpop.f32.mrf.mxu0
      %v1399 = vpop.f32.mrf.mxu0
      %v1400 = vadd.f32 0.0, %v1399
      %v1401 = vpop.f32.mrf.mxu0
      %1402 = vdwg.mxu0
      %v1403 = vadd.f32 %v1314, %v1397
      %v1404 = vadd.f32 %v1315, %v1400
      %s1405 = scalar_lea.vmem %s2, 128
      %v1406 = vld [vmem:[%s1405] sm:$0xf]
      %v1407 = vld [vmem:[%s1405 + $0x4] sm:$0xf]
      %v1408 = vld [vmem:[%s1405 + $0x8] sm:$0xf]
      %v1409 = vld [vmem:[%s1405 + $0xc] sm:$0xf]
      %v1410 = vld [vmem:[%s1405 + $0x10] sm:$0xf]
      %v1411 = vld [vmem:[%s1405 + $0x14] sm:$0xf]
      %v1412 = vld [vmem:[%s1405 + $0x18] sm:$0xf]
      %v1413 = vld [vmem:[%s1405 + $0x1c] sm:$0xf]
      %vm1414 = vcmask 1045504
      %v1415 = vrot.slane %v1064, 2
      %v1416 = vrot.slane %v1073, 2
      %v1417 = vsel %vm1414, %v1415, %v1416
      %v1426 = vunpack.c.l.b16 %v1406
      %v1427 = vunpack.c.l.b16 %v1407
      %v1428 = vunpack.c.l.b16 %v1408
      %v1429 = vunpack.c.l.b16 %v1409
      %v1430 = vunpack.c.l.b16 %v1410
      %v1431 = vunpack.c.l.b16 %v1411
      %v1432 = vunpack.c.l.b16 %v1412
      %v1433 = vunpack.c.l.b16 %v1413
      %v1434 = vpack.c.b16 %v1427, %v1426
      %v1435 = vpack.c.b16 %v1429, %v1428
      %v1436 = vpack.c.b16 %v1431, %v1430
      %v1437 = vpack.c.b16 %v1433, %v1432
      %v1443 = vsel %vm212, %v1417, 0
      %1445 = vmatprep.subr.bf16.mxu0 0
      %1446 = vmatpush1.bf16.msra.mxu0 0
      %1447 = vmatprep.subr.bf16.mxu0 0
      %1448 = vmatpush1.bf16.msra.mxu0 0
      %1449 = vmatprep.subr.bf16.mxu0 0
      %1450 = vmatpush1.bf16.msra.mxu0 0
      %1451 = vmatprep.subr.bf16.mxu0 0
      %1452 = vmatpush1.bf16.msra.mxu0 0
      %1453 = vmatprep.subr.bf16.mxu0 0
      %1454 = vmatpush1.bf16.msra.mxu0 %v1437
      %1455 = vmatprep.subr.bf16.mxu0 0
      %1456 = vmatpush1.bf16.msra.mxu0 %v1436
      %1457 = vmatprep.subr.bf16.mxu0 0
      %1458 = vmatpush1.bf16.msra.mxu0 %v1435
      %1459 = vmatprep.subr.bf16.mxu0 0
      %1460 = vmatpush1.bf16.msra.mxu0 %v1434
      %1461 = vmatprep.subr.bf16.mxu0 0
      %1462 = vmatpush2.bf16.msra.mxu0 0
      %1463 = vmatprep.subr.bf16.mxu0 0
      %1464 = vmatpush2.bf16.msra.mxu0 0
      %1465 = vmatprep.subr.bf16.mxu0 0
      %1466 = vmatpush2.bf16.msra.mxu0 0
      %1467 = vmatprep.subr.bf16.mxu0 0
      %1468 = vmatpush2.bf16.msra.mxu0 0
      %1469 = vmatprep.subr.bf16.mxu0 0
      %1470 = vmatpush2.bf16.msra.mxu0 0
      %1471 = vmatprep.subr.bf16.mxu0 0
      %1472 = vmatpush2.bf16.msra.mxu0 0
      %1473 = vmatprep.subr.bf16.mxu0 0
      %1474 = vmatpush2.bf16.msra.mxu0 0
      %1475 = vmatprep.subr.bf16.mxu0 0
      %1476 = vmatpush2.bf16.msra.mxu0 0
      %1477 = vmatprep.mubr.bf16.mxu0 0
      %1478 = vmatmul.mubr.bf16.gmra.mxu0 %v1443
      %v1479 = vpop.f32.mrf.mxu0
      %v1480 = vadd.f32 0.0, %v1479
      %v1481 = vpop.f32.mrf.mxu0
      %v1482 = vpop.f32.mrf.mxu0
      %v1483 = vadd.f32 0.0, %v1482
      %v1484 = vpop.f32.mrf.mxu0
      %1485 = vdwg.mxu0
      %v1486 = vadd.f32 %v1403, %v1480
      %v1487 = vadd.f32 %v1404, %v1483
      %v1488 = vld [vmem:[%s3] sm:$0x1]
      %v1490 = vlaneseq
      %v1491 = vshrl.u32 %v1490, 7
      %v1492 = vsub.s32 0, %v1491
      %v1493 = vrot.slane %v1488, %v1492
      %v1495 = vadd.f32 %v1486, %v1493
      %v1496 = vadd.f32 %v1487, %v1493
      %v1497 = vmax.f32 %v1495, 0.0
      %v1498 = vmax.f32 %v1496, 0.0
      %v1499 = vld [vmem:[%s4] sm:$0xff]
      %v1500 = vld [vmem:[%s4 + $0x8] sm:$0xff]
      %vm1501 = vcmp.gt.f32.partialorder %v1499, 0.5
      %vm1502 = vcmp.gt.f32.partialorder %v1500, 0.5
      %v1503 = vsel %vm1501, %v1497, 0.0
      %v1504 = vsel %vm1502, %v1498, 0.0
      %v1505 = vmax.f32 %v1503, %v1504
      %v1506 = vrot.slane %v1505, 4
      %v1507 = vmax.f32 %v1505, %v1506
      %v1508 = vrot.slane %v1507, 2
      %v1509 = vmax.f32 %v1507, %v1508
      %v1510 = vrot.slane %v1509, 1
      %v1511 = vmax.f32 %v1509, %v1510
      %v1512 = vld [vmem:[%s5] sm:$0x1]
      %v1513 = vmul.f32 %v1511, %v1512
      %vm1514 = vcmask 1040384
      %v1515 = vsel %vm1514, %v1513, 0.0
      %1516 = vadd.xlane.f32.xlu0 %v1515
      %v1517 = vpop.xlane.xlu0 %1516
      %v1518 = vld [vmem:[#allocation6] sm:$0x1]
      %v1519 = vadd.f32 %v1517, %v1518
      %v1520 = vsub.f32 0.0, %v1519
      %v1521 = vmul.f32 %v1520, 1.442695
      %v1522 = vpow.pop %v1521
      %v1523 = vadd.f32 %v1522, 1.0
      %v1524 = vrcp.pop %v1523
      %v1525 = vmul.f32 1.0, %v1524
      %v1526 = vsub.f32 1.0, %v1525
      %v1527 = vlaneseq
      %v1528 = vand.u32 %v1527, 127
      %vm1529 = vcmp.eq.s32.totalorder %v1528, 126
      %1531 = vset.pattern.permute.xlu0 0
      %1532 = vperm.xlu0 %1531, %v1526
      %v1533 = vpop.permute.xlu0 %1532
      %v1535 = vsel %vm1529, %v1533, 0.0
      %v1536 = vadd.f32 %v1511, %v1535
      %vm1537 = vcmp.eq.s32.totalorder %v1528, 127
      %1539 = vset.pattern.permute.xlu0 0
      %1540 = vperm.xlu0 %1539, %v1525
      %v1541 = vpop.permute.xlu0 %1540
      %v1543 = vsel %vm1537, %v1541, 0.0
      %v1544 = vadd.f32 %v1536, %v1543
      %1545 = vst [vmem:[%s210] sm:$0x1] %v1544
      %p1546 = scmp.lt.s32.totalorder %s26, 1
      %s1547 = scalar_select %p1546, %s26, 1
      %s1548 = scalar_lea.vmem %s7, %s1547
      // Predicated region
      $region521: #{cnn_forward.1} parent=39 // pred_check
        %p1549 = pneg %p149
      $region522: #{cnn_forward.1} parent=39 // pred_check_branch
        %1551 = sbr.rel (%p1549) target = $region524
      $region523: #{cnn_forward.1} parent=39 // pred_region
        _
      $region524: #{cnn_forward.1} parent=39 // pred_fallthru
        _
    $region40: #{cnn_forward.1} parent=5 // pred_fallthru
      _
    %p1552 = scmp.le.s32.totalorder 2, %s21
    // Predicated region
    $region525: #{cnn_forward.1} parent=5 // pred_check
      %p1553 = pneg %p1552
    $region526: #{cnn_forward.1} parent=5 // pred_check_branch
      %1555 = sbr.rel (%p1553) target = $region528
    $region527: #{cnn_forward.1} parent=5 // pred_region
      %s1556 = ssub.s32 %s21, 2
      // Predicated region
      $region529: #{cnn_forward.1} parent=527 // pred_check
        %p1557 = pneg %p155
      $region530: #{cnn_forward.1} parent=527 // pred_check_branch
        %1559 = sbr.rel (%p1557) target = $region532
      $region531: #{cnn_forward.1} parent=527 // pred_region
        %p1560 = scmp.lt.s32.totalorder %s27, 1
        %s1561 = scalar_select %p1560, %s27, 1
        %s1562 = scalar_lea.vmem %s7, %s1561
      $region532: #{cnn_forward.1} parent=527 // pred_fallthru
        _
    $region528: #{cnn_forward.1} parent=5 // pred_fallthru
      _
  $region6: #{cnn_forward.1} parent=0 // loop_footer
    %s25 = sadd.s32 1, %s21
  $region7: #{cnn_forward.1} parent=0 // loop_footer_branch
    %20 = sbr.rel target = $region3
  $region8: #{cnn_forward.1} parent=0 // loop_exit
    _
  %1563 = vsyncmov [#allocation3]
  %s1564 = vpop.sfrf %1563
  %p1565 = scmp.eq.s32.totalorder %s1564, 0
  %p1566 = pneg %p1565
  %1568 = shalt.err (%p1566)
  %s1569 = scalar_lea.sflag [#allocation3], 1
  %1570 = vsyncmov %s1569
  %s1571 = vpop.sfrf %1570
  %p1572 = scmp.eq.s32.totalorder %s1571, 0
  %p1573 = pneg %p1572
  %1575 = shalt.err (%p1573)
  %s1576 = scalar_lea.sflag [#allocation3], 2
  %1577 = vsyncmov %s1576
  %s1578 = vpop.sfrf %1577
  %p1579 = scmp.eq.s32.totalorder %s1578, 0
  %p1580 = pneg %p1579
  %1582 = shalt.err (%p1580)
  %s1583 = scalar_lea.sflag [#allocation3], 3
  %1584 = vsyncmov %s1583
  %s1585 = vpop.sfrf %1584
  %p1586 = scmp.eq.s32.totalorder %s1585, 0
  %p1587 = pneg %p1586
  %1589 = shalt.err (%p1587)
  %s1590 = scalar_lea.sflag [#allocation3], 4
  %1591 = vsyncmov %s1590
  %s1592 = vpop.sfrf %1591
  %p1593 = scmp.eq.s32.totalorder %s1592, 0
  %p1594 = pneg %p1593
  %1596 = shalt.err (%p1594)
  %s1597 = scalar_lea.sflag [#allocation3], 5
  %1598 = vsyncmov %s1597
  %s1599 = vpop.sfrf %1598
  %p1600 = scmp.eq.s32.totalorder %s1599, 0
  %p1601 = pneg %p1600
  %1603 = shalt.err (%p1601)
  %s1604 = scalar_lea.sflag [#allocation3], 6
  %1605 = vsyncmov %s1604
  %s1606 = vpop.sfrf %1605
  %p1607 = scmp.eq.s32.totalorder %s1606, 0
  %p1608 = pneg %p1607
  %1610 = shalt.err (%p1608)
  %s1611 = scalar_lea.sflag [#allocation3], 7
  %1612 = vsyncmov %s1611
  %s1613 = vpop.sfrf %1612
  %p1614 = scmp.eq.s32.totalorder %s1613, 0
  %p1615 = pneg %p1614
  %1617 = shalt.err (%p1615)
  %s1618 = scalar_lea.sflag [#allocation3], 8
  %1619 = vsyncmov %s1618
  %s1620 = vpop.sfrf %1619
  %p1621 = scmp.eq.s32.totalorder %s1620, 0
  %p1622 = pneg %p1621
  %1624 = shalt.err (%p1622)
  %s1625 = scalar_lea.sflag [#allocation3], 9
  %1626 = vsyncmov %s1625
  %s1627 = vpop.sfrf %1626
  %p1628 = scmp.eq.s32.totalorder %s1627, 0
  %p1629 = pneg %p1628
  %1631 = shalt.err (%p1629)
  %s1632 = scalar_lea.sflag [#allocation3], 10
  %1633 = vsyncmov %s1632
  %s1634 = vpop.sfrf %1633
  %p1635 = scmp.eq.s32.totalorder %s1634, 0
  %p1636 = pneg %p1635
  %1638 = shalt.err (%p1636)
  %s1639 = scalar_lea.sflag [#allocation3], 11
  %1640 = vsyncmov %s1639
  %s1641 = vpop.sfrf %1640
  %p1642 = scmp.eq.s32.totalorder %s1641, 0
  %p1643 = pneg %p1642
  %1645 = shalt.err (%p1643)
  %s1646 = scalar_lea.sflag [#allocation3], 12
  %1647 = vsyncmov %s1646
  %s1648 = vpop.sfrf %1647
  %p1649 = scmp.eq.s32.totalorder %s1648, 0
  %p1650 = pneg %p1649
  %1652 = shalt.err (%p1650)
  %s1653 = scalar_lea.sflag [#allocation3], 13
  %1654 = vsyncmov %s1653
  %s1655 = vpop.sfrf %1654
  %p1656 = scmp.eq.s32.totalorder %s1655, 0
  %p1657 = pneg %p1656
  %1659 = shalt.err (%p1657)
  %s1660 = scalar_lea.sflag [#allocation3], 14
  %1661 = vsyncmov %s1660
  %s1662 = vpop.sfrf %1661
  %p1663 = scmp.eq.s32.totalorder %s1662, 0
  %p1664 = pneg %p1663
  %1666 = shalt.err (%p1664)
  %s1667 = scalar_lea.sflag [#allocation3], 15
  %1668 = vsyncmov %s1667
  %s1669 = vpop.sfrf %1668
  %p1670 = scmp.eq.s32.totalorder %s1669, 0
  %p1671 = pneg %p1670
  %1673 = shalt.err (%p1671)

</llo_original>
